<compile_context>
chip_gen: v7x
topology: tpu7x:2x2x1
jax: 0.10.0
libtpu: 0.0.40
codegen_flags: <defaults>
</compile_context>

<pallas_src>
import math
import functools

import jax
import jax.numpy as jnp
from jax.experimental import pallas as pl
from jax.experimental.pallas import tpu as pltpu


# ----------------------------------------------------------------------------
# Fused MAB kernel: one grid step == `block_b` batch elements.
#   q_ref   : (Bt, Nq, dim_Q)        k_ref   : (Bt, Nk, dim_K)
#   wq_ref  : (dim_Q, dim_V)         bq_ref  : (1, dim_V)
#   wkv_ref : (dim_K, 2*dim_V)       bkv_ref : (1, 2*dim_V)   ([Wk*scale | Wv])
#   wo_ref  : (dim_V, dim_V)         bo_ref  : (1, dim_V)
#   y_ref   : (Bt, Nq, dim_V)        o_scratch: VMEM (Bt, Nq, dim_V) f32
# Weights are pre-cast to `compute_dtype` on the host; biases stay f32 and are
# added to the f32 MXU accumulator.
# ----------------------------------------------------------------------------
def _mab_kernel(q_ref, k_ref, wq_ref, bq_ref, wkv_ref, bkv_ref, wo_ref, bo_ref,
                y_ref, o_scratch, *, num_heads, dim_V, compute_dtype):
    f32 = jnp.float32
    bt, nq, dim_q = q_ref.shape
    _, nk, dim_k = k_ref.shape
    dh = dim_V // num_heads

    # ---- fused projections on batch-flattened activations (MXU M = Bt*N) ----
    q2 = q_ref[...].reshape(bt * nq, dim_q).astype(compute_dtype)
    k2 = k_ref[...].reshape(bt * nk, dim_k).astype(compute_dtype)
    qp = jnp.dot(q2, wq_ref[...], preferred_element_type=f32) + bq_ref[...]
    kv = jnp.dot(k2, wkv_ref[...], preferred_element_type=f32) + bkv_ref[...]

    # ---- head inputs: casts hoisted out of the head loop ----
    qpb = qp.reshape(bt, nq, dim_V)                    # f32, kept for the residual
    qc = qpb.astype(compute_dtype)
    kc = kv[:, :dim_V].reshape(bt, nk, dim_V).astype(compute_dtype)  # pre-scaled
    vc = kv[:, dim_V:].reshape(bt, nk, dim_V).astype(compute_dtype)

    approx_recip = compute_dtype != jnp.float32
    for h in range(num_heads):                         # static loop; batched over Bt
        lo, hi = h * dh, (h + 1) * dh
        s = jnp.einsum("bqd,bkd->bqk", qc[:, :, lo:hi], kc[:, :, lo:hi],
                       preferred_element_type=f32)     # (Bt, Nq, Nk) f32
        s = s - jnp.max(s, axis=-1, keepdims=True)
        e = jnp.exp(s)
        p = e * pl.reciprocal(jnp.sum(e, axis=-1, keepdims=True),
                              approx=approx_recip)
        o_scratch[:, :, lo:hi] = jnp.einsum(
            "bqk,bkd->bqd", p.astype(compute_dtype), vc[:, :, lo:hi],
            preferred_element_type=f32)

    # ---- residual + fused output block (lane-dense: last dim = dim_V) ----
    o = (qpb + o_scratch[...]).reshape(bt * nq, dim_V)  # O = Q_ + A @ V_
    y = o + jnp.maximum(
        jnp.dot(o.astype(compute_dtype), wo_ref[...], preferred_element_type=f32)
        + bo_ref[...], 0.0)                             # O + relu(O @ Wo + bo)
    y_ref[...] = y.reshape(bt, nq, dim_V).astype(y_ref.dtype)


# ----------------------------------------------------------------------------
# Batch-block sizing / VMEM budgeting
# ----------------------------------------------------------------------------
def _activation_bytes_per_batch(Nq, Nk, dim_Q, dim_K, dim_V):
    """Rough f32 VMEM bytes per batch element (scales with block_b)."""
    pipelined = 2 * (Nq * dim_Q + Nk * dim_K + Nq * dim_V)   # double-buffered Q/K/Y
    temps = (4 * Nq * dim_V         # Qp, Qc, O scratch, y temp
             + 4 * Nk * dim_V       # KV (=2*dim_V) + Kc + Vc
             + 2 * Nq * Nk)         # per-head scores + probs
    return 4 * (pipelined + temps)


def _pick_block_b(B, Nq, Nk, dim_Q, dim_K, dim_V,
                  act_vmem_budget=16 * 1024 * 1024):
    """Largest divisor of B that fills the MXU M dim (~256 rows) without
    blowing the activation VMEM budget (v7x has only 64 MiB/TC)."""
    per_b = max(1, _activation_bytes_per_batch(Nq, Nk, dim_Q, dim_K, dim_V))
    cap = max(1, act_vmem_budget // per_b)
    target = max(1, -(-256 // max(Nq, 1)))   # ceil(256 / Nq)
    want = max(1, min(B, cap, target))
    for bt in range(want, 0, -1):
        if B % bt == 0:
            return bt
    return 1


# ----------------------------------------------------------------------------
# Wrapper
# ----------------------------------------------------------------------------
def mab_forward(Q, K, params, num_heads, compute_dtype=jnp.float32, block_b=None):
    """Fused MAB forward. Q: (B, Nq, dim_Q), K: (B, Nk, dim_K) -> (B, Nq, dim_V)."""
    B, Nq, dim_Q = Q.shape
    Bk, Nk, dim_K = K.shape
    assert Bk == B
    dim_V = params["wq"].shape[1]
    assert dim_V % num_heads == 0

    # Fold 1/sqrt(dim_V) into the K projection (zero in-kernel cost) and
    # concatenate [Wk|Wv] so the K activation is matmul'd exactly once.
    scale = 1.0 / math.sqrt(dim_V)
    wkv = jnp.concatenate([params["wk"] * scale, params["wv"]], axis=1)
    bkv = jnp.concatenate([params["bk"] * scale, params["bv"]], axis=1)
    wq, wo = params["wq"], params["wo"]
    if compute_dtype != jnp.float32:
        # Pre-cast resident weights: halves DMA/VMEM bytes, no per-step cast.
        wq, wkv, wo = (w.astype(compute_dtype) for w in (wq, wkv, wo))

    if block_b is None:
        block_b = _pick_block_b(B, Nq, Nk, dim_Q, dim_K, dim_V)
    assert B % block_b == 0, f"batch {B} not divisible by block_b {block_b}"

    # Explicit scoped-VMEM limit sized to the per-step footprint.
    w_bytes = sum(int(w.size) * w.dtype.itemsize for w in (wq, wkv, wo))
    b_bytes = sum(int(b.size) * b.dtype.itemsize
                  for b in (params["bq"], bkv, params["bo"]))
    est = (2 * (w_bytes + b_bytes)
           + block_b * _activation_bytes_per_batch(Nq, Nk, dim_Q, dim_K, dim_V)
           + (4 << 20))
    vmem_limit = int(min(max(est, 32 << 20), 48 << 20))

    kern = functools.partial(
        _mab_kernel, num_heads=num_heads, dim_V=dim_V, compute_dtype=compute_dtype)

    return pl.pallas_call(
        kern,
        out_shape=jax.ShapeDtypeStruct((B, Nq, dim_V), jnp.float32),
        grid=(B // block_b,),
        in_specs=[
            pl.BlockSpec((block_b, Nq, dim_Q), lambda b: (b, 0, 0)),
            pl.BlockSpec((block_b, Nk, dim_K), lambda b: (b, 0, 0)),
            # Weights/biases: same block every step -> stay VMEM-resident.
            pl.BlockSpec((dim_Q, dim_V), lambda b: (0, 0)),
            pl.BlockSpec((1, dim_V), lambda b: (0, 0)),
            pl.BlockSpec((dim_K, 2 * dim_V), lambda b: (0, 0)),
            pl.BlockSpec((1, 2 * dim_V), lambda b: (0, 0)),
            pl.BlockSpec((dim_V, dim_V), lambda b: (0, 0)),
            pl.BlockSpec((1, dim_V), lambda b: (0, 0)),
        ],
        out_specs=pl.BlockSpec((block_b, Nq, dim_V), lambda b: (b, 0, 0)),
        scratch_shapes=[pltpu.VMEM((block_b, Nq, dim_V), jnp.float32)],
        compiler_params=pltpu.CompilerParams(
            dimension_semantics=("parallel",),
            vmem_limit_bytes=vmem_limit,
        ),
    )(Q, K, wq, params["bq"], wkv, bkv, wo, params["bo"])


# ----------------------------------------------------------------------------
# Pure-JAX reference (mirrors the PyTorch forward) for verification
# ----------------------------------------------------------------------------
def mab_reference(Q, K, params, num_heads):
    dim_V = params["wq"].shape[1]
    Qp = Q @ params["wq"] + params["bq"]
    Kp = K @ params["wk"] + params["bk"]
    Vp = K @ params["wv"] + params["bv"]
    Q_ = jnp.concatenate(jnp.split(Qp, num_heads, axis=2), axis=0)
    K_ = jnp.concatenate(jnp.split(Kp, num_heads, axis=2), axis=0)
    V_ = jnp.concatenate(jnp.split(Vp, num_heads, axis=2), axis=0)
    A = jax.nn.softmax(jnp.einsum("bqd,bkd->bqk", Q_, K_) / math.sqrt(dim_V), -1)
    O = jnp.concatenate(
        jnp.split(Q_ + jnp.einsum("bqk,bkd->bqd", A, V_), num_heads, axis=0),
        axis=2)
    return O + jax.nn.relu(O @ params["wo"] + params["bo"])


# ----------------------------------------------------------------------------
def init_params(key, dim_Q, dim_K, dim_V):
    # PyTorch nn.Linear default init: U(-1/sqrt(fan_in), 1/sqrt(fan_in)).
    # Weights stored transposed, (in, out), so kernels do x @ W.
    ks = jax.random.split(key, 8)

    def lin(kw, kb, din, dout):
        bound = 1.0 / math.sqrt(din)
        w = jax.random.uniform(kw, (din, dout), jnp.float32, -bound, bound)
        b = jax.random.uniform(kb, (1, dout), jnp.float32, -bound, bound)
        return w, b

    wq, bq = lin(ks[0], ks[1], dim_Q, dim_V)
    wk, bk = lin(ks[2], ks[3], dim_K, dim_V)
    wv, bv = lin(ks[4], ks[5], dim_K, dim_V)
    wo, bo = lin(ks[6], ks[7], dim_V, dim_V)
    return dict(wq=wq, bq=bq, wk=wk, bk=bk, wv=wv, bv=bv, wo=wo, bo=bo)


if __name__ == "__main__":
    B, Nq, Nk = 8, 8, 8
    dim_Q, dim_K, dim_V, num_heads = 16, 24, 32, 4

    key = jax.random.PRNGKey(0)
    kq, kk, kp = jax.random.split(key, 3)
    Q = jax.random.normal(kq, (B, Nq, dim_Q), jnp.float32)
    K = jax.random.normal(kk, (B, Nk, dim_K), jnp.float32)
    params = init_params(kp, dim_Q, dim_K, dim_V)

    ref = mab_reference(Q, K, params, num_heads)

    # f32 path, auto block_b (all batch elements in one grid step here).
    out = jax.block_until_ready(mab_forward(Q, K, params, num_heads))
    assert out.shape == (B, Nq, dim_V)
    err = float(jnp.max(jnp.abs(out - ref)))
    assert err < 1e-4, f"f32 path max abs error {err}"

    # f32 path with an explicit smaller batch block -> multi-step grid.
    out2 = jax.block_until_ready(
        mab_forward(Q, K, params, num_heads, block_b=2))
    err2 = float(jnp.max(jnp.abs(out2 - ref)))
    assert err2 < 1e-4, f"f32 (block_b=2) max abs error {err2}"

    # bf16 MXU path: relaxed tolerance (bf16 operands + approx softmax recip).
    out_bf16 = jax.block_until_ready(
        mab_forward(Q, K, params, num_heads, compute_dtype=jnp.bfloat16))
    err16 = float(jnp.max(jnp.abs(out_bf16 - ref)))
    assert err16 < 1e-1, f"bf16 path max abs error {err16}"

    print("KERNEL_OK")
</pallas_src>

<mosaic_0001>
module attributes {stable_mosaic.version = 11 : i64} {
  func.func @_mab_kernel(%arg0: i32, %arg1: memref<8x8x16xf32, #tpu.memory_space<vmem>>, %arg2: memref<8x8x24xf32, #tpu.memory_space<vmem>>, %arg3: memref<16x32xf32, #tpu.memory_space<vmem>>, %arg4: memref<1x32xf32, #tpu.memory_space<vmem>>, %arg5: memref<24x64xf32, #tpu.memory_space<vmem>>, %arg6: memref<1x64xf32, #tpu.memory_space<vmem>>, %arg7: memref<32x32xf32, #tpu.memory_space<vmem>>, %arg8: memref<1x32xf32, #tpu.memory_space<vmem>>, %arg9: memref<8x8x32xf32, #tpu.memory_space<vmem>>, %arg10: memref<8x8x32xf32, #tpu.memory_space<vmem>>) attributes {dimension_semantics = [#tpu.dimension_semantics<parallel>], iteration_bounds = array<i64: 1>, scalar_prefetch = 0 : i64, scratch_operands = 1 : i64, tpu.core_type = #tpu.core_type<tc>, window_params = [{transform_indices = @transform_0, window_bounds = array<i64: 8, 8, 16>}, {transform_indices = @transform_1, window_bounds = array<i64: 8, 8, 24>}, {pipeline_mode = #tpu.pipeline_mode<synchronous>, transform_indices = @transform_2, window_bounds = array<i64: 16, 32>}, {pipeline_mode = #tpu.pipeline_mode<synchronous>, transform_indices = @transform_3, window_bounds = array<i64: 1, 32>}, {pipeline_mode = #tpu.pipeline_mode<synchronous>, transform_indices = @transform_4, window_bounds = array<i64: 24, 64>}, {pipeline_mode = #tpu.pipeline_mode<synchronous>, transform_indices = @transform_5, window_bounds = array<i64: 1, 64>}, {pipeline_mode = #tpu.pipeline_mode<synchronous>, transform_indices = @transform_6, window_bounds = array<i64: 32, 32>}, {pipeline_mode = #tpu.pipeline_mode<synchronous>, transform_indices = @transform_7, window_bounds = array<i64: 1, 32>}, {transform_indices = @transform_8, window_bounds = array<i64: 8, 8, 32>}]} {
    %c0 = arith.constant 0 : index
    %c0_0 = arith.constant 0 : index
    %c0_1 = arith.constant 0 : index
    %0 = vector.load %arg1[%c0, %c0_0, %c0_1] : memref<8x8x16xf32, #tpu.memory_space<vmem>>, vector<8x8x16xf32>
    %1 = vector.shape_cast %0 : vector<8x8x16xf32> to vector<64x16xf32>
    %c0_2 = arith.constant 0 : index
    %c0_3 = arith.constant 0 : index
    %c0_4 = arith.constant 0 : index
    %2 = vector.load %arg2[%c0_2, %c0_3, %c0_4] : memref<8x8x24xf32, #tpu.memory_space<vmem>>, vector<8x8x24xf32>
    %3 = vector.shape_cast %2 : vector<8x8x24xf32> to vector<64x24xf32>
    %c0_5 = arith.constant 0 : index
    %c0_6 = arith.constant 0 : index
    %4 = vector.load %arg3[%c0_5, %c0_6] : memref<16x32xf32, #tpu.memory_space<vmem>>, vector<16x32xf32>
    %cst = arith.constant dense<0.000000e+00> : vector<64x32xf32>
    %5 = tpu.matmul %1, %4, %cst {dimension_numbers = #tpu.dot_dimension_numbers<[1], [0], [0], [1], [0, 0, 1, 1], [], []>} : vector<64x16xf32>, vector<16x32xf32>, vector<64x32xf32> -> vector<64x32xf32>
    %c0_7 = arith.constant 0 : index
    %c0_8 = arith.constant 0 : index
    %6 = vector.load %arg4[%c0_7, %c0_8] : memref<1x32xf32, #tpu.memory_space<vmem>>, vector<1x32xf32>
    %7 = vector.broadcast %6 : vector<1x32xf32> to vector<64x32xf32>
    %8 = arith.addf %5, %7 : vector<64x32xf32>
    %c0_9 = arith.constant 0 : index
    %c0_10 = arith.constant 0 : index
    %9 = vector.load %arg5[%c0_9, %c0_10] : memref<24x64xf32, #tpu.memory_space<vmem>>, vector<24x64xf32>
    %cst_11 = arith.constant dense<0.000000e+00> : vector<64x64xf32>
    %10 = tpu.matmul %3, %9, %cst_11 {dimension_numbers = #tpu.dot_dimension_numbers<[1], [0], [0], [1], [0, 0, 1, 1], [], []>} : vector<64x24xf32>, vector<24x64xf32>, vector<64x64xf32> -> vector<64x64xf32>
    %c0_12 = arith.constant 0 : index
    %c0_13 = arith.constant 0 : index
    %11 = vector.load %arg6[%c0_12, %c0_13] : memref<1x64xf32, #tpu.memory_space<vmem>>, vector<1x64xf32>
    %12 = vector.broadcast %11 : vector<1x64xf32> to vector<64x64xf32>
    %13 = arith.addf %10, %12 : vector<64x64xf32>
    %14 = vector.shape_cast %8 : vector<64x32xf32> to vector<8x8x32xf32>
    %15 = vector.extract_strided_slice %13 {offsets = [0, 0], sizes = [64, 32], strides = [1, 1]} : vector<64x64xf32> to vector<64x32xf32>
    %16 = vector.shape_cast %15 : vector<64x32xf32> to vector<8x8x32xf32>
    %17 = vector.extract_strided_slice %13 {offsets = [0, 32], sizes = [64, 32], strides = [1, 1]} : vector<64x64xf32> to vector<64x32xf32>
    %18 = vector.shape_cast %17 : vector<64x32xf32> to vector<8x8x32xf32>
    %19 = vector.extract_strided_slice %14 {offsets = [0, 0, 0], sizes = [8, 8, 8], strides = [1, 1, 1]} : vector<8x8x32xf32> to vector<8x8x8xf32>
    %20 = vector.extract_strided_slice %16 {offsets = [0, 0, 0], sizes = [8, 8, 8], strides = [1, 1, 1]} : vector<8x8x32xf32> to vector<8x8x8xf32>
    "tpu.trace_start"() <{level = 10 : i32, message = "bqd,bkd->bqk"}> : () -> ()
    %cst_14 = arith.constant dense<0.000000e+00> : vector<8x8x8xf32>
    %21 = tpu.matmul %19, %20, %cst_14 {dimension_numbers = #tpu.dot_dimension_numbers<[2], [2], [1], [1], [0, 0, 0, 1, 1, 1], [0], [0]>} : vector<8x8x8xf32>, vector<8x8x8xf32>, vector<8x8x8xf32> -> vector<8x8x8xf32>
    "tpu.trace_stop"() : () -> ()
    %cst_15 = arith.constant dense<0xFF800000> : vector<8x8xf32>
    %22 = vector.multi_reduction <maximumf>, %21, %cst_15 [2] : vector<8x8x8xf32> to vector<8x8xf32>
    %23 = vector.shape_cast %22 : vector<8x8xf32> to vector<8x8x1xf32>
    %24 = vector.broadcast %23 : vector<8x8x1xf32> to vector<8x8x8xf32>
    %25 = arith.subf %21, %24 : vector<8x8x8xf32>
    %26 = math.exp %25 : vector<8x8x8xf32>
    %cst_16 = arith.constant dense<0.000000e+00> : vector<8x8xf32>
    %27 = vector.multi_reduction <add>, %26, %cst_16 [2] : vector<8x8x8xf32> to vector<8x8xf32>
    %28 = vector.shape_cast %27 : vector<8x8xf32> to vector<8x8x1xf32>
    %29 = tpu.reciprocal %28 : vector<8x8x1xf32> -> vector<8x8x1xf32>
    %30 = vector.broadcast %29 : vector<8x8x1xf32> to vector<8x8x8xf32>
    %31 = arith.mulf %26, %30 : vector<8x8x8xf32>
    %32 = vector.extract_strided_slice %18 {offsets = [0, 0, 0], sizes = [8, 8, 8], strides = [1, 1, 1]} : vector<8x8x32xf32> to vector<8x8x8xf32>
    "tpu.trace_start"() <{level = 10 : i32, message = "bqk,bkd->bqd"}> : () -> ()
    %cst_17 = arith.constant dense<0.000000e+00> : vector<8x8x8xf32>
    %33 = tpu.matmul %31, %32, %cst_17 {dimension_numbers = #tpu.dot_dimension_numbers<[2], [1], [1], [2], [0, 0, 0, 1, 1, 2], [0], [0]>} : vector<8x8x8xf32>, vector<8x8x8xf32>, vector<8x8x8xf32> -> vector<8x8x8xf32>
    "tpu.trace_stop"() : () -> ()
    %c0_18 = arith.constant 0 : index
    %c0_19 = arith.constant 0 : index
    %c0_20 = arith.constant 0 : index
    %34 = vector.load %arg10[%c0_18, %c0_19, %c0_20] : memref<8x8x32xf32, #tpu.memory_space<vmem>>, vector<8x8x8xf32>
    tpu.vector_store %arg10[%c0_18, %c0_19, %c0_20], %33 {strides = array<i32>} : memref<8x8x32xf32, #tpu.memory_space<vmem>>, vector<8x8x8xf32>,
    %35 = vector.extract_strided_slice %14 {offsets = [0, 0, 8], sizes = [8, 8, 8], strides = [1, 1, 1]} : vector<8x8x32xf32> to vector<8x8x8xf32>
    %36 = vector.extract_strided_slice %16 {offsets = [0, 0, 8], sizes = [8, 8, 8], strides = [1, 1, 1]} : vector<8x8x32xf32> to vector<8x8x8xf32>
    "tpu.trace_start"() <{level = 10 : i32, message = "bqd,bkd->bqk"}> : () -> ()
    %cst_21 = arith.constant dense<0.000000e+00> : vector<8x8x8xf32>
    %37 = tpu.matmul %35, %36, %cst_21 {dimension_numbers = #tpu.dot_dimension_numbers<[2], [2], [1], [1], [0, 0, 0, 1, 1, 1], [0], [0]>} : vector<8x8x8xf32>, vector<8x8x8xf32>, vector<8x8x8xf32> -> vector<8x8x8xf32>
    "tpu.trace_stop"() : () -> ()
    %cst_22 = arith.constant dense<0xFF800000> : vector<8x8xf32>
    %38 = vector.multi_reduction <maximumf>, %37, %cst_22 [2] : vector<8x8x8xf32> to vector<8x8xf32>
    %39 = vector.shape_cast %38 : vector<8x8xf32> to vector<8x8x1xf32>
    %40 = vector.broadcast %39 : vector<8x8x1xf32> to vector<8x8x8xf32>
    %41 = arith.subf %37, %40 : vector<8x8x8xf32>
    %42 = math.exp %41 : vector<8x8x8xf32>
    %cst_23 = arith.constant dense<0.000000e+00> : vector<8x8xf32>
    %43 = vector.multi_reduction <add>, %42, %cst_23 [2] : vector<8x8x8xf32> to vector<8x8xf32>
    %44 = vector.shape_cast %43 : vector<8x8xf32> to vector<8x8x1xf32>
    %45 = tpu.reciprocal %44 : vector<8x8x1xf32> -> vector<8x8x1xf32>
    %46 = vector.broadcast %45 : vector<8x8x1xf32> to vector<8x8x8xf32>
    %47 = arith.mulf %42, %46 : vector<8x8x8xf32>
    %48 = vector.extract_strided_slice %18 {offsets = [0, 0, 8], sizes = [8, 8, 8], strides = [1, 1, 1]} : vector<8x8x32xf32> to vector<8x8x8xf32>
    "tpu.trace_start"() <{level = 10 : i32, message = "bqk,bkd->bqd"}> : () -> ()
    %cst_24 = arith.constant dense<0.000000e+00> : vector<8x8x8xf32>
    %49 = tpu.matmul %47, %48, %cst_24 {dimension_numbers = #tpu.dot_dimension_numbers<[2], [1], [1], [2], [0, 0, 0, 1, 1, 2], [0], [0]>} : vector<8x8x8xf32>, vector<8x8x8xf32>, vector<8x8x8xf32> -> vector<8x8x8xf32>
    "tpu.trace_stop"() : () -> ()
    %c0_25 = arith.constant 0 : index
    %c0_26 = arith.constant 0 : index
    %c8 = arith.constant 8 : index
    %50 = vector.load %arg10[%c0_25, %c0_26, %c8] : memref<8x8x32xf32, #tpu.memory_space<vmem>>, vector<8x8x8xf32>
    tpu.vector_store %arg10[%c0_25, %c0_26, %c8], %49 {strides = array<i32>} : memref<8x8x32xf32, #tpu.memory_space<vmem>>, vector<8x8x8xf32>,
    %51 = vector.extract_strided_slice %14 {offsets = [0, 0, 16], sizes = [8, 8, 8], strides = [1, 1, 1]} : vector<8x8x32xf32> to vector<8x8x8xf32>
    %52 = vector.extract_strided_slice %16 {offsets = [0, 0, 16], sizes = [8, 8, 8], strides = [1, 1, 1]} : vector<8x8x32xf32> to vector<8x8x8xf32>
    "tpu.trace_start"() <{level = 10 : i32, message = "bqd,bkd->bqk"}> : () -> ()
    %cst_27 = arith.constant dense<0.000000e+00> : vector<8x8x8xf32>
    %53 = tpu.matmul %51, %52, %cst_27 {dimension_numbers = #tpu.dot_dimension_numbers<[2], [2], [1], [1], [0, 0, 0, 1, 1, 1], [0], [0]>} : vector<8x8x8xf32>, vector<8x8x8xf32>, vector<8x8x8xf32> -> vector<8x8x8xf32>
    "tpu.trace_stop"() : () -> ()
    %cst_28 = arith.constant dense<0xFF800000> : vector<8x8xf32>
    %54 = vector.multi_reduction <maximumf>, %53, %cst_28 [2] : vector<8x8x8xf32> to vector<8x8xf32>
    %55 = vector.shape_cast %54 : vector<8x8xf32> to vector<8x8x1xf32>
    %56 = vector.broadcast %55 : vector<8x8x1xf32> to vector<8x8x8xf32>
    %57 = arith.subf %53, %56 : vector<8x8x8xf32>
    %58 = math.exp %57 : vector<8x8x8xf32>
    %cst_29 = arith.constant dense<0.000000e+00> : vector<8x8xf32>
    %59 = vector.multi_reduction <add>, %58, %cst_29 [2] : vector<8x8x8xf32> to vector<8x8xf32>
    %60 = vector.shape_cast %59 : vector<8x8xf32> to vector<8x8x1xf32>
    %61 = tpu.reciprocal %60 : vector<8x8x1xf32> -> vector<8x8x1xf32>
    %62 = vector.broadcast %61 : vector<8x8x1xf32> to vector<8x8x8xf32>
    %63 = arith.mulf %58, %62 : vector<8x8x8xf32>
    %64 = vector.extract_strided_slice %18 {offsets = [0, 0, 16], sizes = [8, 8, 8], strides = [1, 1, 1]} : vector<8x8x32xf32> to vector<8x8x8xf32>
    "tpu.trace_start"() <{level = 10 : i32, message = "bqk,bkd->bqd"}> : () -> ()
    %cst_30 = arith.constant dense<0.000000e+00> : vector<8x8x8xf32>
    %65 = tpu.matmul %63, %64, %cst_30 {dimension_numbers = #tpu.dot_dimension_numbers<[2], [1], [1], [2], [0, 0, 0, 1, 1, 2], [0], [0]>} : vector<8x8x8xf32>, vector<8x8x8xf32>, vector<8x8x8xf32> -> vector<8x8x8xf32>
    "tpu.trace_stop"() : () -> ()
    %c0_31 = arith.constant 0 : index
    %c0_32 = arith.constant 0 : index
    %c16 = arith.constant 16 : index
    %66 = vector.load %arg10[%c0_31, %c0_32, %c16] : memref<8x8x32xf32, #tpu.memory_space<vmem>>, vector<8x8x8xf32>
    tpu.vector_store %arg10[%c0_31, %c0_32, %c16], %65 {strides = array<i32>} : memref<8x8x32xf32, #tpu.memory_space<vmem>>, vector<8x8x8xf32>,
    %67 = vector.extract_strided_slice %14 {offsets = [0, 0, 24], sizes = [8, 8, 8], strides = [1, 1, 1]} : vector<8x8x32xf32> to vector<8x8x8xf32>
    %68 = vector.extract_strided_slice %16 {offsets = [0, 0, 24], sizes = [8, 8, 8], strides = [1, 1, 1]} : vector<8x8x32xf32> to vector<8x8x8xf32>
    "tpu.trace_start"() <{level = 10 : i32, message = "bqd,bkd->bqk"}> : () -> ()
    %cst_33 = arith.constant dense<0.000000e+00> : vector<8x8x8xf32>
    %69 = tpu.matmul %67, %68, %cst_33 {dimension_numbers = #tpu.dot_dimension_numbers<[2], [2], [1], [1], [0, 0, 0, 1, 1, 1], [0], [0]>} : vector<8x8x8xf32>, vector<8x8x8xf32>, vector<8x8x8xf32> -> vector<8x8x8xf32>
    "tpu.trace_stop"() : () -> ()
    %cst_34 = arith.constant dense<0xFF800000> : vector<8x8xf32>
    %70 = vector.multi_reduction <maximumf>, %69, %cst_34 [2] : vector<8x8x8xf32> to vector<8x8xf32>
    %71 = vector.shape_cast %70 : vector<8x8xf32> to vector<8x8x1xf32>
    %72 = vector.broadcast %71 : vector<8x8x1xf32> to vector<8x8x8xf32>
    %73 = arith.subf %69, %72 : vector<8x8x8xf32>
    %74 = math.exp %73 : vector<8x8x8xf32>
    %cst_35 = arith.constant dense<0.000000e+00> : vector<8x8xf32>
    %75 = vector.multi_reduction <add>, %74, %cst_35 [2] : vector<8x8x8xf32> to vector<8x8xf32>
    %76 = vector.shape_cast %75 : vector<8x8xf32> to vector<8x8x1xf32>
    %77 = tpu.reciprocal %76 : vector<8x8x1xf32> -> vector<8x8x1xf32>
    %78 = vector.broadcast %77 : vector<8x8x1xf32> to vector<8x8x8xf32>
    %79 = arith.mulf %74, %78 : vector<8x8x8xf32>
    %80 = vector.extract_strided_slice %18 {offsets = [0, 0, 24], sizes = [8, 8, 8], strides = [1, 1, 1]} : vector<8x8x32xf32> to vector<8x8x8xf32>
    "tpu.trace_start"() <{level = 10 : i32, message = "bqk,bkd->bqd"}> : () -> ()
    %cst_36 = arith.constant dense<0.000000e+00> : vector<8x8x8xf32>
    %81 = tpu.matmul %79, %80, %cst_36 {dimension_numbers = #tpu.dot_dimension_numbers<[2], [1], [1], [2], [0, 0, 0, 1, 1, 2], [0], [0]>} : vector<8x8x8xf32>, vector<8x8x8xf32>, vector<8x8x8xf32> -> vector<8x8x8xf32>
    "tpu.trace_stop"() : () -> ()
    %c0_37 = arith.constant 0 : index
    %c0_38 = arith.constant 0 : index
    %c24 = arith.constant 24 : index
    %82 = vector.load %arg10[%c0_37, %c0_38, %c24] : memref<8x8x32xf32, #tpu.memory_space<vmem>>, vector<8x8x8xf32>
    tpu.vector_store %arg10[%c0_37, %c0_38, %c24], %81 {strides = array<i32>} : memref<8x8x32xf32, #tpu.memory_space<vmem>>, vector<8x8x8xf32>,
    %c0_39 = arith.constant 0 : index
    %c0_40 = arith.constant 0 : index
    %c0_41 = arith.constant 0 : index
    %83 = vector.load %arg10[%c0_39, %c0_40, %c0_41] : memref<8x8x32xf32, #tpu.memory_space<vmem>>, vector<8x8x32xf32>
    %84 = arith.addf %14, %83 : vector<8x8x32xf32>
    %85 = vector.shape_cast %84 : vector<8x8x32xf32> to vector<64x32xf32>
    %c0_42 = arith.constant 0 : index
    %c0_43 = arith.constant 0 : index
    %86 = vector.load %arg7[%c0_42, %c0_43] : memref<32x32xf32, #tpu.memory_space<vmem>>, vector<32x32xf32>
    %cst_44 = arith.constant dense<0.000000e+00> : vector<64x32xf32>
    %87 = tpu.matmul %85, %86, %cst_44 {dimension_numbers = #tpu.dot_dimension_numbers<[1], [0], [0], [1], [0, 0, 1, 1], [], []>} : vector<64x32xf32>, vector<32x32xf32>, vector<64x32xf32> -> vector<64x32xf32>
    %c0_45 = arith.constant 0 : index
    %c0_46 = arith.constant 0 : index
    %88 = vector.load %arg8[%c0_45, %c0_46] : memref<1x32xf32, #tpu.memory_space<vmem>>, vector<1x32xf32>
    %89 = vector.broadcast %88 : vector<1x32xf32> to vector<64x32xf32>
    %90 = arith.addf %87, %89 : vector<64x32xf32>
    %cst_47 = arith.constant 0.000000e+00 : f32
    %91 = vector.broadcast %cst_47 : f32 to vector<64x32xf32>
    %92 = arith.maximumf %90, %91 : vector<64x32xf32>
    %93 = arith.addf %85, %92 : vector<64x32xf32>
    %94 = vector.shape_cast %93 : vector<64x32xf32> to vector<8x8x32xf32>
    %c0_48 = arith.constant 0 : index
    %c0_49 = arith.constant 0 : index
    %c0_50 = arith.constant 0 : index
    %95 = vector.load %arg9[%c0_48, %c0_49, %c0_50] : memref<8x8x32xf32, #tpu.memory_space<vmem>>, vector<8x8x32xf32>
    tpu.vector_store %arg9[%c0_48, %c0_49, %c0_50], %94 {strides = array<i32>} : memref<8x8x32xf32, #tpu.memory_space<vmem>>, vector<8x8x32xf32>,
    return
  }
  func.func @transform_0(%arg0: i32) -> (i32, i32, i32) {
    %c0_i32 = arith.constant 0 : i32
    %c0_i32_0 = arith.constant 0 : i32
    %c0_i32_1 = arith.constant 0 : i32
    return %arg0, %c0_i32, %c0_i32_0 : i32, i32, i32
  }
  func.func @transform_1(%arg0: i32) -> (i32, i32, i32) {
    %c0_i32 = arith.constant 0 : i32
    %c0_i32_0 = arith.constant 0 : i32
    %c0_i32_1 = arith.constant 0 : i32
    return %arg0, %c0_i32, %c0_i32_0 : i32, i32, i32
  }
  func.func @transform_2(%arg0: i32) -> (i32, i32) {
    %c0_i32 = arith.constant 0 : i32
    %c0_i32_0 = arith.constant 0 : i32
    %c0_i32_1 = arith.constant 0 : i32
    return %c0_i32, %c0_i32_0 : i32, i32
  }
  func.func @transform_3(%arg0: i32) -> (i32, i32) {
    %c0_i32 = arith.constant 0 : i32
    %c0_i32_0 = arith.constant 0 : i32
    %c0_i32_1 = arith.constant 0 : i32
    return %c0_i32, %c0_i32_0 : i32, i32
  }
  func.func @transform_4(%arg0: i32) -> (i32, i32) {
    %c0_i32 = arith.constant 0 : i32
    %c0_i32_0 = arith.constant 0 : i32
    %c0_i32_1 = arith.constant 0 : i32
    return %c0_i32, %c0_i32_0 : i32, i32
  }
  func.func @transform_5(%arg0: i32) -> (i32, i32) {
    %c0_i32 = arith.constant 0 : i32
    %c0_i32_0 = arith.constant 0 : i32
    %c0_i32_1 = arith.constant 0 : i32
    return %c0_i32, %c0_i32_0 : i32, i32
  }
  func.func @transform_6(%arg0: i32) -> (i32, i32) {
    %c0_i32 = arith.constant 0 : i32
    %c0_i32_0 = arith.constant 0 : i32
    %c0_i32_1 = arith.constant 0 : i32
    return %c0_i32, %c0_i32_0 : i32, i32
  }
  func.func @transform_7(%arg0: i32) -> (i32, i32) {
    %c0_i32 = arith.constant 0 : i32
    %c0_i32_0 = arith.constant 0 : i32
    %c0_i32_1 = arith.constant 0 : i32
    return %c0_i32, %c0_i32_0 : i32, i32
  }
  func.func @transform_8(%arg0: i32) -> (i32, i32, i32) {
    %c0_i32 = arith.constant 0 : i32
    %c0_i32_0 = arith.constant 0 : i32
    %c0_i32_1 = arith.constant 0 : i32
    return %arg0, %c0_i32, %c0_i32_0 : i32, i32, i32
  }
}

</mosaic_0001>

<llo_original>
// kernel: tpu_custom_call.1
$region0: #{tpu_custom_call.1}
  #allocation0 [shape = 'u32[]', space=smem, size = 0x4, offset = 0x4, fixed_abs, tag = 'smem constant byte address 0x4 - core index']
  #allocation1 [shape = 'u32[144,128]{1,0:T(1,128)}', space=vmem, size = 0x12000, scoped, tag = 'internal scratch']
  #allocation2 [shape = 'f32[8,8,32]{2,1,0:T(8,128)}', space=vmem, size = 0x8000, scoped, tag = 'scratch operand']
  %s0 = inlined_call_operand.hbm [shape: f32[8,8,16], index: 0, kind: input, shape index: {}]
  %s1 = inlined_call_operand.hbm [shape: f32[8,8,24], index: 1, kind: input, shape index: {}]
  %s2 = inlined_call_operand.hbm [shape: f32[16,32], index: 2, kind: input, shape index: {}]
  %s3 = inlined_call_operand.vmem [shape: f32[1,32], index: 3, kind: input, shape index: {}]
  %s4 = inlined_call_operand.hbm [shape: f32[24,64], index: 4, kind: input, shape index: {}]
  %s5 = inlined_call_operand.vmem [shape: f32[1,64], index: 5, kind: input, shape index: {}]
  %s6 = inlined_call_operand.hbm [shape: f32[32,32], index: 6, kind: input, shape index: {}]
  %s7 = inlined_call_operand.vmem [shape: f32[1,32], index: 7, kind: input, shape index: {}]
  %s8 = inlined_call_operand.hbm [shape: f32[8,8,32], index: 8, kind: output, shape index: {}]
  %s9 = sld [smem:[#allocation0]]
  $region62: #{tpu_custom_call.1} parent=0
    _
  %s11 = ssub.s32 1, %s9
  %s12 = scalar_select 0, %s11, %s9
  $region1: #{tpu_custom_call.1} parent=0
    #allocation3 [shape = 'u8[32768]{0}', space=vmem, size = 0x8000, scoped, tag = 'input window, operand 0, single buffered']
    #allocation4 [shape = 's32[1]{0}', space=sflag, size = 0x4, scoped, tag = 'scoped memory for tpu_custom_call.1']
    #allocation5 [shape = 's32[1]{0}', space=sflag, size = 0x4, scoped, tag = 'scoped memory for tpu_custom_call.1']
    #allocation6 [shape = 'u8[32768]{0}', space=vmem, size = 0x8000, scoped, tag = 'input window, operand 1, single buffered']
    #allocation7 [shape = 's32[1]{0}', space=sflag, size = 0x4, scoped, tag = 'scoped memory for tpu_custom_call.1']
    #allocation8 [shape = 'u8[8192]{0}', space=vmem, size = 0x2000, scoped, tag = 'input window, operand 2, single buffered']
    #allocation9 [shape = 'u8[12288]{0}', space=vmem, size = 0x3000, scoped, tag = 'input window, operand 4, single buffered']
    #allocation10 [shape = 's32[1]{0}', space=sflag, size = 0x4, scoped, tag = 'scoped memory for tpu_custom_call.1']
    #allocation11 [shape = 'u8[16384]{0}', space=vmem, size = 0x4000, scoped, tag = 'input window, operand 6, single buffered']
    #allocation12 [shape = 'u8[32768]{0}', space=vmem, size = 0x8000, scoped, tag = 'output window, operand 0, single buffered']
    %13 = vsyncpa [#allocation4], 0
    %14 = vsyncpa [#allocation7], 0
    %15 = vsyncpa [#allocation10], 0
    %16 = vsyncpa [#allocation5], 0
    // Predicated region
    $region2: #{tpu_custom_call.1} parent=1 // pred_check
      _
    $region3: #{tpu_custom_call.1} parent=1 // pred_check_branch
      %18 = sbr.rel (0) target = $region5
    $region4: #{tpu_custom_call.1} parent=1 // pred_region
      %s20 = ssub.s32 1024, 1024
      %21 = vsyncadd [#allocation4], %s20
      %s22 = sshll.u32 [#allocation3], 4
      %s23 = int_to_ptr.vmem [resolvable:$true] %s22
      %28 = dma.hbm_to_vmem [thread:$0]  %s0, 1024, %s23, [#allocation4], 128, 128, 8
    $region5: #{tpu_custom_call.1} parent=1 // pred_fallthru
      _
    // Predicated region
    $region6: #{tpu_custom_call.1} parent=1 // pred_check
      _
    $region7: #{tpu_custom_call.1} parent=1 // pred_check_branch
      %30 = sbr.rel (0) target = $region9
    $region8: #{tpu_custom_call.1} parent=1 // pred_region
      %s32 = ssub.s32 1024, 1024
      %33 = vsyncadd [#allocation7], %s32
      %s34 = sshll.u32 [#allocation6], 4
      %s35 = int_to_ptr.vmem [resolvable:$true] %s34
      %40 = dma.hbm_to_vmem [thread:$0]  %s1, 1024, %s35, [#allocation7], 128, 128, 8
    $region9: #{tpu_custom_call.1} parent=1 // pred_fallthru
      _
    // Predicated region
    $region10: #{tpu_custom_call.1} parent=1 // pred_check
      _
    $region11: #{tpu_custom_call.1} parent=1 // pred_check_branch
      %42 = sbr.rel (0) target = $region13
    $region12: #{tpu_custom_call.1} parent=1 // pred_region
      %s44 = ssub.s32 256, 256
      %45 = vsyncadd [#allocation7], %s44
      %s46 = sshll.u32 [#allocation8], 4
      %s47 = int_to_ptr.vmem [resolvable:$true] %s46
      %52 = dma.hbm_to_vmem [thread:$0]  %s2, 256, %s47, [#allocation7], 128, 128, 8
    $region13: #{tpu_custom_call.1} parent=1 // pred_fallthru
      _
    // Predicated region
    $region14: #{tpu_custom_call.1} parent=1 // pred_check
      _
    $region15: #{tpu_custom_call.1} parent=1 // pred_check_branch
      %54 = sbr.rel (0) target = $region17
    $region16: #{tpu_custom_call.1} parent=1 // pred_region
      _
    $region17: #{tpu_custom_call.1} parent=1 // pred_fallthru
      _
    // Predicated region
    $region18: #{tpu_custom_call.1} parent=1 // pred_check
      _
    $region19: #{tpu_custom_call.1} parent=1 // pred_check_branch
      %56 = sbr.rel (0) target = $region21
    $region20: #{tpu_custom_call.1} parent=1 // pred_region
      %s58 = ssub.s32 384, 384
      %59 = vsyncadd [#allocation10], %s58
      %s60 = sshll.u32 [#allocation9], 4
      %s61 = int_to_ptr.vmem [resolvable:$true] %s60
      %66 = dma.hbm_to_vmem [thread:$0]  %s4, 384, %s61, [#allocation10], 128, 128, 8
    $region21: #{tpu_custom_call.1} parent=1 // pred_fallthru
      _
    // Predicated region
    $region22: #{tpu_custom_call.1} parent=1 // pred_check
      _
    $region23: #{tpu_custom_call.1} parent=1 // pred_check_branch
      %68 = sbr.rel (0) target = $region25
    $region24: #{tpu_custom_call.1} parent=1 // pred_region
      _
    $region25: #{tpu_custom_call.1} parent=1 // pred_fallthru
      _
    // Predicated region
    $region26: #{tpu_custom_call.1} parent=1 // pred_check
      _
    $region27: #{tpu_custom_call.1} parent=1 // pred_check_branch
      %70 = sbr.rel (0) target = $region29
    $region28: #{tpu_custom_call.1} parent=1 // pred_region
      %s72 = ssub.s32 512, 512
      %73 = vsyncadd [#allocation10], %s72
      %s74 = sshll.u32 [#allocation11], 4
      %s75 = int_to_ptr.vmem [resolvable:$true] %s74
      %80 = dma.hbm_to_vmem [thread:$0]  %s6, 512, %s75, [#allocation10], 128, 128, 8
    $region29: #{tpu_custom_call.1} parent=1 // pred_fallthru
      _
    // Predicated region
    $region30: #{tpu_custom_call.1} parent=1 // pred_check
      _
    $region31: #{tpu_custom_call.1} parent=1 // pred_check_branch
      %82 = sbr.rel (0) target = $region33
    $region32: #{tpu_custom_call.1} parent=1 // pred_region
      _
    $region33: #{tpu_custom_call.1} parent=1 // pred_fallthru
      _
    // Predicated region
    $region34: #{tpu_custom_call.1} parent=1 // pred_check
      _
    $region35: #{tpu_custom_call.1} parent=1 // pred_check_branch
      %84 = sbr.rel (0) target = $region37
    $region36: #{tpu_custom_call.1} parent=1 // pred_region
      %85 = dma.done [#allocation4], 1024
    $region37: #{tpu_custom_call.1} parent=1 // pred_fallthru
      _
    // Predicated region
    $region38: #{tpu_custom_call.1} parent=1 // pred_check
      _
    $region39: #{tpu_custom_call.1} parent=1 // pred_check_branch
      %87 = sbr.rel (0) target = $region41
    $region40: #{tpu_custom_call.1} parent=1 // pred_region
      %88 = dma.done [#allocation7], 1024
    $region41: #{tpu_custom_call.1} parent=1 // pred_fallthru
      _
    // Predicated region
    $region42: #{tpu_custom_call.1} parent=1 // pred_check
      _
    $region43: #{tpu_custom_call.1} parent=1 // pred_check_branch
      %90 = sbr.rel (0) target = $region45
    $region44: #{tpu_custom_call.1} parent=1 // pred_region
      %91 = dma.done [#allocation7], 256
    $region45: #{tpu_custom_call.1} parent=1 // pred_fallthru
      _
    // Predicated region
    $region46: #{tpu_custom_call.1} parent=1 // pred_check
      _
    $region47: #{tpu_custom_call.1} parent=1 // pred_check_branch
      %93 = sbr.rel (0) target = $region49
    $region48: #{tpu_custom_call.1} parent=1 // pred_region
      %94 = dma.done [#allocation10], 384
    $region49: #{tpu_custom_call.1} parent=1 // pred_fallthru
      _
    // Predicated region
    $region50: #{tpu_custom_call.1} parent=1 // pred_check
      _
    $region51: #{tpu_custom_call.1} parent=1 // pred_check_branch
      %96 = sbr.rel (0) target = $region53
    $region52: #{tpu_custom_call.1} parent=1 // pred_region
      %97 = dma.done [#allocation10], 512
    $region53: #{tpu_custom_call.1} parent=1 // pred_fallthru
      _
    %v98 = vld [vmem:[#allocation3] sm:$0xff]
    %v99 = vld [vmem:[#allocation3 + $0x8] sm:$0xff]
    %v100 = vld [vmem:[#allocation3 + $0x10] sm:$0xff]
    %v101 = vld [vmem:[#allocation3 + $0x18] sm:$0xff]
    %v102 = vld [vmem:[#allocation3 + $0x20] sm:$0xff]
    %v103 = vld [vmem:[#allocation3 + $0x28] sm:$0xff]
    %v104 = vld [vmem:[#allocation3 + $0x30] sm:$0xff]
    %v105 = vld [vmem:[#allocation3 + $0x38] sm:$0xff]
    %v106 = vld [vmem:[#allocation6] sm:$0xff]
    %v107 = vld [vmem:[#allocation6 + $0x8] sm:$0xff]
    %v108 = vld [vmem:[#allocation6 + $0x10] sm:$0xff]
    %v109 = vld [vmem:[#allocation6 + $0x18] sm:$0xff]
    %v110 = vld [vmem:[#allocation6 + $0x20] sm:$0xff]
    %v111 = vld [vmem:[#allocation6 + $0x28] sm:$0xff]
    %v112 = vld [vmem:[#allocation6 + $0x30] sm:$0xff]
    %v113 = vld [vmem:[#allocation6 + $0x38] sm:$0xff]
    %v114 = vld [vmem:[#allocation8] sm:$0xff]
    %v115 = vld [vmem:[#allocation8 + $0x8] sm:$0xff]
    %v116 = vld [vmem:[%s3] sm:$0x1]
    %v118 = vlaneseq
    %v119 = vshrl.u32 %v118, 7
    %v120 = vsub.s32 0, %v119
    %v121 = vrot.slane %v116, %v120
    %vm123 = vcmask 130048
    %v125 = vsel %vm123, %v98, 0
    %v128 = vsel %vm123, %v99, 0
    %v131 = vsel %vm123, %v100, 0
    %v134 = vsel %vm123, %v101, 0
    %v137 = vsel %vm123, %v102, 0
    %v140 = vsel %vm123, %v103, 0
    %v143 = vsel %vm123, %v104, 0
    %v146 = vsel %vm123, %v105, 0
    %148 = vmatprep.subr.mxu0 0.0
    %149 = vmatpush1.msra.mxu0 %v114
    %150 = vmatprep.subr.mxu0 0.0
    %151 = vmatpush1.msra.mxu0 %v115
    %152 = vmatprep.subr.mxu0 0.0
    %153 = vmatpush1.msra.mxu0 0.0
    %154 = vmatprep.subr.mxu0 0.0
    %155 = vmatpush1.msra.mxu0 0.0
    %156 = vmatprep.subr.mxu0 0.0
    %157 = vmatpush1.msra.mxu0 0.0
    %158 = vmatprep.subr.mxu0 0.0
    %159 = vmatpush1.msra.mxu0 0.0
    %160 = vmatprep.subr.mxu0 0.0
    %161 = vmatpush1.msra.mxu0 0.0
    %162 = vmatprep.subr.mxu0 0.0
    %163 = vmatpush1.msra.mxu0 0.0
    %164 = vmatprep.subr.mxu0 0.0
    %165 = vmatpush1.msra.mxu0 0.0
    %166 = vmatprep.subr.mxu0 0.0
    %167 = vmatpush1.msra.mxu0 0.0
    %168 = vmatprep.subr.mxu0 0.0
    %169 = vmatpush1.msra.mxu0 0.0
    %170 = vmatprep.subr.mxu0 0.0
    %171 = vmatpush1.msra.mxu0 0.0
    %172 = vmatprep.subr.mxu0 0.0
    %173 = vmatpush1.msra.mxu0 0.0
    %174 = vmatprep.subr.mxu0 0.0
    %175 = vmatpush1.msra.mxu0 0.0
    %176 = vmatprep.subr.mxu0 0.0
    %177 = vmatpush1.msra.mxu0 0.0
    %178 = vmatprep.subr.mxu0 0.0
    %179 = vmatpush1.msra.mxu0 0.0
    %180 = vmatprep.subr.mxu0 0.0
    %181 = vmatpush1.msra.mxu0 0.0
    %182 = vmatprep.subr.mxu0 0.0
    %183 = vmatpush1.msra.mxu0 0.0
    %184 = vmatprep.subr.mxu0 0.0
    %185 = vmatpush1.msra.mxu0 0.0
    %186 = vmatprep.subr.mxu0 0.0
    %187 = vmatpush1.msra.mxu0 0.0
    %188 = vmatprep.subr.mxu0 0.0
    %189 = vmatpush1.msra.mxu0 0.0
    %190 = vmatprep.subr.mxu0 0.0
    %191 = vmatpush1.msra.mxu0 0.0
    %192 = vmatprep.subr.mxu0 0.0
    %193 = vmatpush1.msra.mxu0 0.0
    %194 = vmatprep.subr.mxu0 0.0
    %195 = vmatpush1.msra.mxu0 0.0
    %196 = vmatprep.subr.mxu0 0.0
    %197 = vmatpush1.msra.mxu0 0.0
    %198 = vmatprep.subr.mxu0 0.0
    %199 = vmatpush1.msra.mxu0 0.0
    %200 = vmatprep.subr.mxu0 0.0
    %201 = vmatpush1.msra.mxu0 0.0
    %202 = vmatprep.subr.mxu0 0.0
    %203 = vmatpush1.msra.mxu0 0.0
    %204 = vmatprep.subr.mxu0 0.0
    %205 = vmatpush1.msra.mxu0 0.0
    %206 = vmatprep.subr.mxu0 0.0
    %207 = vmatpush1.msra.mxu0 0.0
    %208 = vmatprep.subr.mxu0 0.0
    %209 = vmatpush1.msra.mxu0 0.0
    %210 = vmatprep.subr.mxu0 0.0
    %211 = vmatpush1.msra.mxu0 0.0
    %212 = vmatprep.mubr.f32.mxu0 0.0
    %213 = vmatmul.mubr.f32.gmra.mrb[0].mxu0 %v125
    %v214 = vpop.f32.mrb[0].mxu0
    %v215 = vadd.f32 %v121, %v214
    %v216 = vpop.f32.mrb[0].mxu0
    %217 = vmatprep.mubr.f32.mxu0 0.0
    %218 = vmatmul.mubr.f32.gmra.mrb[0].mxu0 %v128
    %v219 = vpop.f32.mrb[0].mxu0
    %v220 = vadd.f32 %v121, %v219
    %v221 = vpop.f32.mrb[0].mxu0
    %222 = vmatprep.mubr.f32.mxu0 0.0
    %223 = vmatmul.mubr.f32.gmra.mrb[0].mxu0 %v131
    %v224 = vpop.f32.mrb[0].mxu0
    %v225 = vadd.f32 %v121, %v224
    %v226 = vpop.f32.mrb[0].mxu0
    %227 = vmatprep.mubr.f32.mxu0 0.0
    %228 = vmatmul.mubr.f32.gmra.mrb[0].mxu0 %v134
    %v229 = vpop.f32.mrb[0].mxu0
    %v230 = vadd.f32 %v121, %v229
    %v231 = vpop.f32.mrb[0].mxu0
    %232 = vmatprep.mubr.f32.mxu0 0.0
    %233 = vmatmul.mubr.f32.gmra.mrb[0].mxu0 %v137
    %v234 = vpop.f32.mrb[0].mxu0
    %v235 = vadd.f32 %v121, %v234
    %v236 = vpop.f32.mrb[0].mxu0
    %237 = vmatprep.mubr.f32.mxu0 0.0
    %238 = vmatmul.mubr.f32.gmra.mrb[0].mxu0 %v140
    %v239 = vpop.f32.mrb[0].mxu0
    %v240 = vadd.f32 %v121, %v239
    %v241 = vpop.f32.mrb[0].mxu0
    %242 = vmatprep.mubr.f32.mxu0 0.0
    %243 = vmatmul.mubr.f32.gmra.mrb[0].mxu0 %v143
    %v244 = vpop.f32.mrb[0].mxu0
    %v245 = vadd.f32 %v121, %v244
    %v246 = vpop.f32.mrb[0].mxu0
    %247 = vmatprep.mubr.f32.mxu0 0.0
    %248 = vmatmul.mubr.f32.gmra.mrb[0].mxu0 %v146
    %v249 = vpop.f32.mrb[0].mxu0
    %v250 = vadd.f32 %v121, %v249
    %v251 = vpop.f32.mrb[0].mxu0
    %252 = vdwg.mxu0
    %v253 = vld [vmem:[#allocation9] sm:$0xff]
    %v254 = vld [vmem:[#allocation9 + $0x8] sm:$0xff]
    %v255 = vld [vmem:[#allocation9 + $0x10] sm:$0xff]
    %v256 = vld [vmem:[%s5] sm:$0x1]
    %v258 = vlaneseq
    %v259 = vshrl.u32 %v258, 7
    %v260 = vsub.s32 0, %v259
    %v261 = vrot.slane %v256, %v260
    %vm263 = vcmask 195584
    %v265 = vsel %vm263, %v106, 0
    %v268 = vsel %vm263, %v107, 0
    %v271 = vsel %vm263, %v108, 0
    %v274 = vsel %vm263, %v109, 0
    %v277 = vsel %vm263, %v110, 0
    %v280 = vsel %vm263, %v111, 0
    %v283 = vsel %vm263, %v112, 0
    %v286 = vsel %vm263, %v113, 0
    %288 = vmatprep.subr.mxu0 0.0
    %289 = vmatpush1.msra.mxu0 %v253
    %290 = vmatprep.subr.mxu0 0.0
    %291 = vmatpush1.msra.mxu0 %v254
    %292 = vmatprep.subr.mxu0 0.0
    %293 = vmatpush1.msra.mxu0 %v255
    %294 = vmatprep.subr.mxu0 0.0
    %295 = vmatpush1.msra.mxu0 0.0
    %296 = vmatprep.subr.mxu0 0.0
    %297 = vmatpush1.msra.mxu0 0.0
    %298 = vmatprep.subr.mxu0 0.0
    %299 = vmatpush1.msra.mxu0 0.0
    %300 = vmatprep.subr.mxu0 0.0
    %301 = vmatpush1.msra.mxu0 0.0
    %302 = vmatprep.subr.mxu0 0.0
    %303 = vmatpush1.msra.mxu0 0.0
    %304 = vmatprep.subr.mxu0 0.0
    %305 = vmatpush1.msra.mxu0 0.0
    %306 = vmatprep.subr.mxu0 0.0
    %307 = vmatpush1.msra.mxu0 0.0
    %308 = vmatprep.subr.mxu0 0.0
    %309 = vmatpush1.msra.mxu0 0.0
    %310 = vmatprep.subr.mxu0 0.0
    %311 = vmatpush1.msra.mxu0 0.0
    %312 = vmatprep.subr.mxu0 0.0
    %313 = vmatpush1.msra.mxu0 0.0
    %314 = vmatprep.subr.mxu0 0.0
    %315 = vmatpush1.msra.mxu0 0.0
    %316 = vmatprep.subr.mxu0 0.0
    %317 = vmatpush1.msra.mxu0 0.0
    %318 = vmatprep.subr.mxu0 0.0
    %319 = vmatpush1.msra.mxu0 0.0
    %320 = vmatprep.subr.mxu0 0.0
    %321 = vmatpush1.msra.mxu0 0.0
    %322 = vmatprep.subr.mxu0 0.0
    %323 = vmatpush1.msra.mxu0 0.0
    %324 = vmatprep.subr.mxu0 0.0
    %325 = vmatpush1.msra.mxu0 0.0
    %326 = vmatprep.subr.mxu0 0.0
    %327 = vmatpush1.msra.mxu0 0.0
    %328 = vmatprep.subr.mxu0 0.0
    %329 = vmatpush1.msra.mxu0 0.0
    %330 = vmatprep.subr.mxu0 0.0
    %331 = vmatpush1.msra.mxu0 0.0
    %332 = vmatprep.subr.mxu0 0.0
    %333 = vmatpush1.msra.mxu0 0.0
    %334 = vmatprep.subr.mxu0 0.0
    %335 = vmatpush1.msra.mxu0 0.0
    %336 = vmatprep.subr.mxu0 0.0
    %337 = vmatpush1.msra.mxu0 0.0
    %338 = vmatprep.subr.mxu0 0.0
    %339 = vmatpush1.msra.mxu0 0.0
    %340 = vmatprep.subr.mxu0 0.0
    %341 = vmatpush1.msra.mxu0 0.0
    %342 = vmatprep.subr.mxu0 0.0
    %343 = vmatpush1.msra.mxu0 0.0
    %344 = vmatprep.subr.mxu0 0.0
    %345 = vmatpush1.msra.mxu0 0.0
    %346 = vmatprep.subr.mxu0 0.0
    %347 = vmatpush1.msra.mxu0 0.0
    %348 = vmatprep.subr.mxu0 0.0
    %349 = vmatpush1.msra.mxu0 0.0
    %350 = vmatprep.subr.mxu0 0.0
    %351 = vmatpush1.msra.mxu0 0.0
    %352 = vmatprep.mubr.f32.mxu0 0.0
    %353 = vmatmul.mubr.f32.gmra.mrb[0].mxu0 %v265
    %v354 = vpop.f32.mrb[0].mxu0
    %v355 = vadd.f32 %v261, %v354
    %v356 = vpop.f32.mrb[0].mxu0
    %357 = vmatprep.mubr.f32.mxu0 0.0
    %358 = vmatmul.mubr.f32.gmra.mrb[0].mxu0 %v268
    %v359 = vpop.f32.mrb[0].mxu0
    %v360 = vadd.f32 %v261, %v359
    %v361 = vpop.f32.mrb[0].mxu0
    %362 = vmatprep.mubr.f32.mxu0 0.0
    %363 = vmatmul.mubr.f32.gmra.mrb[0].mxu0 %v271
    %v364 = vpop.f32.mrb[0].mxu0
    %v365 = vadd.f32 %v261, %v364
    %v366 = vpop.f32.mrb[0].mxu0
    %367 = vmatprep.mubr.f32.mxu0 0.0
    %368 = vmatmul.mubr.f32.gmra.mrb[0].mxu0 %v274
    %v369 = vpop.f32.mrb[0].mxu0
    %v370 = vadd.f32 %v261, %v369
    %v371 = vpop.f32.mrb[0].mxu0
    %372 = vmatprep.mubr.f32.mxu0 0.0
    %373 = vmatmul.mubr.f32.gmra.mrb[0].mxu0 %v277
    %v374 = vpop.f32.mrb[0].mxu0
    %v375 = vadd.f32 %v261, %v374
    %v376 = vpop.f32.mrb[0].mxu0
    %377 = vmatprep.mubr.f32.mxu0 0.0
    %378 = vmatmul.mubr.f32.gmra.mrb[0].mxu0 %v280
    %v379 = vpop.f32.mrb[0].mxu0
    %v380 = vadd.f32 %v261, %v379
    %v381 = vpop.f32.mrb[0].mxu0
    %382 = vmatprep.mubr.f32.mxu0 0.0
    %383 = vmatmul.mubr.f32.gmra.mrb[0].mxu0 %v283
    %v384 = vpop.f32.mrb[0].mxu0
    %v385 = vadd.f32 %v261, %v384
    %v386 = vpop.f32.mrb[0].mxu0
    %387 = vmatprep.mubr.f32.mxu0 0.0
    %388 = vmatmul.mubr.f32.gmra.mrb[0].mxu0 %v286
    %v389 = vpop.f32.mrb[0].mxu0
    %v390 = vadd.f32 %v261, %v389
    %v391 = vpop.f32.mrb[0].mxu0
    %392 = vdwg.mxu0
    %vm393 = vcmask 64512
    %v395 = vsel %vm393, %v215, 0
    %v398 = vsel %vm393, %v355, 0
    %400 = vmatprep.subr.mxu0 0.0
    %401 = vmatpush1.xpose.msra.mxu0 %v398
    %402 = vmatprep.subr.mxu0 0.0
    %403 = vmatpush1.xpose.msra.mxu0 0.0
    %404 = vmatprep.subr.mxu0 0.0
    %405 = vmatpush1.xpose.msra.mxu0 0.0
    %406 = vmatprep.subr.mxu0 0.0
    %407 = vmatpush1.xpose.msra.mxu0 0.0
    %408 = vmatprep.subr.mxu0 0.0
    %409 = vmatpush1.xpose.msra.mxu0 0.0
    %410 = vmatprep.subr.mxu0 0.0
    %411 = vmatpush1.xpose.msra.mxu0 0.0
    %412 = vmatprep.subr.mxu0 0.0
    %413 = vmatpush1.xpose.msra.mxu0 0.0
    %414 = vmatprep.subr.mxu0 0.0
    %415 = vmatpush1.xpose.msra.mxu0 0.0
    %416 = vmatprep.subr.mxu0 0.0
    %417 = vmatpush1.xpose.msra.mxu0 0.0
    %418 = vmatprep.subr.mxu0 0.0
    %419 = vmatpush1.xpose.msra.mxu0 0.0
    %420 = vmatprep.subr.mxu0 0.0
    %421 = vmatpush1.xpose.msra.mxu0 0.0
    %422 = vmatprep.subr.mxu0 0.0
    %423 = vmatpush1.xpose.msra.mxu0 0.0
    %424 = vmatprep.subr.mxu0 0.0
    %425 = vmatpush1.xpose.msra.mxu0 0.0
    %426 = vmatprep.subr.mxu0 0.0
    %427 = vmatpush1.xpose.msra.mxu0 0.0
    %428 = vmatprep.subr.mxu0 0.0
    %429 = vmatpush1.xpose.msra.mxu0 0.0
    %430 = vmatprep.subr.mxu0 0.0
    %431 = vmatpush1.xpose.msra.mxu0 0.0
    %432 = vmatprep.subr.mxu0 0.0
    %433 = vmatpush1.xpose.msra.mxu0 0.0
    %434 = vmatprep.subr.mxu0 0.0
    %435 = vmatpush1.xpose.msra.mxu0 0.0
    %436 = vmatprep.subr.mxu0 0.0
    %437 = vmatpush1.xpose.msra.mxu0 0.0
    %438 = vmatprep.subr.mxu0 0.0
    %439 = vmatpush1.xpose.msra.mxu0 0.0
    %440 = vmatprep.subr.mxu0 0.0
    %441 = vmatpush1.xpose.msra.mxu0 0.0
    %442 = vmatprep.subr.mxu0 0.0
    %443 = vmatpush1.xpose.msra.mxu0 0.0
    %444 = vmatprep.subr.mxu0 0.0
    %445 = vmatpush1.xpose.msra.mxu0 0.0
    %446 = vmatprep.subr.mxu0 0.0
    %447 = vmatpush1.xpose.msra.mxu0 0.0
    %448 = vmatprep.subr.mxu0 0.0
    %449 = vmatpush1.xpose.msra.mxu0 0.0
    %450 = vmatprep.subr.mxu0 0.0
    %451 = vmatpush1.xpose.msra.mxu0 0.0
    %452 = vmatprep.subr.mxu0 0.0
    %453 = vmatpush1.xpose.msra.mxu0 0.0
    %454 = vmatprep.subr.mxu0 0.0
    %455 = vmatpush1.xpose.msra.mxu0 0.0
    %456 = vmatprep.subr.mxu0 0.0
    %457 = vmatpush1.xpose.msra.mxu0 0.0
    %458 = vmatprep.subr.mxu0 0.0
    %459 = vmatpush1.xpose.msra.mxu0 0.0
    %460 = vmatprep.subr.mxu0 0.0
    %461 = vmatpush1.xpose.msra.mxu0 0.0
    %462 = vmatprep.subr.mxu0 0.0
    %463 = vmatpush1.xpose.msra.mxu0 0.0
    %464 = vmatprep.mubr.f32.mxu0 0.0
    %465 = vmatmul.mubr.f32.gmra.mrb[0].mxu0 %v395
    %v466 = vpop.f32.mrb[0].mxu0
    %v467 = vadd.f32 0.0, %v466
    %v468 = vpop.f32.mrb[0].mxu0
    %469 = vdwg.mxu0
    %v471 = vsel %vm393, %v220, 0
    %v474 = vsel %vm393, %v360, 0
    %476 = vmatprep.subr.mxu0 0.0
    %477 = vmatpush1.xpose.msra.mxu0 %v474
    %478 = vmatprep.subr.mxu0 0.0
    %479 = vmatpush1.xpose.msra.mxu0 0.0
    %480 = vmatprep.subr.mxu0 0.0
    %481 = vmatpush1.xpose.msra.mxu0 0.0
    %482 = vmatprep.subr.mxu0 0.0
    %483 = vmatpush1.xpose.msra.mxu0 0.0
    %484 = vmatprep.subr.mxu0 0.0
    %485 = vmatpush1.xpose.msra.mxu0 0.0
    %486 = vmatprep.subr.mxu0 0.0
    %487 = vmatpush1.xpose.msra.mxu0 0.0
    %488 = vmatprep.subr.mxu0 0.0
    %489 = vmatpush1.xpose.msra.mxu0 0.0
    %490 = vmatprep.subr.mxu0 0.0
    %491 = vmatpush1.xpose.msra.mxu0 0.0
    %492 = vmatprep.subr.mxu0 0.0
    %493 = vmatpush1.xpose.msra.mxu0 0.0
    %494 = vmatprep.subr.mxu0 0.0
    %495 = vmatpush1.xpose.msra.mxu0 0.0
    %496 = vmatprep.subr.mxu0 0.0
    %497 = vmatpush1.xpose.msra.mxu0 0.0
    %498 = vmatprep.subr.mxu0 0.0
    %499 = vmatpush1.xpose.msra.mxu0 0.0
    %500 = vmatprep.subr.mxu0 0.0
    %501 = vmatpush1.xpose.msra.mxu0 0.0
    %502 = vmatprep.subr.mxu0 0.0
    %503 = vmatpush1.xpose.msra.mxu0 0.0
    %504 = vmatprep.subr.mxu0 0.0
    %505 = vmatpush1.xpose.msra.mxu0 0.0
    %506 = vmatprep.subr.mxu0 0.0
    %507 = vmatpush1.xpose.msra.mxu0 0.0
    %508 = vmatprep.subr.mxu0 0.0
    %509 = vmatpush1.xpose.msra.mxu0 0.0
    %510 = vmatprep.subr.mxu0 0.0
    %511 = vmatpush1.xpose.msra.mxu0 0.0
    %512 = vmatprep.subr.mxu0 0.0
    %513 = vmatpush1.xpose.msra.mxu0 0.0
    %514 = vmatprep.subr.mxu0 0.0
    %515 = vmatpush1.xpose.msra.mxu0 0.0
    %516 = vmatprep.subr.mxu0 0.0
    %517 = vmatpush1.xpose.msra.mxu0 0.0
    %518 = vmatprep.subr.mxu0 0.0
    %519 = vmatpush1.xpose.msra.mxu0 0.0
    %520 = vmatprep.subr.mxu0 0.0
    %521 = vmatpush1.xpose.msra.mxu0 0.0
    %522 = vmatprep.subr.mxu0 0.0
    %523 = vmatpush1.xpose.msra.mxu0 0.0
    %524 = vmatprep.subr.mxu0 0.0
    %525 = vmatpush1.xpose.msra.mxu0 0.0
    %526 = vmatprep.subr.mxu0 0.0
    %527 = vmatpush1.xpose.msra.mxu0 0.0
    %528 = vmatprep.subr.mxu0 0.0
    %529 = vmatpush1.xpose.msra.mxu0 0.0
    %530 = vmatprep.subr.mxu0 0.0
    %531 = vmatpush1.xpose.msra.mxu0 0.0
    %532 = vmatprep.subr.mxu0 0.0
    %533 = vmatpush1.xpose.msra.mxu0 0.0
    %534 = vmatprep.subr.mxu0 0.0
    %535 = vmatpush1.xpose.msra.mxu0 0.0
    %536 = vmatprep.subr.mxu0 0.0
    %537 = vmatpush1.xpose.msra.mxu0 0.0
    %538 = vmatprep.subr.mxu0 0.0
    %539 = vmatpush1.xpose.msra.mxu0 0.0
    %540 = vmatprep.mubr.f32.mxu0 0.0
    %541 = vmatmul.mubr.f32.gmra.mrb[0].mxu0 %v471
    %v542 = vpop.f32.mrb[0].mxu0
    %v543 = vadd.f32 0.0, %v542
    %v544 = vpop.f32.mrb[0].mxu0
    %545 = vdwg.mxu0
    %v547 = vsel %vm393, %v225, 0
    %v550 = vsel %vm393, %v365, 0
    %552 = vmatprep.subr.mxu0 0.0
    %553 = vmatpush1.xpose.msra.mxu0 %v550
    %554 = vmatprep.subr.mxu0 0.0
    %555 = vmatpush1.xpose.msra.mxu0 0.0
    %556 = vmatprep.subr.mxu0 0.0
    %557 = vmatpush1.xpose.msra.mxu0 0.0
    %558 = vmatprep.subr.mxu0 0.0
    %559 = vmatpush1.xpose.msra.mxu0 0.0
    %560 = vmatprep.subr.mxu0 0.0
    %561 = vmatpush1.xpose.msra.mxu0 0.0
    %562 = vmatprep.subr.mxu0 0.0
    %563 = vmatpush1.xpose.msra.mxu0 0.0
    %564 = vmatprep.subr.mxu0 0.0
    %565 = vmatpush1.xpose.msra.mxu0 0.0
    %566 = vmatprep.subr.mxu0 0.0
    %567 = vmatpush1.xpose.msra.mxu0 0.0
    %568 = vmatprep.subr.mxu0 0.0
    %569 = vmatpush1.xpose.msra.mxu0 0.0
    %570 = vmatprep.subr.mxu0 0.0
    %571 = vmatpush1.xpose.msra.mxu0 0.0
    %572 = vmatprep.subr.mxu0 0.0
    %573 = vmatpush1.xpose.msra.mxu0 0.0
    %574 = vmatprep.subr.mxu0 0.0
    %575 = vmatpush1.xpose.msra.mxu0 0.0
    %576 = vmatprep.subr.mxu0 0.0
    %577 = vmatpush1.xpose.msra.mxu0 0.0
    %578 = vmatprep.subr.mxu0 0.0
    %579 = vmatpush1.xpose.msra.mxu0 0.0
    %580 = vmatprep.subr.mxu0 0.0
    %581 = vmatpush1.xpose.msra.mxu0 0.0
    %582 = vmatprep.subr.mxu0 0.0
    %583 = vmatpush1.xpose.msra.mxu0 0.0
    %584 = vmatprep.subr.mxu0 0.0
    %585 = vmatpush1.xpose.msra.mxu0 0.0
    %586 = vmatprep.subr.mxu0 0.0
    %587 = vmatpush1.xpose.msra.mxu0 0.0
    %588 = vmatprep.subr.mxu0 0.0
    %589 = vmatpush1.xpose.msra.mxu0 0.0
    %590 = vmatprep.subr.mxu0 0.0
    %591 = vmatpush1.xpose.msra.mxu0 0.0
    %592 = vmatprep.subr.mxu0 0.0
    %593 = vmatpush1.xpose.msra.mxu0 0.0
    %594 = vmatprep.subr.mxu0 0.0
    %595 = vmatpush1.xpose.msra.mxu0 0.0
    %596 = vmatprep.subr.mxu0 0.0
    %597 = vmatpush1.xpose.msra.mxu0 0.0
    %598 = vmatprep.subr.mxu0 0.0
    %599 = vmatpush1.xpose.msra.mxu0 0.0
    %600 = vmatprep.subr.mxu0 0.0
    %601 = vmatpush1.xpose.msra.mxu0 0.0
    %602 = vmatprep.subr.mxu0 0.0
    %603 = vmatpush1.xpose.msra.mxu0 0.0
    %604 = vmatprep.subr.mxu0 0.0
    %605 = vmatpush1.xpose.msra.mxu0 0.0
    %606 = vmatprep.subr.mxu0 0.0
    %607 = vmatpush1.xpose.msra.mxu0 0.0
    %608 = vmatprep.subr.mxu0 0.0
    %609 = vmatpush1.xpose.msra.mxu0 0.0
    %610 = vmatprep.subr.mxu0 0.0
    %611 = vmatpush1.xpose.msra.mxu0 0.0
    %612 = vmatprep.subr.mxu0 0.0
    %613 = vmatpush1.xpose.msra.mxu0 0.0
    %614 = vmatprep.subr.mxu0 0.0
    %615 = vmatpush1.xpose.msra.mxu0 0.0
    %616 = vmatprep.mubr.f32.mxu0 0.0
    %617 = vmatmul.mubr.f32.gmra.mrb[0].mxu0 %v547
    %v618 = vpop.f32.mrb[0].mxu0
    %v619 = vadd.f32 0.0, %v618
    %v620 = vpop.f32.mrb[0].mxu0
    %621 = vdwg.mxu0
    %v623 = vsel %vm393, %v230, 0
    %v626 = vsel %vm393, %v370, 0
    %628 = vmatprep.subr.mxu0 0.0
    %629 = vmatpush1.xpose.msra.mxu0 %v626
    %630 = vmatprep.subr.mxu0 0.0
    %631 = vmatpush1.xpose.msra.mxu0 0.0
    %632 = vmatprep.subr.mxu0 0.0
    %633 = vmatpush1.xpose.msra.mxu0 0.0
    %634 = vmatprep.subr.mxu0 0.0
    %635 = vmatpush1.xpose.msra.mxu0 0.0
    %636 = vmatprep.subr.mxu0 0.0
    %637 = vmatpush1.xpose.msra.mxu0 0.0
    %638 = vmatprep.subr.mxu0 0.0
    %639 = vmatpush1.xpose.msra.mxu0 0.0
    %640 = vmatprep.subr.mxu0 0.0
    %641 = vmatpush1.xpose.msra.mxu0 0.0
    %642 = vmatprep.subr.mxu0 0.0
    %643 = vmatpush1.xpose.msra.mxu0 0.0
    %644 = vmatprep.subr.mxu0 0.0
    %645 = vmatpush1.xpose.msra.mxu0 0.0
    %646 = vmatprep.subr.mxu0 0.0
    %647 = vmatpush1.xpose.msra.mxu0 0.0
    %648 = vmatprep.subr.mxu0 0.0
    %649 = vmatpush1.xpose.msra.mxu0 0.0
    %650 = vmatprep.subr.mxu0 0.0
    %651 = vmatpush1.xpose.msra.mxu0 0.0
    %652 = vmatprep.subr.mxu0 0.0
    %653 = vmatpush1.xpose.msra.mxu0 0.0
    %654 = vmatprep.subr.mxu0 0.0
    %655 = vmatpush1.xpose.msra.mxu0 0.0
    %656 = vmatprep.subr.mxu0 0.0
    %657 = vmatpush1.xpose.msra.mxu0 0.0
    %658 = vmatprep.subr.mxu0 0.0
    %659 = vmatpush1.xpose.msra.mxu0 0.0
    %660 = vmatprep.subr.mxu0 0.0
    %661 = vmatpush1.xpose.msra.mxu0 0.0
    %662 = vmatprep.subr.mxu0 0.0
    %663 = vmatpush1.xpose.msra.mxu0 0.0
    %664 = vmatprep.subr.mxu0 0.0
    %665 = vmatpush1.xpose.msra.mxu0 0.0
    %666 = vmatprep.subr.mxu0 0.0
    %667 = vmatpush1.xpose.msra.mxu0 0.0
    %668 = vmatprep.subr.mxu0 0.0
    %669 = vmatpush1.xpose.msra.mxu0 0.0
    %670 = vmatprep.subr.mxu0 0.0
    %671 = vmatpush1.xpose.msra.mxu0 0.0
    %672 = vmatprep.subr.mxu0 0.0
    %673 = vmatpush1.xpose.msra.mxu0 0.0
    %674 = vmatprep.subr.mxu0 0.0
    %675 = vmatpush1.xpose.msra.mxu0 0.0
    %676 = vmatprep.subr.mxu0 0.0
    %677 = vmatpush1.xpose.msra.mxu0 0.0
    %678 = vmatprep.subr.mxu0 0.0
    %679 = vmatpush1.xpose.msra.mxu0 0.0
    %680 = vmatprep.subr.mxu0 0.0
    %681 = vmatpush1.xpose.msra.mxu0 0.0
    %682 = vmatprep.subr.mxu0 0.0
    %683 = vmatpush1.xpose.msra.mxu0 0.0
    %684 = vmatprep.subr.mxu0 0.0
    %685 = vmatpush1.xpose.msra.mxu0 0.0
    %686 = vmatprep.subr.mxu0 0.0
    %687 = vmatpush1.xpose.msra.mxu0 0.0
    %688 = vmatprep.subr.mxu0 0.0
    %689 = vmatpush1.xpose.msra.mxu0 0.0
    %690 = vmatprep.subr.mxu0 0.0
    %691 = vmatpush1.xpose.msra.mxu0 0.0
    %692 = vmatprep.mubr.f32.mxu0 0.0
    %693 = vmatmul.mubr.f32.gmra.mrb[0].mxu0 %v623
    %v694 = vpop.f32.mrb[0].mxu0
    %v695 = vadd.f32 0.0, %v694
    %v696 = vpop.f32.mrb[0].mxu0
    %697 = vdwg.mxu0
    %v699 = vsel %vm393, %v235, 0
    %v702 = vsel %vm393, %v375, 0
    %704 = vmatprep.subr.mxu0 0.0
    %705 = vmatpush1.xpose.msra.mxu0 %v702
    %706 = vmatprep.subr.mxu0 0.0
    %707 = vmatpush1.xpose.msra.mxu0 0.0
    %708 = vmatprep.subr.mxu0 0.0
    %709 = vmatpush1.xpose.msra.mxu0 0.0
    %710 = vmatprep.subr.mxu0 0.0
    %711 = vmatpush1.xpose.msra.mxu0 0.0
    %712 = vmatprep.subr.mxu0 0.0
    %713 = vmatpush1.xpose.msra.mxu0 0.0
    %714 = vmatprep.subr.mxu0 0.0
    %715 = vmatpush1.xpose.msra.mxu0 0.0
    %716 = vmatprep.subr.mxu0 0.0
    %717 = vmatpush1.xpose.msra.mxu0 0.0
    %718 = vmatprep.subr.mxu0 0.0
    %719 = vmatpush1.xpose.msra.mxu0 0.0
    %720 = vmatprep.subr.mxu0 0.0
    %721 = vmatpush1.xpose.msra.mxu0 0.0
    %722 = vmatprep.subr.mxu0 0.0
    %723 = vmatpush1.xpose.msra.mxu0 0.0
    %724 = vmatprep.subr.mxu0 0.0
    %725 = vmatpush1.xpose.msra.mxu0 0.0
    %726 = vmatprep.subr.mxu0 0.0
    %727 = vmatpush1.xpose.msra.mxu0 0.0
    %728 = vmatprep.subr.mxu0 0.0
    %729 = vmatpush1.xpose.msra.mxu0 0.0
    %730 = vmatprep.subr.mxu0 0.0
    %731 = vmatpush1.xpose.msra.mxu0 0.0
    %732 = vmatprep.subr.mxu0 0.0
    %733 = vmatpush1.xpose.msra.mxu0 0.0
    %734 = vmatprep.subr.mxu0 0.0
    %735 = vmatpush1.xpose.msra.mxu0 0.0
    %736 = vmatprep.subr.mxu0 0.0
    %737 = vmatpush1.xpose.msra.mxu0 0.0
    %738 = vmatprep.subr.mxu0 0.0
    %739 = vmatpush1.xpose.msra.mxu0 0.0
    %740 = vmatprep.subr.mxu0 0.0
    %741 = vmatpush1.xpose.msra.mxu0 0.0
    %742 = vmatprep.subr.mxu0 0.0
    %743 = vmatpush1.xpose.msra.mxu0 0.0
    %744 = vmatprep.subr.mxu0 0.0
    %745 = vmatpush1.xpose.msra.mxu0 0.0
    %746 = vmatprep.subr.mxu0 0.0
    %747 = vmatpush1.xpose.msra.mxu0 0.0
    %748 = vmatprep.subr.mxu0 0.0
    %749 = vmatpush1.xpose.msra.mxu0 0.0
    %750 = vmatprep.subr.mxu0 0.0
    %751 = vmatpush1.xpose.msra.mxu0 0.0
    %752 = vmatprep.subr.mxu0 0.0
    %753 = vmatpush1.xpose.msra.mxu0 0.0
    %754 = vmatprep.subr.mxu0 0.0
    %755 = vmatpush1.xpose.msra.mxu0 0.0
    %756 = vmatprep.subr.mxu0 0.0
    %757 = vmatpush1.xpose.msra.mxu0 0.0
    %758 = vmatprep.subr.mxu0 0.0
    %759 = vmatpush1.xpose.msra.mxu0 0.0
    %760 = vmatprep.subr.mxu0 0.0
    %761 = vmatpush1.xpose.msra.mxu0 0.0
    %762 = vmatprep.subr.mxu0 0.0
    %763 = vmatpush1.xpose.msra.mxu0 0.0
    %764 = vmatprep.subr.mxu0 0.0
    %765 = vmatpush1.xpose.msra.mxu0 0.0
    %766 = vmatprep.subr.mxu0 0.0
    %767 = vmatpush1.xpose.msra.mxu0 0.0
    %768 = vmatprep.mubr.f32.mxu0 0.0
    %769 = vmatmul.mubr.f32.gmra.mrb[0].mxu0 %v699
    %v770 = vpop.f32.mrb[0].mxu0
    %v771 = vadd.f32 0.0, %v770
    %v772 = vpop.f32.mrb[0].mxu0
    %773 = vdwg.mxu0
    %v775 = vsel %vm393, %v240, 0
    %v778 = vsel %vm393, %v380, 0
    %780 = vmatprep.subr.mxu0 0.0
    %781 = vmatpush1.xpose.msra.mxu0 %v778
    %782 = vmatprep.subr.mxu0 0.0
    %783 = vmatpush1.xpose.msra.mxu0 0.0
    %784 = vmatprep.subr.mxu0 0.0
    %785 = vmatpush1.xpose.msra.mxu0 0.0
    %786 = vmatprep.subr.mxu0 0.0
    %787 = vmatpush1.xpose.msra.mxu0 0.0
    %788 = vmatprep.subr.mxu0 0.0
    %789 = vmatpush1.xpose.msra.mxu0 0.0
    %790 = vmatprep.subr.mxu0 0.0
    %791 = vmatpush1.xpose.msra.mxu0 0.0
    %792 = vmatprep.subr.mxu0 0.0
    %793 = vmatpush1.xpose.msra.mxu0 0.0
    %794 = vmatprep.subr.mxu0 0.0
    %795 = vmatpush1.xpose.msra.mxu0 0.0
    %796 = vmatprep.subr.mxu0 0.0
    %797 = vmatpush1.xpose.msra.mxu0 0.0
    %798 = vmatprep.subr.mxu0 0.0
    %799 = vmatpush1.xpose.msra.mxu0 0.0
    %800 = vmatprep.subr.mxu0 0.0
    %801 = vmatpush1.xpose.msra.mxu0 0.0
    %802 = vmatprep.subr.mxu0 0.0
    %803 = vmatpush1.xpose.msra.mxu0 0.0
    %804 = vmatprep.subr.mxu0 0.0
    %805 = vmatpush1.xpose.msra.mxu0 0.0
    %806 = vmatprep.subr.mxu0 0.0
    %807 = vmatpush1.xpose.msra.mxu0 0.0
    %808 = vmatprep.subr.mxu0 0.0
    %809 = vmatpush1.xpose.msra.mxu0 0.0
    %810 = vmatprep.subr.mxu0 0.0
    %811 = vmatpush1.xpose.msra.mxu0 0.0
    %812 = vmatprep.subr.mxu0 0.0
    %813 = vmatpush1.xpose.msra.mxu0 0.0
    %814 = vmatprep.subr.mxu0 0.0
    %815 = vmatpush1.xpose.msra.mxu0 0.0
    %816 = vmatprep.subr.mxu0 0.0
    %817 = vmatpush1.xpose.msra.mxu0 0.0
    %818 = vmatprep.subr.mxu0 0.0
    %819 = vmatpush1.xpose.msra.mxu0 0.0
    %820 = vmatprep.subr.mxu0 0.0
    %821 = vmatpush1.xpose.msra.mxu0 0.0
    %822 = vmatprep.subr.mxu0 0.0
    %823 = vmatpush1.xpose.msra.mxu0 0.0
    %824 = vmatprep.subr.mxu0 0.0
    %825 = vmatpush1.xpose.msra.mxu0 0.0
    %826 = vmatprep.subr.mxu0 0.0
    %827 = vmatpush1.xpose.msra.mxu0 0.0
    %828 = vmatprep.subr.mxu0 0.0
    %829 = vmatpush1.xpose.msra.mxu0 0.0
    %830 = vmatprep.subr.mxu0 0.0
    %831 = vmatpush1.xpose.msra.mxu0 0.0
    %832 = vmatprep.subr.mxu0 0.0
    %833 = vmatpush1.xpose.msra.mxu0 0.0
    %834 = vmatprep.subr.mxu0 0.0
    %835 = vmatpush1.xpose.msra.mxu0 0.0
    %836 = vmatprep.subr.mxu0 0.0
    %837 = vmatpush1.xpose.msra.mxu0 0.0
    %838 = vmatprep.subr.mxu0 0.0
    %839 = vmatpush1.xpose.msra.mxu0 0.0
    %840 = vmatprep.subr.mxu0 0.0
    %841 = vmatpush1.xpose.msra.mxu0 0.0
    %842 = vmatprep.subr.mxu0 0.0
    %843 = vmatpush1.xpose.msra.mxu0 0.0
    %844 = vmatprep.mubr.f32.mxu0 0.0
    %845 = vmatmul.mubr.f32.gmra.mrb[0].mxu0 %v775
    %v846 = vpop.f32.mrb[0].mxu0
    %v847 = vadd.f32 0.0, %v846
    %v848 = vpop.f32.mrb[0].mxu0
    %849 = vdwg.mxu0
    %v851 = vsel %vm393, %v245, 0
    %v854 = vsel %vm393, %v385, 0
    %856 = vmatprep.subr.mxu0 0.0
    %857 = vmatpush1.xpose.msra.mxu0 %v854
    %858 = vmatprep.subr.mxu0 0.0
    %859 = vmatpush1.xpose.msra.mxu0 0.0
    %860 = vmatprep.subr.mxu0 0.0
    %861 = vmatpush1.xpose.msra.mxu0 0.0
    %862 = vmatprep.subr.mxu0 0.0
    %863 = vmatpush1.xpose.msra.mxu0 0.0
    %864 = vmatprep.subr.mxu0 0.0
    %865 = vmatpush1.xpose.msra.mxu0 0.0
    %866 = vmatprep.subr.mxu0 0.0
    %867 = vmatpush1.xpose.msra.mxu0 0.0
    %868 = vmatprep.subr.mxu0 0.0
    %869 = vmatpush1.xpose.msra.mxu0 0.0
    %870 = vmatprep.subr.mxu0 0.0
    %871 = vmatpush1.xpose.msra.mxu0 0.0
    %872 = vmatprep.subr.mxu0 0.0
    %873 = vmatpush1.xpose.msra.mxu0 0.0
    %874 = vmatprep.subr.mxu0 0.0
    %875 = vmatpush1.xpose.msra.mxu0 0.0
    %876 = vmatprep.subr.mxu0 0.0
    %877 = vmatpush1.xpose.msra.mxu0 0.0
    %878 = vmatprep.subr.mxu0 0.0
    %879 = vmatpush1.xpose.msra.mxu0 0.0
    %880 = vmatprep.subr.mxu0 0.0
    %881 = vmatpush1.xpose.msra.mxu0 0.0
    %882 = vmatprep.subr.mxu0 0.0
    %883 = vmatpush1.xpose.msra.mxu0 0.0
    %884 = vmatprep.subr.mxu0 0.0
    %885 = vmatpush1.xpose.msra.mxu0 0.0
    %886 = vmatprep.subr.mxu0 0.0
    %887 = vmatpush1.xpose.msra.mxu0 0.0
    %888 = vmatprep.subr.mxu0 0.0
    %889 = vmatpush1.xpose.msra.mxu0 0.0
    %890 = vmatprep.subr.mxu0 0.0
    %891 = vmatpush1.xpose.msra.mxu0 0.0
    %892 = vmatprep.subr.mxu0 0.0
    %893 = vmatpush1.xpose.msra.mxu0 0.0
    %894 = vmatprep.subr.mxu0 0.0
    %895 = vmatpush1.xpose.msra.mxu0 0.0
    %896 = vmatprep.subr.mxu0 0.0
    %897 = vmatpush1.xpose.msra.mxu0 0.0
    %898 = vmatprep.subr.mxu0 0.0
    %899 = vmatpush1.xpose.msra.mxu0 0.0
    %900 = vmatprep.subr.mxu0 0.0
    %901 = vmatpush1.xpose.msra.mxu0 0.0
    %902 = vmatprep.subr.mxu0 0.0
    %903 = vmatpush1.xpose.msra.mxu0 0.0
    %904 = vmatprep.subr.mxu0 0.0
    %905 = vmatpush1.xpose.msra.mxu0 0.0
    %906 = vmatprep.subr.mxu0 0.0
    %907 = vmatpush1.xpose.msra.mxu0 0.0
    %908 = vmatprep.subr.mxu0 0.0
    %909 = vmatpush1.xpose.msra.mxu0 0.0
    %910 = vmatprep.subr.mxu0 0.0
    %911 = vmatpush1.xpose.msra.mxu0 0.0
    %912 = vmatprep.subr.mxu0 0.0
    %913 = vmatpush1.xpose.msra.mxu0 0.0
    %914 = vmatprep.subr.mxu0 0.0
    %915 = vmatpush1.xpose.msra.mxu0 0.0
    %916 = vmatprep.subr.mxu0 0.0
    %917 = vmatpush1.xpose.msra.mxu0 0.0
    %918 = vmatprep.subr.mxu0 0.0
    %919 = vmatpush1.xpose.msra.mxu0 0.0
    %920 = vmatprep.mubr.f32.mxu0 0.0
    %921 = vmatmul.mubr.f32.gmra.mrb[0].mxu0 %v851
    %v922 = vpop.f32.mrb[0].mxu0
    %v923 = vadd.f32 0.0, %v922
    %v924 = vpop.f32.mrb[0].mxu0
    %925 = vdwg.mxu0
    %v927 = vsel %vm393, %v250, 0
    %v930 = vsel %vm393, %v390, 0
    %932 = vmatprep.subr.mxu0 0.0
    %933 = vmatpush1.xpose.msra.mxu0 %v930
    %934 = vmatprep.subr.mxu0 0.0
    %935 = vmatpush1.xpose.msra.mxu0 0.0
    %936 = vmatprep.subr.mxu0 0.0
    %937 = vmatpush1.xpose.msra.mxu0 0.0
    %938 = vmatprep.subr.mxu0 0.0
    %939 = vmatpush1.xpose.msra.mxu0 0.0
    %940 = vmatprep.subr.mxu0 0.0
    %941 = vmatpush1.xpose.msra.mxu0 0.0
    %942 = vmatprep.subr.mxu0 0.0
    %943 = vmatpush1.xpose.msra.mxu0 0.0
    %944 = vmatprep.subr.mxu0 0.0
    %945 = vmatpush1.xpose.msra.mxu0 0.0
    %946 = vmatprep.subr.mxu0 0.0
    %947 = vmatpush1.xpose.msra.mxu0 0.0
    %948 = vmatprep.subr.mxu0 0.0
    %949 = vmatpush1.xpose.msra.mxu0 0.0
    %950 = vmatprep.subr.mxu0 0.0
    %951 = vmatpush1.xpose.msra.mxu0 0.0
    %952 = vmatprep.subr.mxu0 0.0
    %953 = vmatpush1.xpose.msra.mxu0 0.0
    %954 = vmatprep.subr.mxu0 0.0
    %955 = vmatpush1.xpose.msra.mxu0 0.0
    %956 = vmatprep.subr.mxu0 0.0
    %957 = vmatpush1.xpose.msra.mxu0 0.0
    %958 = vmatprep.subr.mxu0 0.0
    %959 = vmatpush1.xpose.msra.mxu0 0.0
    %960 = vmatprep.subr.mxu0 0.0
    %961 = vmatpush1.xpose.msra.mxu0 0.0
    %962 = vmatprep.subr.mxu0 0.0
    %963 = vmatpush1.xpose.msra.mxu0 0.0
    %964 = vmatprep.subr.mxu0 0.0
    %965 = vmatpush1.xpose.msra.mxu0 0.0
    %966 = vmatprep.subr.mxu0 0.0
    %967 = vmatpush1.xpose.msra.mxu0 0.0
    %968 = vmatprep.subr.mxu0 0.0
    %969 = vmatpush1.xpose.msra.mxu0 0.0
    %970 = vmatprep.subr.mxu0 0.0
    %971 = vmatpush1.xpose.msra.mxu0 0.0
    %972 = vmatprep.subr.mxu0 0.0
    %973 = vmatpush1.xpose.msra.mxu0 0.0
    %974 = vmatprep.subr.mxu0 0.0
    %975 = vmatpush1.xpose.msra.mxu0 0.0
    %976 = vmatprep.subr.mxu0 0.0
    %977 = vmatpush1.xpose.msra.mxu0 0.0
    %978 = vmatprep.subr.mxu0 0.0
    %979 = vmatpush1.xpose.msra.mxu0 0.0
    %980 = vmatprep.subr.mxu0 0.0
    %981 = vmatpush1.xpose.msra.mxu0 0.0
    %982 = vmatprep.subr.mxu0 0.0
    %983 = vmatpush1.xpose.msra.mxu0 0.0
    %984 = vmatprep.subr.mxu0 0.0
    %985 = vmatpush1.xpose.msra.mxu0 0.0
    %986 = vmatprep.subr.mxu0 0.0
    %987 = vmatpush1.xpose.msra.mxu0 0.0
    %988 = vmatprep.subr.mxu0 0.0
    %989 = vmatpush1.xpose.msra.mxu0 0.0
    %990 = vmatprep.subr.mxu0 0.0
    %991 = vmatpush1.xpose.msra.mxu0 0.0
    %992 = vmatprep.subr.mxu0 0.0
    %993 = vmatpush1.xpose.msra.mxu0 0.0
    %994 = vmatprep.subr.mxu0 0.0
    %995 = vmatpush1.xpose.msra.mxu0 0.0
    %996 = vmatprep.mubr.f32.mxu0 0.0
    %997 = vmatmul.mubr.f32.gmra.mrb[0].mxu0 %v927
    %v998 = vpop.f32.mrb[0].mxu0
    %v999 = vadd.f32 0.0, %v998
    %v1000 = vpop.f32.mrb[0].mxu0
    %1001 = vdwg.mxu0
    %v1002 = vsel %vm393, %v467, -inf
    %1003 = vmax.xlane.f32.xlu0 %v1002
    %v1004 = vpop.xlane.xlu0 %1003
    %v1005 = vsel %vm393, %v543, -inf
    %1006 = vmax.xlane.f32.xlu0 %v1005
    %v1007 = vpop.xlane.xlu0 %1006
    %v1008 = vsel %vm393, %v619, -inf
    %1009 = vmax.xlane.f32.xlu0 %v1008
    %v1010 = vpop.xlane.xlu0 %1009
    %v1011 = vsel %vm393, %v695, -inf
    %1012 = vmax.xlane.f32.xlu0 %v1011
    %v1013 = vpop.xlane.xlu0 %1012
    %v1014 = vsel %vm393, %v771, -inf
    %1015 = vmax.xlane.f32.xlu0 %v1014
    %v1016 = vpop.xlane.xlu0 %1015
    %v1017 = vsel %vm393, %v847, -inf
    %1018 = vmax.xlane.f32.xlu0 %v1017
    %v1019 = vpop.xlane.xlu0 %1018
    %v1020 = vsel %vm393, %v923, -inf
    %1021 = vmax.xlane.f32.xlu0 %v1020
    %v1022 = vpop.xlane.xlu0 %1021
    %v1023 = vsel %vm393, %v999, -inf
    %1024 = vmax.xlane.f32.xlu0 %v1023
    %v1025 = vpop.xlane.xlu0 %1024
    %v1026 = vsub.f32 %v467, %v1004
    %v1027 = vsub.f32 %v543, %v1007
    %v1028 = vsub.f32 %v619, %v1010
    %v1029 = vsub.f32 %v695, %v1013
    %v1030 = vsub.f32 %v771, %v1016
    %v1031 = vsub.f32 %v847, %v1019
    %v1032 = vsub.f32 %v923, %v1022
    %v1033 = vsub.f32 %v999, %v1025
    %v1034 = vmul.f32 %v1026, 1.442695
    %v1035 = vpow.pop %v1034
    %v1036 = vmul.f32 %v1027, 1.442695
    %v1037 = vpow.pop %v1036
    %v1038 = vmul.f32 %v1028, 1.442695
    %v1039 = vpow.pop %v1038
    %v1040 = vmul.f32 %v1029, 1.442695
    %v1041 = vpow.pop %v1040
    %v1042 = vmul.f32 %v1030, 1.442695
    %v1043 = vpow.pop %v1042
    %v1044 = vmul.f32 %v1031, 1.442695
    %v1045 = vpow.pop %v1044
    %v1046 = vmul.f32 %v1032, 1.442695
    %v1047 = vpow.pop %v1046
    %v1048 = vmul.f32 %v1033, 1.442695
    %v1049 = vpow.pop %v1048
    %v1050 = vsel %vm393, %v1035, 0.0
    %1051 = vadd.xlane.f32.xlu0 %v1050
    %v1052 = vpop.xlane.xlu0 %1051
    %v1053 = vsel %vm393, %v1037, 0.0
    %1054 = vadd.xlane.f32.xlu0 %v1053
    %v1055 = vpop.xlane.xlu0 %1054
    %v1056 = vsel %vm393, %v1039, 0.0
    %1057 = vadd.xlane.f32.xlu0 %v1056
    %v1058 = vpop.xlane.xlu0 %1057
    %v1059 = vsel %vm393, %v1041, 0.0
    %1060 = vadd.xlane.f32.xlu0 %v1059
    %v1061 = vpop.xlane.xlu0 %1060
    %v1062 = vsel %vm393, %v1043, 0.0
    %1063 = vadd.xlane.f32.xlu0 %v1062
    %v1064 = vpop.xlane.xlu0 %1063
    %v1065 = vsel %vm393, %v1045, 0.0
    %1066 = vadd.xlane.f32.xlu0 %v1065
    %v1067 = vpop.xlane.xlu0 %1066
    %v1068 = vsel %vm393, %v1047, 0.0
    %1069 = vadd.xlane.f32.xlu0 %v1068
    %v1070 = vpop.xlane.xlu0 %1069
    %v1071 = vsel %vm393, %v1049, 0.0
    %1072 = vadd.xlane.f32.xlu0 %v1071
    %v1073 = vpop.xlane.xlu0 %1072
    %v1074 = vrcp.pop %v1052
    %v1075 = vrcp.pop %v1055
    %v1076 = vrcp.pop %v1058
    %v1077 = vrcp.pop %v1061
    %v1078 = vrcp.pop %v1064
    %v1079 = vrcp.pop %v1067
    %v1080 = vrcp.pop %v1070
    %v1081 = vrcp.pop %v1073
    %v1082 = vmul.f32 %v1035, %v1074
    %v1083 = vmul.f32 %v1037, %v1075
    %v1084 = vmul.f32 %v1039, %v1076
    %v1085 = vmul.f32 %v1041, %v1077
    %v1086 = vmul.f32 %v1043, %v1078
    %v1087 = vmul.f32 %v1045, %v1079
    %v1088 = vmul.f32 %v1047, %v1080
    %v1089 = vmul.f32 %v1049, %v1081
    %1090 = vrot.lane.b32.xlu0 %v355, 96
    %v1091 = vpop.permute.xlu0 %1090
    %v1094 = vsel %vm393, %v1082, 0
    %1096 = vmatprep.subr.mxu0 0.0
    %1097 = vmatpush1.msra.mxu0 %v1091
    %1098 = vmatprep.subr.mxu0 0.0
    %1099 = vmatpush1.msra.mxu0 0.0
    %1100 = vmatprep.subr.mxu0 0.0
    %1101 = vmatpush1.msra.mxu0 0.0
    %1102 = vmatprep.subr.mxu0 0.0
    %1103 = vmatpush1.msra.mxu0 0.0
    %1104 = vmatprep.subr.mxu0 0.0
    %1105 = vmatpush1.msra.mxu0 0.0
    %1106 = vmatprep.subr.mxu0 0.0
    %1107 = vmatpush1.msra.mxu0 0.0
    %1108 = vmatprep.subr.mxu0 0.0
    %1109 = vmatpush1.msra.mxu0 0.0
    %1110 = vmatprep.subr.mxu0 0.0
    %1111 = vmatpush1.msra.mxu0 0.0
    %1112 = vmatprep.subr.mxu0 0.0
    %1113 = vmatpush1.msra.mxu0 0.0
    %1114 = vmatprep.subr.mxu0 0.0
    %1115 = vmatpush1.msra.mxu0 0.0
    %1116 = vmatprep.subr.mxu0 0.0
    %1117 = vmatpush1.msra.mxu0 0.0
    %1118 = vmatprep.subr.mxu0 0.0
    %1119 = vmatpush1.msra.mxu0 0.0
    %1120 = vmatprep.subr.mxu0 0.0
    %1121 = vmatpush1.msra.mxu0 0.0
    %1122 = vmatprep.subr.mxu0 0.0
    %1123 = vmatpush1.msra.mxu0 0.0
    %1124 = vmatprep.subr.mxu0 0.0
    %1125 = vmatpush1.msra.mxu0 0.0
    %1126 = vmatprep.subr.mxu0 0.0
    %1127 = vmatpush1.msra.mxu0 0.0
    %1128 = vmatprep.subr.mxu0 0.0
    %1129 = vmatpush1.msra.mxu0 0.0
    %1130 = vmatprep.subr.mxu0 0.0
    %1131 = vmatpush1.msra.mxu0 0.0
    %1132 = vmatprep.subr.mxu0 0.0
    %1133 = vmatpush1.msra.mxu0 0.0
    %1134 = vmatprep.subr.mxu0 0.0
    %1135 = vmatpush1.msra.mxu0 0.0
    %1136 = vmatprep.subr.mxu0 0.0
    %1137 = vmatpush1.msra.mxu0 0.0
    %1138 = vmatprep.subr.mxu0 0.0
    %1139 = vmatpush1.msra.mxu0 0.0
    %1140 = vmatprep.subr.mxu0 0.0
    %1141 = vmatpush1.msra.mxu0 0.0
    %1142 = vmatprep.subr.mxu0 0.0
    %1143 = vmatpush1.msra.mxu0 0.0
    %1144 = vmatprep.subr.mxu0 0.0
    %1145 = vmatpush1.msra.mxu0 0.0
    %1146 = vmatprep.subr.mxu0 0.0
    %1147 = vmatpush1.msra.mxu0 0.0
    %1148 = vmatprep.subr.mxu0 0.0
    %1149 = vmatpush1.msra.mxu0 0.0
    %1150 = vmatprep.subr.mxu0 0.0
    %1151 = vmatpush1.msra.mxu0 0.0
    %1152 = vmatprep.subr.mxu0 0.0
    %1153 = vmatpush1.msra.mxu0 0.0
    %1154 = vmatprep.subr.mxu0 0.0
    %1155 = vmatpush1.msra.mxu0 0.0
    %1156 = vmatprep.subr.mxu0 0.0
    %1157 = vmatpush1.msra.mxu0 0.0
    %1158 = vmatprep.subr.mxu0 0.0
    %1159 = vmatpush1.msra.mxu0 0.0
    %1160 = vmatprep.mubr.f32.mxu0 0.0
    %1161 = vmatmul.mubr.f32.gmra.mrb[0].mxu0 %v1094
    %v1162 = vpop.f32.mrb[0].mxu0
    %v1163 = vadd.f32 0.0, %v1162
    %v1164 = vpop.f32.mrb[0].mxu0
    %1165 = vdwg.mxu0
    %1166 = vrot.lane.b32.xlu0 %v360, 96
    %v1167 = vpop.permute.xlu0 %1166
    %v1170 = vsel %vm393, %v1083, 0
    %1172 = vmatprep.subr.mxu0 0.0
    %1173 = vmatpush1.msra.mxu0 %v1167
    %1174 = vmatprep.subr.mxu0 0.0
    %1175 = vmatpush1.msra.mxu0 0.0
    %1176 = vmatprep.subr.mxu0 0.0
    %1177 = vmatpush1.msra.mxu0 0.0
    %1178 = vmatprep.subr.mxu0 0.0
    %1179 = vmatpush1.msra.mxu0 0.0
    %1180 = vmatprep.subr.mxu0 0.0
    %1181 = vmatpush1.msra.mxu0 0.0
    %1182 = vmatprep.subr.mxu0 0.0
    %1183 = vmatpush1.msra.mxu0 0.0
    %1184 = vmatprep.subr.mxu0 0.0
    %1185 = vmatpush1.msra.mxu0 0.0
    %1186 = vmatprep.subr.mxu0 0.0
    %1187 = vmatpush1.msra.mxu0 0.0
    %1188 = vmatprep.subr.mxu0 0.0
    %1189 = vmatpush1.msra.mxu0 0.0
    %1190 = vmatprep.subr.mxu0 0.0
    %1191 = vmatpush1.msra.mxu0 0.0
    %1192 = vmatprep.subr.mxu0 0.0
    %1193 = vmatpush1.msra.mxu0 0.0
    %1194 = vmatprep.subr.mxu0 0.0
    %1195 = vmatpush1.msra.mxu0 0.0
    %1196 = vmatprep.subr.mxu0 0.0
    %1197 = vmatpush1.msra.mxu0 0.0
    %1198 = vmatprep.subr.mxu0 0.0
    %1199 = vmatpush1.msra.mxu0 0.0
    %1200 = vmatprep.subr.mxu0 0.0
    %1201 = vmatpush1.msra.mxu0 0.0
    %1202 = vmatprep.subr.mxu0 0.0
    %1203 = vmatpush1.msra.mxu0 0.0
    %1204 = vmatprep.subr.mxu0 0.0
    %1205 = vmatpush1.msra.mxu0 0.0
    %1206 = vmatprep.subr.mxu0 0.0
    %1207 = vmatpush1.msra.mxu0 0.0
    %1208 = vmatprep.subr.mxu0 0.0
    %1209 = vmatpush1.msra.mxu0 0.0
    %1210 = vmatprep.subr.mxu0 0.0
    %1211 = vmatpush1.msra.mxu0 0.0
    %1212 = vmatprep.subr.mxu0 0.0
    %1213 = vmatpush1.msra.mxu0 0.0
    %1214 = vmatprep.subr.mxu0 0.0
    %1215 = vmatpush1.msra.mxu0 0.0
    %1216 = vmatprep.subr.mxu0 0.0
    %1217 = vmatpush1.msra.mxu0 0.0
    %1218 = vmatprep.subr.mxu0 0.0
    %1219 = vmatpush1.msra.mxu0 0.0
    %1220 = vmatprep.subr.mxu0 0.0
    %1221 = vmatpush1.msra.mxu0 0.0
    %1222 = vmatprep.subr.mxu0 0.0
    %1223 = vmatpush1.msra.mxu0 0.0
    %1224 = vmatprep.subr.mxu0 0.0
    %1225 = vmatpush1.msra.mxu0 0.0
    %1226 = vmatprep.subr.mxu0 0.0
    %1227 = vmatpush1.msra.mxu0 0.0
    %1228 = vmatprep.subr.mxu0 0.0
    %1229 = vmatpush1.msra.mxu0 0.0
    %1230 = vmatprep.subr.mxu0 0.0
    %1231 = vmatpush1.msra.mxu0 0.0
    %1232 = vmatprep.subr.mxu0 0.0
    %1233 = vmatpush1.msra.mxu0 0.0
    %1234 = vmatprep.subr.mxu0 0.0
    %1235 = vmatpush1.msra.mxu0 0.0
    %1236 = vmatprep.mubr.f32.mxu0 0.0
    %1237 = vmatmul.mubr.f32.gmra.mrb[0].mxu0 %v1170
    %v1238 = vpop.f32.mrb[0].mxu0
    %v1239 = vadd.f32 0.0, %v1238
    %v1240 = vpop.f32.mrb[0].mxu0
    %1241 = vdwg.mxu0
    %1242 = vrot.lane.b32.xlu0 %v365, 96
    %v1243 = vpop.permute.xlu0 %1242
    %v1246 = vsel %vm393, %v1084, 0
    %1248 = vmatprep.subr.mxu0 0.0
    %1249 = vmatpush1.msra.mxu0 %v1243
    %1250 = vmatprep.subr.mxu0 0.0
    %1251 = vmatpush1.msra.mxu0 0.0
    %1252 = vmatprep.subr.mxu0 0.0
    %1253 = vmatpush1.msra.mxu0 0.0
    %1254 = vmatprep.subr.mxu0 0.0
    %1255 = vmatpush1.msra.mxu0 0.0
    %1256 = vmatprep.subr.mxu0 0.0
    %1257 = vmatpush1.msra.mxu0 0.0
    %1258 = vmatprep.subr.mxu0 0.0
    %1259 = vmatpush1.msra.mxu0 0.0
    %1260 = vmatprep.subr.mxu0 0.0
    %1261 = vmatpush1.msra.mxu0 0.0
    %1262 = vmatprep.subr.mxu0 0.0
    %1263 = vmatpush1.msra.mxu0 0.0
    %1264 = vmatprep.subr.mxu0 0.0
    %1265 = vmatpush1.msra.mxu0 0.0
    %1266 = vmatprep.subr.mxu0 0.0
    %1267 = vmatpush1.msra.mxu0 0.0
    %1268 = vmatprep.subr.mxu0 0.0
    %1269 = vmatpush1.msra.mxu0 0.0
    %1270 = vmatprep.subr.mxu0 0.0
    %1271 = vmatpush1.msra.mxu0 0.0
    %1272 = vmatprep.subr.mxu0 0.0
    %1273 = vmatpush1.msra.mxu0 0.0
    %1274 = vmatprep.subr.mxu0 0.0
    %1275 = vmatpush1.msra.mxu0 0.0
    %1276 = vmatprep.subr.mxu0 0.0
    %1277 = vmatpush1.msra.mxu0 0.0
    %1278 = vmatprep.subr.mxu0 0.0
    %1279 = vmatpush1.msra.mxu0 0.0
    %1280 = vmatprep.subr.mxu0 0.0
    %1281 = vmatpush1.msra.mxu0 0.0
    %1282 = vmatprep.subr.mxu0 0.0
    %1283 = vmatpush1.msra.mxu0 0.0
    %1284 = vmatprep.subr.mxu0 0.0
    %1285 = vmatpush1.msra.mxu0 0.0
    %1286 = vmatprep.subr.mxu0 0.0
    %1287 = vmatpush1.msra.mxu0 0.0
    %1288 = vmatprep.subr.mxu0 0.0
    %1289 = vmatpush1.msra.mxu0 0.0
    %1290 = vmatprep.subr.mxu0 0.0
    %1291 = vmatpush1.msra.mxu0 0.0
    %1292 = vmatprep.subr.mxu0 0.0
    %1293 = vmatpush1.msra.mxu0 0.0
    %1294 = vmatprep.subr.mxu0 0.0
    %1295 = vmatpush1.msra.mxu0 0.0
    %1296 = vmatprep.subr.mxu0 0.0
    %1297 = vmatpush1.msra.mxu0 0.0
    %1298 = vmatprep.subr.mxu0 0.0
    %1299 = vmatpush1.msra.mxu0 0.0
    %1300 = vmatprep.subr.mxu0 0.0
    %1301 = vmatpush1.msra.mxu0 0.0
    %1302 = vmatprep.subr.mxu0 0.0
    %1303 = vmatpush1.msra.mxu0 0.0
    %1304 = vmatprep.subr.mxu0 0.0
    %1305 = vmatpush1.msra.mxu0 0.0
    %1306 = vmatprep.subr.mxu0 0.0
    %1307 = vmatpush1.msra.mxu0 0.0
    %1308 = vmatprep.subr.mxu0 0.0
    %1309 = vmatpush1.msra.mxu0 0.0
    %1310 = vmatprep.subr.mxu0 0.0
    %1311 = vmatpush1.msra.mxu0 0.0
    %1312 = vmatprep.mubr.f32.mxu0 0.0
    %1313 = vmatmul.mubr.f32.gmra.mrb[0].mxu0 %v1246
    %v1314 = vpop.f32.mrb[0].mxu0
    %v1315 = vadd.f32 0.0, %v1314
    %v1316 = vpop.f32.mrb[0].mxu0
    %1317 = vdwg.mxu0
    %1318 = vrot.lane.b32.xlu0 %v370, 96
    %v1319 = vpop.permute.xlu0 %1318
    %v1322 = vsel %vm393, %v1085, 0
    %1324 = vmatprep.subr.mxu0 0.0
    %1325 = vmatpush1.msra.mxu0 %v1319
    %1326 = vmatprep.subr.mxu0 0.0
    %1327 = vmatpush1.msra.mxu0 0.0
    %1328 = vmatprep.subr.mxu0 0.0
    %1329 = vmatpush1.msra.mxu0 0.0
    %1330 = vmatprep.subr.mxu0 0.0
    %1331 = vmatpush1.msra.mxu0 0.0
    %1332 = vmatprep.subr.mxu0 0.0
    %1333 = vmatpush1.msra.mxu0 0.0
    %1334 = vmatprep.subr.mxu0 0.0
    %1335 = vmatpush1.msra.mxu0 0.0
    %1336 = vmatprep.subr.mxu0 0.0
    %1337 = vmatpush1.msra.mxu0 0.0
    %1338 = vmatprep.subr.mxu0 0.0
    %1339 = vmatpush1.msra.mxu0 0.0
    %1340 = vmatprep.subr.mxu0 0.0
    %1341 = vmatpush1.msra.mxu0 0.0
    %1342 = vmatprep.subr.mxu0 0.0
    %1343 = vmatpush1.msra.mxu0 0.0
    %1344 = vmatprep.subr.mxu0 0.0
    %1345 = vmatpush1.msra.mxu0 0.0
    %1346 = vmatprep.subr.mxu0 0.0
    %1347 = vmatpush1.msra.mxu0 0.0
    %1348 = vmatprep.subr.mxu0 0.0
    %1349 = vmatpush1.msra.mxu0 0.0
    %1350 = vmatprep.subr.mxu0 0.0
    %1351 = vmatpush1.msra.mxu0 0.0
    %1352 = vmatprep.subr.mxu0 0.0
    %1353 = vmatpush1.msra.mxu0 0.0
    %1354 = vmatprep.subr.mxu0 0.0
    %1355 = vmatpush1.msra.mxu0 0.0
    %1356 = vmatprep.subr.mxu0 0.0
    %1357 = vmatpush1.msra.mxu0 0.0
    %1358 = vmatprep.subr.mxu0 0.0
    %1359 = vmatpush1.msra.mxu0 0.0
    %1360 = vmatprep.subr.mxu0 0.0
    %1361 = vmatpush1.msra.mxu0 0.0
    %1362 = vmatprep.subr.mxu0 0.0
    %1363 = vmatpush1.msra.mxu0 0.0
    %1364 = vmatprep.subr.mxu0 0.0
    %1365 = vmatpush1.msra.mxu0 0.0
    %1366 = vmatprep.subr.mxu0 0.0
    %1367 = vmatpush1.msra.mxu0 0.0
    %1368 = vmatprep.subr.mxu0 0.0
    %1369 = vmatpush1.msra.mxu0 0.0
    %1370 = vmatprep.subr.mxu0 0.0
    %1371 = vmatpush1.msra.mxu0 0.0
    %1372 = vmatprep.subr.mxu0 0.0
    %1373 = vmatpush1.msra.mxu0 0.0
    %1374 = vmatprep.subr.mxu0 0.0
    %1375 = vmatpush1.msra.mxu0 0.0
    %1376 = vmatprep.subr.mxu0 0.0
    %1377 = vmatpush1.msra.mxu0 0.0
    %1378 = vmatprep.subr.mxu0 0.0
    %1379 = vmatpush1.msra.mxu0 0.0
    %1380 = vmatprep.subr.mxu0 0.0
    %1381 = vmatpush1.msra.mxu0 0.0
    %1382 = vmatprep.subr.mxu0 0.0
    %1383 = vmatpush1.msra.mxu0 0.0
    %1384 = vmatprep.subr.mxu0 0.0
    %1385 = vmatpush1.msra.mxu0 0.0
    %1386 = vmatprep.subr.mxu0 0.0
    %1387 = vmatpush1.msra.mxu0 0.0
    %1388 = vmatprep.mubr.f32.mxu0 0.0
    %1389 = vmatmul.mubr.f32.gmra.mrb[0].mxu0 %v1322
    %v1390 = vpop.f32.mrb[0].mxu0
    %v1391 = vadd.f32 0.0, %v1390
    %v1392 = vpop.f32.mrb[0].mxu0
    %1393 = vdwg.mxu0
    %1394 = vrot.lane.b32.xlu0 %v375, 96
    %v1395 = vpop.permute.xlu0 %1394
    %v1398 = vsel %vm393, %v1086, 0
    %1400 = vmatprep.subr.mxu0 0.0
    %1401 = vmatpush1.msra.mxu0 %v1395
    %1402 = vmatprep.subr.mxu0 0.0
    %1403 = vmatpush1.msra.mxu0 0.0
    %1404 = vmatprep.subr.mxu0 0.0
    %1405 = vmatpush1.msra.mxu0 0.0
    %1406 = vmatprep.subr.mxu0 0.0
    %1407 = vmatpush1.msra.mxu0 0.0
    %1408 = vmatprep.subr.mxu0 0.0
    %1409 = vmatpush1.msra.mxu0 0.0
    %1410 = vmatprep.subr.mxu0 0.0
    %1411 = vmatpush1.msra.mxu0 0.0
    %1412 = vmatprep.subr.mxu0 0.0
    %1413 = vmatpush1.msra.mxu0 0.0
    %1414 = vmatprep.subr.mxu0 0.0
    %1415 = vmatpush1.msra.mxu0 0.0
    %1416 = vmatprep.subr.mxu0 0.0
    %1417 = vmatpush1.msra.mxu0 0.0
    %1418 = vmatprep.subr.mxu0 0.0
    %1419 = vmatpush1.msra.mxu0 0.0
    %1420 = vmatprep.subr.mxu0 0.0
    %1421 = vmatpush1.msra.mxu0 0.0
    %1422 = vmatprep.subr.mxu0 0.0
    %1423 = vmatpush1.msra.mxu0 0.0
    %1424 = vmatprep.subr.mxu0 0.0
    %1425 = vmatpush1.msra.mxu0 0.0
    %1426 = vmatprep.subr.mxu0 0.0
    %1427 = vmatpush1.msra.mxu0 0.0
    %1428 = vmatprep.subr.mxu0 0.0
    %1429 = vmatpush1.msra.mxu0 0.0
    %1430 = vmatprep.subr.mxu0 0.0
    %1431 = vmatpush1.msra.mxu0 0.0
    %1432 = vmatprep.subr.mxu0 0.0
    %1433 = vmatpush1.msra.mxu0 0.0
    %1434 = vmatprep.subr.mxu0 0.0
    %1435 = vmatpush1.msra.mxu0 0.0
    %1436 = vmatprep.subr.mxu0 0.0
    %1437 = vmatpush1.msra.mxu0 0.0
    %1438 = vmatprep.subr.mxu0 0.0
    %1439 = vmatpush1.msra.mxu0 0.0
    %1440 = vmatprep.subr.mxu0 0.0
    %1441 = vmatpush1.msra.mxu0 0.0
    %1442 = vmatprep.subr.mxu0 0.0
    %1443 = vmatpush1.msra.mxu0 0.0
    %1444 = vmatprep.subr.mxu0 0.0
    %1445 = vmatpush1.msra.mxu0 0.0
    %1446 = vmatprep.subr.mxu0 0.0
    %1447 = vmatpush1.msra.mxu0 0.0
    %1448 = vmatprep.subr.mxu0 0.0
    %1449 = vmatpush1.msra.mxu0 0.0
    %1450 = vmatprep.subr.mxu0 0.0
    %1451 = vmatpush1.msra.mxu0 0.0
    %1452 = vmatprep.subr.mxu0 0.0
    %1453 = vmatpush1.msra.mxu0 0.0
    %1454 = vmatprep.subr.mxu0 0.0
    %1455 = vmatpush1.msra.mxu0 0.0
    %1456 = vmatprep.subr.mxu0 0.0
    %1457 = vmatpush1.msra.mxu0 0.0
    %1458 = vmatprep.subr.mxu0 0.0
    %1459 = vmatpush1.msra.mxu0 0.0
    %1460 = vmatprep.subr.mxu0 0.0
    %1461 = vmatpush1.msra.mxu0 0.0
    %1462 = vmatprep.subr.mxu0 0.0
    %1463 = vmatpush1.msra.mxu0 0.0
    %1464 = vmatprep.mubr.f32.mxu0 0.0
    %1465 = vmatmul.mubr.f32.gmra.mrb[0].mxu0 %v1398
    %v1466 = vpop.f32.mrb[0].mxu0
    %v1467 = vadd.f32 0.0, %v1466
    %v1468 = vpop.f32.mrb[0].mxu0
    %1469 = vdwg.mxu0
    %1470 = vrot.lane.b32.xlu0 %v380, 96
    %v1471 = vpop.permute.xlu0 %1470
    %v1474 = vsel %vm393, %v1087, 0
    %1476 = vmatprep.subr.mxu0 0.0
    %1477 = vmatpush1.msra.mxu0 %v1471
    %1478 = vmatprep.subr.mxu0 0.0
    %1479 = vmatpush1.msra.mxu0 0.0
    %1480 = vmatprep.subr.mxu0 0.0
    %1481 = vmatpush1.msra.mxu0 0.0
    %1482 = vmatprep.subr.mxu0 0.0
    %1483 = vmatpush1.msra.mxu0 0.0
    %1484 = vmatprep.subr.mxu0 0.0
    %1485 = vmatpush1.msra.mxu0 0.0
    %1486 = vmatprep.subr.mxu0 0.0
    %1487 = vmatpush1.msra.mxu0 0.0
    %1488 = vmatprep.subr.mxu0 0.0
    %1489 = vmatpush1.msra.mxu0 0.0
    %1490 = vmatprep.subr.mxu0 0.0
    %1491 = vmatpush1.msra.mxu0 0.0
    %1492 = vmatprep.subr.mxu0 0.0
    %1493 = vmatpush1.msra.mxu0 0.0
    %1494 = vmatprep.subr.mxu0 0.0
    %1495 = vmatpush1.msra.mxu0 0.0
    %1496 = vmatprep.subr.mxu0 0.0
    %1497 = vmatpush1.msra.mxu0 0.0
    %1498 = vmatprep.subr.mxu0 0.0
    %1499 = vmatpush1.msra.mxu0 0.0
    %1500 = vmatprep.subr.mxu0 0.0
    %1501 = vmatpush1.msra.mxu0 0.0
    %1502 = vmatprep.subr.mxu0 0.0
    %1503 = vmatpush1.msra.mxu0 0.0
    %1504 = vmatprep.subr.mxu0 0.0
    %1505 = vmatpush1.msra.mxu0 0.0
    %1506 = vmatprep.subr.mxu0 0.0
    %1507 = vmatpush1.msra.mxu0 0.0
    %1508 = vmatprep.subr.mxu0 0.0
    %1509 = vmatpush1.msra.mxu0 0.0
    %1510 = vmatprep.subr.mxu0 0.0
    %1511 = vmatpush1.msra.mxu0 0.0
    %1512 = vmatprep.subr.mxu0 0.0
    %1513 = vmatpush1.msra.mxu0 0.0
    %1514 = vmatprep.subr.mxu0 0.0
    %1515 = vmatpush1.msra.mxu0 0.0
    %1516 = vmatprep.subr.mxu0 0.0
    %1517 = vmatpush1.msra.mxu0 0.0
    %1518 = vmatprep.subr.mxu0 0.0
    %1519 = vmatpush1.msra.mxu0 0.0
    %1520 = vmatprep.subr.mxu0 0.0
    %1521 = vmatpush1.msra.mxu0 0.0
    %1522 = vmatprep.subr.mxu0 0.0
    %1523 = vmatpush1.msra.mxu0 0.0
    %1524 = vmatprep.subr.mxu0 0.0
    %1525 = vmatpush1.msra.mxu0 0.0
    %1526 = vmatprep.subr.mxu0 0.0
    %1527 = vmatpush1.msra.mxu0 0.0
    %1528 = vmatprep.subr.mxu0 0.0
    %1529 = vmatpush1.msra.mxu0 0.0
    %1530 = vmatprep.subr.mxu0 0.0
    %1531 = vmatpush1.msra.mxu0 0.0
    %1532 = vmatprep.subr.mxu0 0.0
    %1533 = vmatpush1.msra.mxu0 0.0
    %1534 = vmatprep.subr.mxu0 0.0
    %1535 = vmatpush1.msra.mxu0 0.0
    %1536 = vmatprep.subr.mxu0 0.0
    %1537 = vmatpush1.msra.mxu0 0.0
    %1538 = vmatprep.subr.mxu0 0.0
    %1539 = vmatpush1.msra.mxu0 0.0
    %1540 = vmatprep.mubr.f32.mxu0 0.0
    %1541 = vmatmul.mubr.f32.gmra.mrb[0].mxu0 %v1474
    %v1542 = vpop.f32.mrb[0].mxu0
    %v1543 = vadd.f32 0.0, %v1542
    %v1544 = vpop.f32.mrb[0].mxu0
    %1545 = vdwg.mxu0
    %1546 = vrot.lane.b32.xlu0 %v385, 96
    %v1547 = vpop.permute.xlu0 %1546
    %v1550 = vsel %vm393, %v1088, 0
    %1552 = vmatprep.subr.mxu0 0.0
    %1553 = vmatpush1.msra.mxu0 %v1547
    %1554 = vmatprep.subr.mxu0 0.0
    %1555 = vmatpush1.msra.mxu0 0.0
    %1556 = vmatprep.subr.mxu0 0.0
    %1557 = vmatpush1.msra.mxu0 0.0
    %1558 = vmatprep.subr.mxu0 0.0
    %1559 = vmatpush1.msra.mxu0 0.0
    %1560 = vmatprep.subr.mxu0 0.0
    %1561 = vmatpush1.msra.mxu0 0.0
    %1562 = vmatprep.subr.mxu0 0.0
    %1563 = vmatpush1.msra.mxu0 0.0
    %1564 = vmatprep.subr.mxu0 0.0
    %1565 = vmatpush1.msra.mxu0 0.0
    %1566 = vmatprep.subr.mxu0 0.0
    %1567 = vmatpush1.msra.mxu0 0.0
    %1568 = vmatprep.subr.mxu0 0.0
    %1569 = vmatpush1.msra.mxu0 0.0
    %1570 = vmatprep.subr.mxu0 0.0
    %1571 = vmatpush1.msra.mxu0 0.0
    %1572 = vmatprep.subr.mxu0 0.0
    %1573 = vmatpush1.msra.mxu0 0.0
    %1574 = vmatprep.subr.mxu0 0.0
    %1575 = vmatpush1.msra.mxu0 0.0
    %1576 = vmatprep.subr.mxu0 0.0
    %1577 = vmatpush1.msra.mxu0 0.0
    %1578 = vmatprep.subr.mxu0 0.0
    %1579 = vmatpush1.msra.mxu0 0.0
    %1580 = vmatprep.subr.mxu0 0.0
    %1581 = vmatpush1.msra.mxu0 0.0
    %1582 = vmatprep.subr.mxu0 0.0
    %1583 = vmatpush1.msra.mxu0 0.0
    %1584 = vmatprep.subr.mxu0 0.0
    %1585 = vmatpush1.msra.mxu0 0.0
    %1586 = vmatprep.subr.mxu0 0.0
    %1587 = vmatpush1.msra.mxu0 0.0
    %1588 = vmatprep.subr.mxu0 0.0
    %1589 = vmatpush1.msra.mxu0 0.0
    %1590 = vmatprep.subr.mxu0 0.0
    %1591 = vmatpush1.msra.mxu0 0.0
    %1592 = vmatprep.subr.mxu0 0.0
    %1593 = vmatpush1.msra.mxu0 0.0
    %1594 = vmatprep.subr.mxu0 0.0
    %1595 = vmatpush1.msra.mxu0 0.0
    %1596 = vmatprep.subr.mxu0 0.0
    %1597 = vmatpush1.msra.mxu0 0.0
    %1598 = vmatprep.subr.mxu0 0.0
    %1599 = vmatpush1.msra.mxu0 0.0
    %1600 = vmatprep.subr.mxu0 0.0
    %1601 = vmatpush1.msra.mxu0 0.0
    %1602 = vmatprep.subr.mxu0 0.0
    %1603 = vmatpush1.msra.mxu0 0.0
    %1604 = vmatprep.subr.mxu0 0.0
    %1605 = vmatpush1.msra.mxu0 0.0
    %1606 = vmatprep.subr.mxu0 0.0
    %1607 = vmatpush1.msra.mxu0 0.0
    %1608 = vmatprep.subr.mxu0 0.0
    %1609 = vmatpush1.msra.mxu0 0.0
    %1610 = vmatprep.subr.mxu0 0.0
    %1611 = vmatpush1.msra.mxu0 0.0
    %1612 = vmatprep.subr.mxu0 0.0
    %1613 = vmatpush1.msra.mxu0 0.0
    %1614 = vmatprep.subr.mxu0 0.0
    %1615 = vmatpush1.msra.mxu0 0.0
    %1616 = vmatprep.mubr.f32.mxu0 0.0
    %1617 = vmatmul.mubr.f32.gmra.mrb[0].mxu0 %v1550
    %v1618 = vpop.f32.mrb[0].mxu0
    %v1619 = vadd.f32 0.0, %v1618
    %v1620 = vpop.f32.mrb[0].mxu0
    %1621 = vdwg.mxu0
    %1622 = vrot.lane.b32.xlu0 %v390, 96
    %v1623 = vpop.permute.xlu0 %1622
    %v1626 = vsel %vm393, %v1089, 0
    %1628 = vmatprep.subr.mxu0 0.0
    %1629 = vmatpush1.msra.mxu0 %v1623
    %1630 = vmatprep.subr.mxu0 0.0
    %1631 = vmatpush1.msra.mxu0 0.0
    %1632 = vmatprep.subr.mxu0 0.0
    %1633 = vmatpush1.msra.mxu0 0.0
    %1634 = vmatprep.subr.mxu0 0.0
    %1635 = vmatpush1.msra.mxu0 0.0
    %1636 = vmatprep.subr.mxu0 0.0
    %1637 = vmatpush1.msra.mxu0 0.0
    %1638 = vmatprep.subr.mxu0 0.0
    %1639 = vmatpush1.msra.mxu0 0.0
    %1640 = vmatprep.subr.mxu0 0.0
    %1641 = vmatpush1.msra.mxu0 0.0
    %1642 = vmatprep.subr.mxu0 0.0
    %1643 = vmatpush1.msra.mxu0 0.0
    %1644 = vmatprep.subr.mxu0 0.0
    %1645 = vmatpush1.msra.mxu0 0.0
    %1646 = vmatprep.subr.mxu0 0.0
    %1647 = vmatpush1.msra.mxu0 0.0
    %1648 = vmatprep.subr.mxu0 0.0
    %1649 = vmatpush1.msra.mxu0 0.0
    %1650 = vmatprep.subr.mxu0 0.0
    %1651 = vmatpush1.msra.mxu0 0.0
    %1652 = vmatprep.subr.mxu0 0.0
    %1653 = vmatpush1.msra.mxu0 0.0
    %1654 = vmatprep.subr.mxu0 0.0
    %1655 = vmatpush1.msra.mxu0 0.0
    %1656 = vmatprep.subr.mxu0 0.0
    %1657 = vmatpush1.msra.mxu0 0.0
    %1658 = vmatprep.subr.mxu0 0.0
    %1659 = vmatpush1.msra.mxu0 0.0
    %1660 = vmatprep.subr.mxu0 0.0
    %1661 = vmatpush1.msra.mxu0 0.0
    %1662 = vmatprep.subr.mxu0 0.0
    %1663 = vmatpush1.msra.mxu0 0.0
    %1664 = vmatprep.subr.mxu0 0.0
    %1665 = vmatpush1.msra.mxu0 0.0
    %1666 = vmatprep.subr.mxu0 0.0
    %1667 = vmatpush1.msra.mxu0 0.0
    %1668 = vmatprep.subr.mxu0 0.0
    %1669 = vmatpush1.msra.mxu0 0.0
    %1670 = vmatprep.subr.mxu0 0.0
    %1671 = vmatpush1.msra.mxu0 0.0
    %1672 = vmatprep.subr.mxu0 0.0
    %1673 = vmatpush1.msra.mxu0 0.0
    %1674 = vmatprep.subr.mxu0 0.0
    %1675 = vmatpush1.msra.mxu0 0.0
    %1676 = vmatprep.subr.mxu0 0.0
    %1677 = vmatpush1.msra.mxu0 0.0
    %1678 = vmatprep.subr.mxu0 0.0
    %1679 = vmatpush1.msra.mxu0 0.0
    %1680 = vmatprep.subr.mxu0 0.0
    %1681 = vmatpush1.msra.mxu0 0.0
    %1682 = vmatprep.subr.mxu0 0.0
    %1683 = vmatpush1.msra.mxu0 0.0
    %1684 = vmatprep.subr.mxu0 0.0
    %1685 = vmatpush1.msra.mxu0 0.0
    %1686 = vmatprep.subr.mxu0 0.0
    %1687 = vmatpush1.msra.mxu0 0.0
    %1688 = vmatprep.subr.mxu0 0.0
    %1689 = vmatpush1.msra.mxu0 0.0
    %1690 = vmatprep.subr.mxu0 0.0
    %1691 = vmatpush1.msra.mxu0 0.0
    %1692 = vmatprep.mubr.f32.mxu0 0.0
    %1693 = vmatmul.mubr.f32.gmra.mrb[0].mxu0 %v1626
    %v1694 = vpop.f32.mrb[0].mxu0
    %v1695 = vadd.f32 0.0, %v1694
    %v1696 = vpop.f32.mrb[0].mxu0
    %1697 = vdwg.mxu0
    %1698 = vst.msk [vmem:[#allocation2] sm:$0xff] %vm393, %v1163
    %1699 = vst.msk [vmem:[#allocation2 + $0x8] sm:$0xff] %vm393, %v1239
    %1700 = vst.msk [vmem:[#allocation2 + $0x10] sm:$0xff] %vm393, %v1315
    %1701 = vst.msk [vmem:[#allocation2 + $0x18] sm:$0xff] %vm393, %v1391
    %1702 = vst.msk [vmem:[#allocation2 + $0x20] sm:$0xff] %vm393, %v1467
    %1703 = vst.msk [vmem:[#allocation2 + $0x28] sm:$0xff] %vm393, %v1543
    %1704 = vst.msk [vmem:[#allocation2 + $0x30] sm:$0xff] %vm393, %v1619
    %1705 = vst.msk [vmem:[#allocation2 + $0x38] sm:$0xff] %vm393, %v1695
    %1706 = vrot.lane.b32.xlu0 %v215, 120
    %v1707 = vpop.permute.xlu0 %1706
    %1708 = vrot.lane.b32.xlu0 %v355, 120
    %v1709 = vpop.permute.xlu0 %1708
    %v1710 = vsel %vm393, %v1707, 0
    %v1712 = vsel %vm393, %v1709, 0
    %1714 = vmatprep.subr.mxu0 0.0
    %1715 = vmatpush1.xpose.msra.mxu0 %v1712
    %1716 = vmatprep.subr.mxu0 0.0
    %1717 = vmatpush1.xpose.msra.mxu0 0.0
    %1718 = vmatprep.subr.mxu0 0.0
    %1719 = vmatpush1.xpose.msra.mxu0 0.0
    %1720 = vmatprep.subr.mxu0 0.0
    %1721 = vmatpush1.xpose.msra.mxu0 0.0
    %1722 = vmatprep.subr.mxu0 0.0
    %1723 = vmatpush1.xpose.msra.mxu0 0.0
    %1724 = vmatprep.subr.mxu0 0.0
    %1725 = vmatpush1.xpose.msra.mxu0 0.0
    %1726 = vmatprep.subr.mxu0 0.0
    %1727 = vmatpush1.xpose.msra.mxu0 0.0
    %1728 = vmatprep.subr.mxu0 0.0
    %1729 = vmatpush1.xpose.msra.mxu0 0.0
    %1730 = vmatprep.subr.mxu0 0.0
    %1731 = vmatpush1.xpose.msra.mxu0 0.0
    %1732 = vmatprep.subr.mxu0 0.0
    %1733 = vmatpush1.xpose.msra.mxu0 0.0
    %1734 = vmatprep.subr.mxu0 0.0
    %1735 = vmatpush1.xpose.msra.mxu0 0.0
    %1736 = vmatprep.subr.mxu0 0.0
    %1737 = vmatpush1.xpose.msra.mxu0 0.0
    %1738 = vmatprep.subr.mxu0 0.0
    %1739 = vmatpush1.xpose.msra.mxu0 0.0
    %1740 = vmatprep.subr.mxu0 0.0
    %1741 = vmatpush1.xpose.msra.mxu0 0.0
    %1742 = vmatprep.subr.mxu0 0.0
    %1743 = vmatpush1.xpose.msra.mxu0 0.0
    %1744 = vmatprep.subr.mxu0 0.0
    %1745 = vmatpush1.xpose.msra.mxu0 0.0
    %1746 = vmatprep.subr.mxu0 0.0
    %1747 = vmatpush1.xpose.msra.mxu0 0.0
    %1748 = vmatprep.subr.mxu0 0.0
    %1749 = vmatpush1.xpose.msra.mxu0 0.0
    %1750 = vmatprep.subr.mxu0 0.0
    %1751 = vmatpush1.xpose.msra.mxu0 0.0
    %1752 = vmatprep.subr.mxu0 0.0
    %1753 = vmatpush1.xpose.msra.mxu0 0.0
    %1754 = vmatprep.subr.mxu0 0.0
    %1755 = vmatpush1.xpose.msra.mxu0 0.0
    %1756 = vmatprep.subr.mxu0 0.0
    %1757 = vmatpush1.xpose.msra.mxu0 0.0
    %1758 = vmatprep.subr.mxu0 0.0
    %1759 = vmatpush1.xpose.msra.mxu0 0.0
    %1760 = vmatprep.subr.mxu0 0.0
    %1761 = vmatpush1.xpose.msra.mxu0 0.0
    %1762 = vmatprep.subr.mxu0 0.0
    %1763 = vmatpush1.xpose.msra.mxu0 0.0
    %1764 = vmatprep.subr.mxu0 0.0
    %1765 = vmatpush1.xpose.msra.mxu0 0.0
    %1766 = vmatprep.subr.mxu0 0.0
    %1767 = vmatpush1.xpose.msra.mxu0 0.0
    %1768 = vmatprep.subr.mxu0 0.0
    %1769 = vmatpush1.xpose.msra.mxu0 0.0
    %1770 = vmatprep.subr.mxu0 0.0
    %1771 = vmatpush1.xpose.msra.mxu0 0.0
    %1772 = vmatprep.subr.mxu0 0.0
    %1773 = vmatpush1.xpose.msra.mxu0 0.0
    %1774 = vmatprep.subr.mxu0 0.0
    %1775 = vmatpush1.xpose.msra.mxu0 0.0
    %1776 = vmatprep.subr.mxu0 0.0
    %1777 = vmatpush1.xpose.msra.mxu0 0.0
    %1778 = vmatprep.mubr.f32.mxu0 0.0
    %1779 = vmatmul.mubr.f32.gmra.mrb[0].mxu0 %v1710
    %v1780 = vpop.f32.mrb[0].mxu0
    %v1781 = vadd.f32 0.0, %v1780
    %v1782 = vpop.f32.mrb[0].mxu0
    %1783 = vdwg.mxu0
    %1784 = vrot.lane.b32.xlu0 %v220, 120
    %v1785 = vpop.permute.xlu0 %1784
    %1786 = vrot.lane.b32.xlu0 %v360, 120
    %v1787 = vpop.permute.xlu0 %1786
    %v1788 = vsel %vm393, %v1785, 0
    %v1790 = vsel %vm393, %v1787, 0
    %1792 = vmatprep.subr.mxu0 0.0
    %1793 = vmatpush1.xpose.msra.mxu0 %v1790
    %1794 = vmatprep.subr.mxu0 0.0
    %1795 = vmatpush1.xpose.msra.mxu0 0.0
    %1796 = vmatprep.subr.mxu0 0.0
    %1797 = vmatpush1.xpose.msra.mxu0 0.0
    %1798 = vmatprep.subr.mxu0 0.0
    %1799 = vmatpush1.xpose.msra.mxu0 0.0
    %1800 = vmatprep.subr.mxu0 0.0
    %1801 = vmatpush1.xpose.msra.mxu0 0.0
    %1802 = vmatprep.subr.mxu0 0.0
    %1803 = vmatpush1.xpose.msra.mxu0 0.0
    %1804 = vmatprep.subr.mxu0 0.0
    %1805 = vmatpush1.xpose.msra.mxu0 0.0
    %1806 = vmatprep.subr.mxu0 0.0
    %1807 = vmatpush1.xpose.msra.mxu0 0.0
    %1808 = vmatprep.subr.mxu0 0.0
    %1809 = vmatpush1.xpose.msra.mxu0 0.0
    %1810 = vmatprep.subr.mxu0 0.0
    %1811 = vmatpush1.xpose.msra.mxu0 0.0
    %1812 = vmatprep.subr.mxu0 0.0
    %1813 = vmatpush1.xpose.msra.mxu0 0.0
    %1814 = vmatprep.subr.mxu0 0.0
    %1815 = vmatpush1.xpose.msra.mxu0 0.0
    %1816 = vmatprep.subr.mxu0 0.0
    %1817 = vmatpush1.xpose.msra.mxu0 0.0
    %1818 = vmatprep.subr.mxu0 0.0
    %1819 = vmatpush1.xpose.msra.mxu0 0.0
    %1820 = vmatprep.subr.mxu0 0.0
    %1821 = vmatpush1.xpose.msra.mxu0 0.0
    %1822 = vmatprep.subr.mxu0 0.0
    %1823 = vmatpush1.xpose.msra.mxu0 0.0
    %1824 = vmatprep.subr.mxu0 0.0
    %1825 = vmatpush1.xpose.msra.mxu0 0.0
    %1826 = vmatprep.subr.mxu0 0.0
    %1827 = vmatpush1.xpose.msra.mxu0 0.0
    %1828 = vmatprep.subr.mxu0 0.0
    %1829 = vmatpush1.xpose.msra.mxu0 0.0
    %1830 = vmatprep.subr.mxu0 0.0
    %1831 = vmatpush1.xpose.msra.mxu0 0.0
    %1832 = vmatprep.subr.mxu0 0.0
    %1833 = vmatpush1.xpose.msra.mxu0 0.0
    %1834 = vmatprep.subr.mxu0 0.0
    %1835 = vmatpush1.xpose.msra.mxu0 0.0
    %1836 = vmatprep.subr.mxu0 0.0
    %1837 = vmatpush1.xpose.msra.mxu0 0.0
    %1838 = vmatprep.subr.mxu0 0.0
    %1839 = vmatpush1.xpose.msra.mxu0 0.0
    %1840 = vmatprep.subr.mxu0 0.0
    %1841 = vmatpush1.xpose.msra.mxu0 0.0
    %1842 = vmatprep.subr.mxu0 0.0
    %1843 = vmatpush1.xpose.msra.mxu0 0.0
    %1844 = vmatprep.subr.mxu0 0.0
    %1845 = vmatpush1.xpose.msra.mxu0 0.0
    %1846 = vmatprep.subr.mxu0 0.0
    %1847 = vmatpush1.xpose.msra.mxu0 0.0
    %1848 = vmatprep.subr.mxu0 0.0
    %1849 = vmatpush1.xpose.msra.mxu0 0.0
    %1850 = vmatprep.subr.mxu0 0.0
    %1851 = vmatpush1.xpose.msra.mxu0 0.0
    %1852 = vmatprep.subr.mxu0 0.0
    %1853 = vmatpush1.xpose.msra.mxu0 0.0
    %1854 = vmatprep.subr.mxu0 0.0
    %1855 = vmatpush1.xpose.msra.mxu0 0.0
    %1856 = vmatprep.mubr.f32.mxu0 0.0
    %1857 = vmatmul.mubr.f32.gmra.mrb[0].mxu0 %v1788
    %v1858 = vpop.f32.mrb[0].mxu0
    %v1859 = vadd.f32 0.0, %v1858
    %v1860 = vpop.f32.mrb[0].mxu0
    %1861 = vdwg.mxu0
    %1862 = vrot.lane.b32.xlu0 %v225, 120
    %v1863 = vpop.permute.xlu0 %1862
    %1864 = vrot.lane.b32.xlu0 %v365, 120
    %v1865 = vpop.permute.xlu0 %1864
    %v1866 = vsel %vm393, %v1863, 0
    %v1868 = vsel %vm393, %v1865, 0
    %1870 = vmatprep.subr.mxu0 0.0
    %1871 = vmatpush1.xpose.msra.mxu0 %v1868
    %1872 = vmatprep.subr.mxu0 0.0
    %1873 = vmatpush1.xpose.msra.mxu0 0.0
    %1874 = vmatprep.subr.mxu0 0.0
    %1875 = vmatpush1.xpose.msra.mxu0 0.0
    %1876 = vmatprep.subr.mxu0 0.0
    %1877 = vmatpush1.xpose.msra.mxu0 0.0
    %1878 = vmatprep.subr.mxu0 0.0
    %1879 = vmatpush1.xpose.msra.mxu0 0.0
    %1880 = vmatprep.subr.mxu0 0.0
    %1881 = vmatpush1.xpose.msra.mxu0 0.0
    %1882 = vmatprep.subr.mxu0 0.0
    %1883 = vmatpush1.xpose.msra.mxu0 0.0
    %1884 = vmatprep.subr.mxu0 0.0
    %1885 = vmatpush1.xpose.msra.mxu0 0.0
    %1886 = vmatprep.subr.mxu0 0.0
    %1887 = vmatpush1.xpose.msra.mxu0 0.0
    %1888 = vmatprep.subr.mxu0 0.0
    %1889 = vmatpush1.xpose.msra.mxu0 0.0
    %1890 = vmatprep.subr.mxu0 0.0
    %1891 = vmatpush1.xpose.msra.mxu0 0.0
    %1892 = vmatprep.subr.mxu0 0.0
    %1893 = vmatpush1.xpose.msra.mxu0 0.0
    %1894 = vmatprep.subr.mxu0 0.0
    %1895 = vmatpush1.xpose.msra.mxu0 0.0
    %1896 = vmatprep.subr.mxu0 0.0
    %1897 = vmatpush1.xpose.msra.mxu0 0.0
    %1898 = vmatprep.subr.mxu0 0.0
    %1899 = vmatpush1.xpose.msra.mxu0 0.0
    %1900 = vmatprep.subr.mxu0 0.0
    %1901 = vmatpush1.xpose.msra.mxu0 0.0
    %1902 = vmatprep.subr.mxu0 0.0
    %1903 = vmatpush1.xpose.msra.mxu0 0.0
    %1904 = vmatprep.subr.mxu0 0.0
    %1905 = vmatpush1.xpose.msra.mxu0 0.0
    %1906 = vmatprep.subr.mxu0 0.0
    %1907 = vmatpush1.xpose.msra.mxu0 0.0
    %1908 = vmatprep.subr.mxu0 0.0
    %1909 = vmatpush1.xpose.msra.mxu0 0.0
    %1910 = vmatprep.subr.mxu0 0.0
    %1911 = vmatpush1.xpose.msra.mxu0 0.0
    %1912 = vmatprep.subr.mxu0 0.0
    %1913 = vmatpush1.xpose.msra.mxu0 0.0
    %1914 = vmatprep.subr.mxu0 0.0
    %1915 = vmatpush1.xpose.msra.mxu0 0.0
    %1916 = vmatprep.subr.mxu0 0.0
    %1917 = vmatpush1.xpose.msra.mxu0 0.0
    %1918 = vmatprep.subr.mxu0 0.0
    %1919 = vmatpush1.xpose.msra.mxu0 0.0
    %1920 = vmatprep.subr.mxu0 0.0
    %1921 = vmatpush1.xpose.msra.mxu0 0.0
    %1922 = vmatprep.subr.mxu0 0.0
    %1923 = vmatpush1.xpose.msra.mxu0 0.0
    %1924 = vmatprep.subr.mxu0 0.0
    %1925 = vmatpush1.xpose.msra.mxu0 0.0
    %1926 = vmatprep.subr.mxu0 0.0
    %1927 = vmatpush1.xpose.msra.mxu0 0.0
    %1928 = vmatprep.subr.mxu0 0.0
    %1929 = vmatpush1.xpose.msra.mxu0 0.0
    %1930 = vmatprep.subr.mxu0 0.0
    %1931 = vmatpush1.xpose.msra.mxu0 0.0
    %1932 = vmatprep.subr.mxu0 0.0
    %1933 = vmatpush1.xpose.msra.mxu0 0.0
    %1934 = vmatprep.mubr.f32.mxu0 0.0
    %1935 = vmatmul.mubr.f32.gmra.mrb[0].mxu0 %v1866
    %v1936 = vpop.f32.mrb[0].mxu0
    %v1937 = vadd.f32 0.0, %v1936
    %v1938 = vpop.f32.mrb[0].mxu0
    %1939 = vdwg.mxu0
    %1940 = vrot.lane.b32.xlu0 %v230, 120
    %v1941 = vpop.permute.xlu0 %1940
    %1942 = vrot.lane.b32.xlu0 %v370, 120
    %v1943 = vpop.permute.xlu0 %1942
    %v1944 = vsel %vm393, %v1941, 0
    %v1946 = vsel %vm393, %v1943, 0
    %1948 = vmatprep.subr.mxu0 0.0
    %1949 = vmatpush1.xpose.msra.mxu0 %v1946
    %1950 = vmatprep.subr.mxu0 0.0
    %1951 = vmatpush1.xpose.msra.mxu0 0.0
    %1952 = vmatprep.subr.mxu0 0.0
    %1953 = vmatpush1.xpose.msra.mxu0 0.0
    %1954 = vmatprep.subr.mxu0 0.0
    %1955 = vmatpush1.xpose.msra.mxu0 0.0
    %1956 = vmatprep.subr.mxu0 0.0
    %1957 = vmatpush1.xpose.msra.mxu0 0.0
    %1958 = vmatprep.subr.mxu0 0.0
    %1959 = vmatpush1.xpose.msra.mxu0 0.0
    %1960 = vmatprep.subr.mxu0 0.0
    %1961 = vmatpush1.xpose.msra.mxu0 0.0
    %1962 = vmatprep.subr.mxu0 0.0
    %1963 = vmatpush1.xpose.msra.mxu0 0.0
    %1964 = vmatprep.subr.mxu0 0.0
    %1965 = vmatpush1.xpose.msra.mxu0 0.0
    %1966 = vmatprep.subr.mxu0 0.0
    %1967 = vmatpush1.xpose.msra.mxu0 0.0
    %1968 = vmatprep.subr.mxu0 0.0
    %1969 = vmatpush1.xpose.msra.mxu0 0.0
    %1970 = vmatprep.subr.mxu0 0.0
    %1971 = vmatpush1.xpose.msra.mxu0 0.0
    %1972 = vmatprep.subr.mxu0 0.0
    %1973 = vmatpush1.xpose.msra.mxu0 0.0
    %1974 = vmatprep.subr.mxu0 0.0
    %1975 = vmatpush1.xpose.msra.mxu0 0.0
    %1976 = vmatprep.subr.mxu0 0.0
    %1977 = vmatpush1.xpose.msra.mxu0 0.0
    %1978 = vmatprep.subr.mxu0 0.0
    %1979 = vmatpush1.xpose.msra.mxu0 0.0
    %1980 = vmatprep.subr.mxu0 0.0
    %1981 = vmatpush1.xpose.msra.mxu0 0.0
    %1982 = vmatprep.subr.mxu0 0.0
    %1983 = vmatpush1.xpose.msra.mxu0 0.0
    %1984 = vmatprep.subr.mxu0 0.0
    %1985 = vmatpush1.xpose.msra.mxu0 0.0
    %1986 = vmatprep.subr.mxu0 0.0
    %1987 = vmatpush1.xpose.msra.mxu0 0.0
    %1988 = vmatprep.subr.mxu0 0.0
    %1989 = vmatpush1.xpose.msra.mxu0 0.0
    %1990 = vmatprep.subr.mxu0 0.0
    %1991 = vmatpush1.xpose.msra.mxu0 0.0
    %1992 = vmatprep.subr.mxu0 0.0
    %1993 = vmatpush1.xpose.msra.mxu0 0.0
    %1994 = vmatprep.subr.mxu0 0.0
    %1995 = vmatpush1.xpose.msra.mxu0 0.0
    %1996 = vmatprep.subr.mxu0 0.0
    %1997 = vmatpush1.xpose.msra.mxu0 0.0
    %1998 = vmatprep.subr.mxu0 0.0
    %1999 = vmatpush1.xpose.msra.mxu0 0.0
    %2000 = vmatprep.subr.mxu0 0.0
    %2001 = vmatpush1.xpose.msra.mxu0 0.0
    %2002 = vmatprep.subr.mxu0 0.0
    %2003 = vmatpush1.xpose.msra.mxu0 0.0
    %2004 = vmatprep.subr.mxu0 0.0
    %2005 = vmatpush1.xpose.msra.mxu0 0.0
    %2006 = vmatprep.subr.mxu0 0.0
    %2007 = vmatpush1.xpose.msra.mxu0 0.0
    %2008 = vmatprep.subr.mxu0 0.0
    %2009 = vmatpush1.xpose.msra.mxu0 0.0
    %2010 = vmatprep.subr.mxu0 0.0
    %2011 = vmatpush1.xpose.msra.mxu0 0.0
    %2012 = vmatprep.mubr.f32.mxu0 0.0
    %2013 = vmatmul.mubr.f32.gmra.mrb[0].mxu0 %v1944
    %v2014 = vpop.f32.mrb[0].mxu0
    %v2015 = vadd.f32 0.0, %v2014
    %v2016 = vpop.f32.mrb[0].mxu0
    %2017 = vdwg.mxu0
    %2018 = vrot.lane.b32.xlu0 %v235, 120
    %v2019 = vpop.permute.xlu0 %2018
    %2020 = vrot.lane.b32.xlu0 %v375, 120
    %v2021 = vpop.permute.xlu0 %2020
    %v2022 = vsel %vm393, %v2019, 0
    %v2024 = vsel %vm393, %v2021, 0
    %2026 = vmatprep.subr.mxu0 0.0
    %2027 = vmatpush1.xpose.msra.mxu0 %v2024
    %2028 = vmatprep.subr.mxu0 0.0
    %2029 = vmatpush1.xpose.msra.mxu0 0.0
    %2030 = vmatprep.subr.mxu0 0.0
    %2031 = vmatpush1.xpose.msra.mxu0 0.0
    %2032 = vmatprep.subr.mxu0 0.0
    %2033 = vmatpush1.xpose.msra.mxu0 0.0
    %2034 = vmatprep.subr.mxu0 0.0
    %2035 = vmatpush1.xpose.msra.mxu0 0.0
    %2036 = vmatprep.subr.mxu0 0.0
    %2037 = vmatpush1.xpose.msra.mxu0 0.0
    %2038 = vmatprep.subr.mxu0 0.0
    %2039 = vmatpush1.xpose.msra.mxu0 0.0
    %2040 = vmatprep.subr.mxu0 0.0
    %2041 = vmatpush1.xpose.msra.mxu0 0.0
    %2042 = vmatprep.subr.mxu0 0.0
    %2043 = vmatpush1.xpose.msra.mxu0 0.0
    %2044 = vmatprep.subr.mxu0 0.0
    %2045 = vmatpush1.xpose.msra.mxu0 0.0
    %2046 = vmatprep.subr.mxu0 0.0
    %2047 = vmatpush1.xpose.msra.mxu0 0.0
    %2048 = vmatprep.subr.mxu0 0.0
    %2049 = vmatpush1.xpose.msra.mxu0 0.0
    %2050 = vmatprep.subr.mxu0 0.0
    %2051 = vmatpush1.xpose.msra.mxu0 0.0
    %2052 = vmatprep.subr.mxu0 0.0
    %2053 = vmatpush1.xpose.msra.mxu0 0.0
    %2054 = vmatprep.subr.mxu0 0.0
    %2055 = vmatpush1.xpose.msra.mxu0 0.0
    %2056 = vmatprep.subr.mxu0 0.0
    %2057 = vmatpush1.xpose.msra.mxu0 0.0
    %2058 = vmatprep.subr.mxu0 0.0
    %2059 = vmatpush1.xpose.msra.mxu0 0.0
    %2060 = vmatprep.subr.mxu0 0.0
    %2061 = vmatpush1.xpose.msra.mxu0 0.0
    %2062 = vmatprep.subr.mxu0 0.0
    %2063 = vmatpush1.xpose.msra.mxu0 0.0
    %2064 = vmatprep.subr.mxu0 0.0
    %2065 = vmatpush1.xpose.msra.mxu0 0.0
    %2066 = vmatprep.subr.mxu0 0.0
    %2067 = vmatpush1.xpose.msra.mxu0 0.0
    %2068 = vmatprep.subr.mxu0 0.0
    %2069 = vmatpush1.xpose.msra.mxu0 0.0
    %2070 = vmatprep.subr.mxu0 0.0
    %2071 = vmatpush1.xpose.msra.mxu0 0.0
    %2072 = vmatprep.subr.mxu0 0.0
    %2073 = vmatpush1.xpose.msra.mxu0 0.0
    %2074 = vmatprep.subr.mxu0 0.0
    %2075 = vmatpush1.xpose.msra.mxu0 0.0
    %2076 = vmatprep.subr.mxu0 0.0
    %2077 = vmatpush1.xpose.msra.mxu0 0.0
    %2078 = vmatprep.subr.mxu0 0.0
    %2079 = vmatpush1.xpose.msra.mxu0 0.0
    %2080 = vmatprep.subr.mxu0 0.0
    %2081 = vmatpush1.xpose.msra.mxu0 0.0
    %2082 = vmatprep.subr.mxu0 0.0
    %2083 = vmatpush1.xpose.msra.mxu0 0.0
    %2084 = vmatprep.subr.mxu0 0.0
    %2085 = vmatpush1.xpose.msra.mxu0 0.0
    %2086 = vmatprep.subr.mxu0 0.0
    %2087 = vmatpush1.xpose.msra.mxu0 0.0
    %2088 = vmatprep.subr.mxu0 0.0
    %2089 = vmatpush1.xpose.msra.mxu0 0.0
    %2090 = vmatprep.mubr.f32.mxu0 0.0
    %2091 = vmatmul.mubr.f32.gmra.mrb[0].mxu0 %v2022
    %v2092 = vpop.f32.mrb[0].mxu0
    %v2093 = vadd.f32 0.0, %v2092
    %v2094 = vpop.f32.mrb[0].mxu0
    %2095 = vdwg.mxu0
    %2096 = vrot.lane.b32.xlu0 %v240, 120
    %v2097 = vpop.permute.xlu0 %2096
    %2098 = vrot.lane.b32.xlu0 %v380, 120
    %v2099 = vpop.permute.xlu0 %2098
    %v2100 = vsel %vm393, %v2097, 0
    %v2102 = vsel %vm393, %v2099, 0
    %2104 = vmatprep.subr.mxu0 0.0
    %2105 = vmatpush1.xpose.msra.mxu0 %v2102
    %2106 = vmatprep.subr.mxu0 0.0
    %2107 = vmatpush1.xpose.msra.mxu0 0.0
    %2108 = vmatprep.subr.mxu0 0.0
    %2109 = vmatpush1.xpose.msra.mxu0 0.0
    %2110 = vmatprep.subr.mxu0 0.0
    %2111 = vmatpush1.xpose.msra.mxu0 0.0
    %2112 = vmatprep.subr.mxu0 0.0
    %2113 = vmatpush1.xpose.msra.mxu0 0.0
    %2114 = vmatprep.subr.mxu0 0.0
    %2115 = vmatpush1.xpose.msra.mxu0 0.0
    %2116 = vmatprep.subr.mxu0 0.0
    %2117 = vmatpush1.xpose.msra.mxu0 0.0
    %2118 = vmatprep.subr.mxu0 0.0
    %2119 = vmatpush1.xpose.msra.mxu0 0.0
    %2120 = vmatprep.subr.mxu0 0.0
    %2121 = vmatpush1.xpose.msra.mxu0 0.0
    %2122 = vmatprep.subr.mxu0 0.0
    %2123 = vmatpush1.xpose.msra.mxu0 0.0
    %2124 = vmatprep.subr.mxu0 0.0
    %2125 = vmatpush1.xpose.msra.mxu0 0.0
    %2126 = vmatprep.subr.mxu0 0.0
    %2127 = vmatpush1.xpose.msra.mxu0 0.0
    %2128 = vmatprep.subr.mxu0 0.0
    %2129 = vmatpush1.xpose.msra.mxu0 0.0
    %2130 = vmatprep.subr.mxu0 0.0
    %2131 = vmatpush1.xpose.msra.mxu0 0.0
    %2132 = vmatprep.subr.mxu0 0.0
    %2133 = vmatpush1.xpose.msra.mxu0 0.0
    %2134 = vmatprep.subr.mxu0 0.0
    %2135 = vmatpush1.xpose.msra.mxu0 0.0
    %2136 = vmatprep.subr.mxu0 0.0
    %2137 = vmatpush1.xpose.msra.mxu0 0.0
    %2138 = vmatprep.subr.mxu0 0.0
    %2139 = vmatpush1.xpose.msra.mxu0 0.0
    %2140 = vmatprep.subr.mxu0 0.0
    %2141 = vmatpush1.xpose.msra.mxu0 0.0
    %2142 = vmatprep.subr.mxu0 0.0
    %2143 = vmatpush1.xpose.msra.mxu0 0.0
    %2144 = vmatprep.subr.mxu0 0.0
    %2145 = vmatpush1.xpose.msra.mxu0 0.0
    %2146 = vmatprep.subr.mxu0 0.0
    %2147 = vmatpush1.xpose.msra.mxu0 0.0
    %2148 = vmatprep.subr.mxu0 0.0
    %2149 = vmatpush1.xpose.msra.mxu0 0.0
    %2150 = vmatprep.subr.mxu0 0.0
    %2151 = vmatpush1.xpose.msra.mxu0 0.0
    %2152 = vmatprep.subr.mxu0 0.0
    %2153 = vmatpush1.xpose.msra.mxu0 0.0
    %2154 = vmatprep.subr.mxu0 0.0
    %2155 = vmatpush1.xpose.msra.mxu0 0.0
    %2156 = vmatprep.subr.mxu0 0.0
    %2157 = vmatpush1.xpose.msra.mxu0 0.0
    %2158 = vmatprep.subr.mxu0 0.0
    %2159 = vmatpush1.xpose.msra.mxu0 0.0
    %2160 = vmatprep.subr.mxu0 0.0
    %2161 = vmatpush1.xpose.msra.mxu0 0.0
    %2162 = vmatprep.subr.mxu0 0.0
    %2163 = vmatpush1.xpose.msra.mxu0 0.0
    %2164 = vmatprep.subr.mxu0 0.0
    %2165 = vmatpush1.xpose.msra.mxu0 0.0
    %2166 = vmatprep.subr.mxu0 0.0
    %2167 = vmatpush1.xpose.msra.mxu0 0.0
    %2168 = vmatprep.mubr.f32.mxu0 0.0
    %2169 = vmatmul.mubr.f32.gmra.mrb[0].mxu0 %v2100
    %v2170 = vpop.f32.mrb[0].mxu0
    %v2171 = vadd.f32 0.0, %v2170
    %v2172 = vpop.f32.mrb[0].mxu0
    %2173 = vdwg.mxu0
    %2174 = vrot.lane.b32.xlu0 %v245, 120
    %v2175 = vpop.permute.xlu0 %2174
    %2176 = vrot.lane.b32.xlu0 %v385, 120
    %v2177 = vpop.permute.xlu0 %2176
    %v2178 = vsel %vm393, %v2175, 0
    %v2180 = vsel %vm393, %v2177, 0
    %2182 = vmatprep.subr.mxu0 0.0
    %2183 = vmatpush1.xpose.msra.mxu0 %v2180
    %2184 = vmatprep.subr.mxu0 0.0
    %2185 = vmatpush1.xpose.msra.mxu0 0.0
    %2186 = vmatprep.subr.mxu0 0.0
    %2187 = vmatpush1.xpose.msra.mxu0 0.0
    %2188 = vmatprep.subr.mxu0 0.0
    %2189 = vmatpush1.xpose.msra.mxu0 0.0
    %2190 = vmatprep.subr.mxu0 0.0
    %2191 = vmatpush1.xpose.msra.mxu0 0.0
    %2192 = vmatprep.subr.mxu0 0.0
    %2193 = vmatpush1.xpose.msra.mxu0 0.0
    %2194 = vmatprep.subr.mxu0 0.0
    %2195 = vmatpush1.xpose.msra.mxu0 0.0
    %2196 = vmatprep.subr.mxu0 0.0
    %2197 = vmatpush1.xpose.msra.mxu0 0.0
    %2198 = vmatprep.subr.mxu0 0.0
    %2199 = vmatpush1.xpose.msra.mxu0 0.0
    %2200 = vmatprep.subr.mxu0 0.0
    %2201 = vmatpush1.xpose.msra.mxu0 0.0
    %2202 = vmatprep.subr.mxu0 0.0
    %2203 = vmatpush1.xpose.msra.mxu0 0.0
    %2204 = vmatprep.subr.mxu0 0.0
    %2205 = vmatpush1.xpose.msra.mxu0 0.0
    %2206 = vmatprep.subr.mxu0 0.0
    %2207 = vmatpush1.xpose.msra.mxu0 0.0
    %2208 = vmatprep.subr.mxu0 0.0
    %2209 = vmatpush1.xpose.msra.mxu0 0.0
    %2210 = vmatprep.subr.mxu0 0.0
    %2211 = vmatpush1.xpose.msra.mxu0 0.0
    %2212 = vmatprep.subr.mxu0 0.0
    %2213 = vmatpush1.xpose.msra.mxu0 0.0
    %2214 = vmatprep.subr.mxu0 0.0
    %2215 = vmatpush1.xpose.msra.mxu0 0.0
    %2216 = vmatprep.subr.mxu0 0.0
    %2217 = vmatpush1.xpose.msra.mxu0 0.0
    %2218 = vmatprep.subr.mxu0 0.0
    %2219 = vmatpush1.xpose.msra.mxu0 0.0
    %2220 = vmatprep.subr.mxu0 0.0
    %2221 = vmatpush1.xpose.msra.mxu0 0.0
    %2222 = vmatprep.subr.mxu0 0.0
    %2223 = vmatpush1.xpose.msra.mxu0 0.0
    %2224 = vmatprep.subr.mxu0 0.0
    %2225 = vmatpush1.xpose.msra.mxu0 0.0
    %2226 = vmatprep.subr.mxu0 0.0
    %2227 = vmatpush1.xpose.msra.mxu0 0.0
    %2228 = vmatprep.subr.mxu0 0.0
    %2229 = vmatpush1.xpose.msra.mxu0 0.0
    %2230 = vmatprep.subr.mxu0 0.0
    %2231 = vmatpush1.xpose.msra.mxu0 0.0
    %2232 = vmatprep.subr.mxu0 0.0
    %2233 = vmatpush1.xpose.msra.mxu0 0.0
    %2234 = vmatprep.subr.mxu0 0.0
    %2235 = vmatpush1.xpose.msra.mxu0 0.0
    %2236 = vmatprep.subr.mxu0 0.0
    %2237 = vmatpush1.xpose.msra.mxu0 0.0
    %2238 = vmatprep.subr.mxu0 0.0
    %2239 = vmatpush1.xpose.msra.mxu0 0.0
    %2240 = vmatprep.subr.mxu0 0.0
    %2241 = vmatpush1.xpose.msra.mxu0 0.0
    %2242 = vmatprep.subr.mxu0 0.0
    %2243 = vmatpush1.xpose.msra.mxu0 0.0
    %2244 = vmatprep.subr.mxu0 0.0
    %2245 = vmatpush1.xpose.msra.mxu0 0.0
    %2246 = vmatprep.mubr.f32.mxu0 0.0
    %2247 = vmatmul.mubr.f32.gmra.mrb[0].mxu0 %v2178
    %v2248 = vpop.f32.mrb[0].mxu0
    %v2249 = vadd.f32 0.0, %v2248
    %v2250 = vpop.f32.mrb[0].mxu0
    %2251 = vdwg.mxu0
    %2252 = vrot.lane.b32.xlu0 %v250, 120
    %v2253 = vpop.permute.xlu0 %2252
    %2254 = vrot.lane.b32.xlu0 %v390, 120
    %v2255 = vpop.permute.xlu0 %2254
    %v2256 = vsel %vm393, %v2253, 0
    %v2258 = vsel %vm393, %v2255, 0
    %2260 = vmatprep.subr.mxu0 0.0
    %2261 = vmatpush1.xpose.msra.mxu0 %v2258
    %2262 = vmatprep.subr.mxu0 0.0
    %2263 = vmatpush1.xpose.msra.mxu0 0.0
    %2264 = vmatprep.subr.mxu0 0.0
    %2265 = vmatpush1.xpose.msra.mxu0 0.0
    %2266 = vmatprep.subr.mxu0 0.0
    %2267 = vmatpush1.xpose.msra.mxu0 0.0
    %2268 = vmatprep.subr.mxu0 0.0
    %2269 = vmatpush1.xpose.msra.mxu0 0.0
    %2270 = vmatprep.subr.mxu0 0.0
    %2271 = vmatpush1.xpose.msra.mxu0 0.0
    %2272 = vmatprep.subr.mxu0 0.0
    %2273 = vmatpush1.xpose.msra.mxu0 0.0
    %2274 = vmatprep.subr.mxu0 0.0
    %2275 = vmatpush1.xpose.msra.mxu0 0.0
    %2276 = vmatprep.subr.mxu0 0.0
    %2277 = vmatpush1.xpose.msra.mxu0 0.0
    %2278 = vmatprep.subr.mxu0 0.0
    %2279 = vmatpush1.xpose.msra.mxu0 0.0
    %2280 = vmatprep.subr.mxu0 0.0
    %2281 = vmatpush1.xpose.msra.mxu0 0.0
    %2282 = vmatprep.subr.mxu0 0.0
    %2283 = vmatpush1.xpose.msra.mxu0 0.0
    %2284 = vmatprep.subr.mxu0 0.0
    %2285 = vmatpush1.xpose.msra.mxu0 0.0
    %2286 = vmatprep.subr.mxu0 0.0
    %2287 = vmatpush1.xpose.msra.mxu0 0.0
    %2288 = vmatprep.subr.mxu0 0.0
    %2289 = vmatpush1.xpose.msra.mxu0 0.0
    %2290 = vmatprep.subr.mxu0 0.0
    %2291 = vmatpush1.xpose.msra.mxu0 0.0
    %2292 = vmatprep.subr.mxu0 0.0
    %2293 = vmatpush1.xpose.msra.mxu0 0.0
    %2294 = vmatprep.subr.mxu0 0.0
    %2295 = vmatpush1.xpose.msra.mxu0 0.0
    %2296 = vmatprep.subr.mxu0 0.0
    %2297 = vmatpush1.xpose.msra.mxu0 0.0
    %2298 = vmatprep.subr.mxu0 0.0
    %2299 = vmatpush1.xpose.msra.mxu0 0.0
    %2300 = vmatprep.subr.mxu0 0.0
    %2301 = vmatpush1.xpose.msra.mxu0 0.0
    %2302 = vmatprep.subr.mxu0 0.0
    %2303 = vmatpush1.xpose.msra.mxu0 0.0
    %2304 = vmatprep.subr.mxu0 0.0
    %2305 = vmatpush1.xpose.msra.mxu0 0.0
    %2306 = vmatprep.subr.mxu0 0.0
    %2307 = vmatpush1.xpose.msra.mxu0 0.0
    %2308 = vmatprep.subr.mxu0 0.0
    %2309 = vmatpush1.xpose.msra.mxu0 0.0
    %2310 = vmatprep.subr.mxu0 0.0
    %2311 = vmatpush1.xpose.msra.mxu0 0.0
    %2312 = vmatprep.subr.mxu0 0.0
    %2313 = vmatpush1.xpose.msra.mxu0 0.0
    %2314 = vmatprep.subr.mxu0 0.0
    %2315 = vmatpush1.xpose.msra.mxu0 0.0
    %2316 = vmatprep.subr.mxu0 0.0
    %2317 = vmatpush1.xpose.msra.mxu0 0.0
    %2318 = vmatprep.subr.mxu0 0.0
    %2319 = vmatpush1.xpose.msra.mxu0 0.0
    %2320 = vmatprep.subr.mxu0 0.0
    %2321 = vmatpush1.xpose.msra.mxu0 0.0
    %2322 = vmatprep.subr.mxu0 0.0
    %2323 = vmatpush1.xpose.msra.mxu0 0.0
    %2324 = vmatprep.mubr.f32.mxu0 0.0
    %2325 = vmatmul.mubr.f32.gmra.mrb[0].mxu0 %v2256
    %v2326 = vpop.f32.mrb[0].mxu0
    %v2327 = vadd.f32 0.0, %v2326
    %v2328 = vpop.f32.mrb[0].mxu0
    %2329 = vdwg.mxu0
    %v2330 = vsel %vm393, %v1781, -inf
    %2331 = vmax.xlane.f32.xlu0 %v2330
    %v2332 = vpop.xlane.xlu0 %2331
    %v2333 = vsel %vm393, %v1859, -inf
    %2334 = vmax.xlane.f32.xlu0 %v2333
    %v2335 = vpop.xlane.xlu0 %2334
    %v2336 = vsel %vm393, %v1937, -inf
    %2337 = vmax.xlane.f32.xlu0 %v2336
    %v2338 = vpop.xlane.xlu0 %2337
    %v2339 = vsel %vm393, %v2015, -inf
    %2340 = vmax.xlane.f32.xlu0 %v2339
    %v2341 = vpop.xlane.xlu0 %2340
    %v2342 = vsel %vm393, %v2093, -inf
    %2343 = vmax.xlane.f32.xlu0 %v2342
    %v2344 = vpop.xlane.xlu0 %2343
    %v2345 = vsel %vm393, %v2171, -inf
    %2346 = vmax.xlane.f32.xlu0 %v2345
    %v2347 = vpop.xlane.xlu0 %2346
    %v2348 = vsel %vm393, %v2249, -inf
    %2349 = vmax.xlane.f32.xlu0 %v2348
    %v2350 = vpop.xlane.xlu0 %2349
    %v2351 = vsel %vm393, %v2327, -inf
    %2352 = vmax.xlane.f32.xlu0 %v2351
    %v2353 = vpop.xlane.xlu0 %2352
    %v2354 = vsub.f32 %v1781, %v2332
    %v2355 = vsub.f32 %v1859, %v2335
    %v2356 = vsub.f32 %v1937, %v2338
    %v2357 = vsub.f32 %v2015, %v2341
    %v2358 = vsub.f32 %v2093, %v2344
    %v2359 = vsub.f32 %v2171, %v2347
    %v2360 = vsub.f32 %v2249, %v2350
    %v2361 = vsub.f32 %v2327, %v2353
    %v2362 = vmul.f32 %v2354, 1.442695
    %v2363 = vpow.pop %v2362
    %v2364 = vmul.f32 %v2355, 1.442695
    %v2365 = vpow.pop %v2364
    %v2366 = vmul.f32 %v2356, 1.442695
    %v2367 = vpow.pop %v2366
    %v2368 = vmul.f32 %v2357, 1.442695
    %v2369 = vpow.pop %v2368
    %v2370 = vmul.f32 %v2358, 1.442695
    %v2371 = vpow.pop %v2370
    %v2372 = vmul.f32 %v2359, 1.442695
    %v2373 = vpow.pop %v2372
    %v2374 = vmul.f32 %v2360, 1.442695
    %v2375 = vpow.pop %v2374
    %v2376 = vmul.f32 %v2361, 1.442695
    %v2377 = vpow.pop %v2376
    %v2378 = vsel %vm393, %v2363, 0.0
    %2379 = vadd.xlane.f32.xlu0 %v2378
    %v2380 = vpop.xlane.xlu0 %2379
    %v2381 = vsel %vm393, %v2365, 0.0
    %2382 = vadd.xlane.f32.xlu0 %v2381
    %v2383 = vpop.xlane.xlu0 %2382
    %v2384 = vsel %vm393, %v2367, 0.0
    %2385 = vadd.xlane.f32.xlu0 %v2384
    %v2386 = vpop.xlane.xlu0 %2385
    %v2387 = vsel %vm393, %v2369, 0.0
    %2388 = vadd.xlane.f32.xlu0 %v2387
    %v2389 = vpop.xlane.xlu0 %2388
    %v2390 = vsel %vm393, %v2371, 0.0
    %2391 = vadd.xlane.f32.xlu0 %v2390
    %v2392 = vpop.xlane.xlu0 %2391
    %v2393 = vsel %vm393, %v2373, 0.0
    %2394 = vadd.xlane.f32.xlu0 %v2393
    %v2395 = vpop.xlane.xlu0 %2394
    %v2396 = vsel %vm393, %v2375, 0.0
    %2397 = vadd.xlane.f32.xlu0 %v2396
    %v2398 = vpop.xlane.xlu0 %2397
    %v2399 = vsel %vm393, %v2377, 0.0
    %2400 = vadd.xlane.f32.xlu0 %v2399
    %v2401 = vpop.xlane.xlu0 %2400
    %v2402 = vrcp.pop %v2380
    %v2403 = vrcp.pop %v2383
    %v2404 = vrcp.pop %v2386
    %v2405 = vrcp.pop %v2389
    %v2406 = vrcp.pop %v2392
    %v2407 = vrcp.pop %v2395
    %v2408 = vrcp.pop %v2398
    %v2409 = vrcp.pop %v2401
    %v2410 = vmul.f32 %v2363, %v2402
    %v2411 = vmul.f32 %v2365, %v2403
    %v2412 = vmul.f32 %v2367, %v2404
    %v2413 = vmul.f32 %v2369, %v2405
    %v2414 = vmul.f32 %v2371, %v2406
    %v2415 = vmul.f32 %v2373, %v2407
    %v2416 = vmul.f32 %v2375, %v2408
    %v2417 = vmul.f32 %v2377, %v2409
    %2418 = vrot.lane.b32.xlu0 %v355, 88
    %v2419 = vpop.permute.xlu0 %2418
    %v2422 = vsel %vm393, %v2410, 0
    %2424 = vmatprep.subr.mxu0 0.0
    %2425 = vmatpush1.msra.mxu0 %v2419
    %2426 = vmatprep.subr.mxu0 0.0
    %2427 = vmatpush1.msra.mxu0 0.0
    %2428 = vmatprep.subr.mxu0 0.0
    %2429 = vmatpush1.msra.mxu0 0.0
    %2430 = vmatprep.subr.mxu0 0.0
    %2431 = vmatpush1.msra.mxu0 0.0
    %2432 = vmatprep.subr.mxu0 0.0
    %2433 = vmatpush1.msra.mxu0 0.0
    %2434 = vmatprep.subr.mxu0 0.0
    %2435 = vmatpush1.msra.mxu0 0.0
    %2436 = vmatprep.subr.mxu0 0.0
    %2437 = vmatpush1.msra.mxu0 0.0
    %2438 = vmatprep.subr.mxu0 0.0
    %2439 = vmatpush1.msra.mxu0 0.0
    %2440 = vmatprep.subr.mxu0 0.0
    %2441 = vmatpush1.msra.mxu0 0.0
    %2442 = vmatprep.subr.mxu0 0.0
    %2443 = vmatpush1.msra.mxu0 0.0
    %2444 = vmatprep.subr.mxu0 0.0
    %2445 = vmatpush1.msra.mxu0 0.0
    %2446 = vmatprep.subr.mxu0 0.0
    %2447 = vmatpush1.msra.mxu0 0.0
    %2448 = vmatprep.subr.mxu0 0.0
    %2449 = vmatpush1.msra.mxu0 0.0
    %2450 = vmatprep.subr.mxu0 0.0
    %2451 = vmatpush1.msra.mxu0 0.0
    %2452 = vmatprep.subr.mxu0 0.0
    %2453 = vmatpush1.msra.mxu0 0.0
    %2454 = vmatprep.subr.mxu0 0.0
    %2455 = vmatpush1.msra.mxu0 0.0
    %2456 = vmatprep.subr.mxu0 0.0
    %2457 = vmatpush1.msra.mxu0 0.0
    %2458 = vmatprep.subr.mxu0 0.0
    %2459 = vmatpush1.msra.mxu0 0.0
    %2460 = vmatprep.subr.mxu0 0.0
    %2461 = vmatpush1.msra.mxu0 0.0
    %2462 = vmatprep.subr.mxu0 0.0
    %2463 = vmatpush1.msra.mxu0 0.0
    %2464 = vmatprep.subr.mxu0 0.0
    %2465 = vmatpush1.msra.mxu0 0.0
    %2466 = vmatprep.subr.mxu0 0.0
    %2467 = vmatpush1.msra.mxu0 0.0
    %2468 = vmatprep.subr.mxu0 0.0
    %2469 = vmatpush1.msra.mxu0 0.0
    %2470 = vmatprep.subr.mxu0 0.0
    %2471 = vmatpush1.msra.mxu0 0.0
    %2472 = vmatprep.subr.mxu0 0.0
    %2473 = vmatpush1.msra.mxu0 0.0
    %2474 = vmatprep.subr.mxu0 0.0
    %2475 = vmatpush1.msra.mxu0 0.0
    %2476 = vmatprep.subr.mxu0 0.0
    %2477 = vmatpush1.msra.mxu0 0.0
    %2478 = vmatprep.subr.mxu0 0.0
    %2479 = vmatpush1.msra.mxu0 0.0
    %2480 = vmatprep.subr.mxu0 0.0
    %2481 = vmatpush1.msra.mxu0 0.0
    %2482 = vmatprep.subr.mxu0 0.0
    %2483 = vmatpush1.msra.mxu0 0.0
    %2484 = vmatprep.subr.mxu0 0.0
    %2485 = vmatpush1.msra.mxu0 0.0
    %2486 = vmatprep.subr.mxu0 0.0
    %2487 = vmatpush1.msra.mxu0 0.0
    %2488 = vmatprep.mubr.f32.mxu0 0.0
    %2489 = vmatmul.mubr.f32.gmra.mrb[0].mxu0 %v2422
    %v2490 = vpop.f32.mrb[0].mxu0
    %v2491 = vadd.f32 0.0, %v2490
    %v2492 = vpop.f32.mrb[0].mxu0
    %2493 = vdwg.mxu0
    %2494 = vrot.lane.b32.xlu0 %v360, 88
    %v2495 = vpop.permute.xlu0 %2494
    %v2498 = vsel %vm393, %v2411, 0
    %2500 = vmatprep.subr.mxu0 0.0
    %2501 = vmatpush1.msra.mxu0 %v2495
    %2502 = vmatprep.subr.mxu0 0.0
    %2503 = vmatpush1.msra.mxu0 0.0
    %2504 = vmatprep.subr.mxu0 0.0
    %2505 = vmatpush1.msra.mxu0 0.0
    %2506 = vmatprep.subr.mxu0 0.0
    %2507 = vmatpush1.msra.mxu0 0.0
    %2508 = vmatprep.subr.mxu0 0.0
    %2509 = vmatpush1.msra.mxu0 0.0
    %2510 = vmatprep.subr.mxu0 0.0
    %2511 = vmatpush1.msra.mxu0 0.0
    %2512 = vmatprep.subr.mxu0 0.0
    %2513 = vmatpush1.msra.mxu0 0.0
    %2514 = vmatprep.subr.mxu0 0.0
    %2515 = vmatpush1.msra.mxu0 0.0
    %2516 = vmatprep.subr.mxu0 0.0
    %2517 = vmatpush1.msra.mxu0 0.0
    %2518 = vmatprep.subr.mxu0 0.0
    %2519 = vmatpush1.msra.mxu0 0.0
    %2520 = vmatprep.subr.mxu0 0.0
    %2521 = vmatpush1.msra.mxu0 0.0
    %2522 = vmatprep.subr.mxu0 0.0
    %2523 = vmatpush1.msra.mxu0 0.0
    %2524 = vmatprep.subr.mxu0 0.0
    %2525 = vmatpush1.msra.mxu0 0.0
    %2526 = vmatprep.subr.mxu0 0.0
    %2527 = vmatpush1.msra.mxu0 0.0
    %2528 = vmatprep.subr.mxu0 0.0
    %2529 = vmatpush1.msra.mxu0 0.0
    %2530 = vmatprep.subr.mxu0 0.0
    %2531 = vmatpush1.msra.mxu0 0.0
    %2532 = vmatprep.subr.mxu0 0.0
    %2533 = vmatpush1.msra.mxu0 0.0
    %2534 = vmatprep.subr.mxu0 0.0
    %2535 = vmatpush1.msra.mxu0 0.0
    %2536 = vmatprep.subr.mxu0 0.0
    %2537 = vmatpush1.msra.mxu0 0.0
    %2538 = vmatprep.subr.mxu0 0.0
    %2539 = vmatpush1.msra.mxu0 0.0
    %2540 = vmatprep.subr.mxu0 0.0
    %2541 = vmatpush1.msra.mxu0 0.0
    %2542 = vmatprep.subr.mxu0 0.0
    %2543 = vmatpush1.msra.mxu0 0.0
    %2544 = vmatprep.subr.mxu0 0.0
    %2545 = vmatpush1.msra.mxu0 0.0
    %2546 = vmatprep.subr.mxu0 0.0
    %2547 = vmatpush1.msra.mxu0 0.0
    %2548 = vmatprep.subr.mxu0 0.0
    %2549 = vmatpush1.msra.mxu0 0.0
    %2550 = vmatprep.subr.mxu0 0.0
    %2551 = vmatpush1.msra.mxu0 0.0
    %2552 = vmatprep.subr.mxu0 0.0
    %2553 = vmatpush1.msra.mxu0 0.0
    %2554 = vmatprep.subr.mxu0 0.0
    %2555 = vmatpush1.msra.mxu0 0.0
    %2556 = vmatprep.subr.mxu0 0.0
    %2557 = vmatpush1.msra.mxu0 0.0
    %2558 = vmatprep.subr.mxu0 0.0
    %2559 = vmatpush1.msra.mxu0 0.0
    %2560 = vmatprep.subr.mxu0 0.0
    %2561 = vmatpush1.msra.mxu0 0.0
    %2562 = vmatprep.subr.mxu0 0.0
    %2563 = vmatpush1.msra.mxu0 0.0
    %2564 = vmatprep.mubr.f32.mxu0 0.0
    %2565 = vmatmul.mubr.f32.gmra.mrb[0].mxu0 %v2498
    %v2566 = vpop.f32.mrb[0].mxu0
    %v2567 = vadd.f32 0.0, %v2566
    %v2568 = vpop.f32.mrb[0].mxu0
    %2569 = vdwg.mxu0
    %2570 = vrot.lane.b32.xlu0 %v365, 88
    %v2571 = vpop.permute.xlu0 %2570
    %v2574 = vsel %vm393, %v2412, 0
    %2576 = vmatprep.subr.mxu0 0.0
    %2577 = vmatpush1.msra.mxu0 %v2571
    %2578 = vmatprep.subr.mxu0 0.0
    %2579 = vmatpush1.msra.mxu0 0.0
    %2580 = vmatprep.subr.mxu0 0.0
    %2581 = vmatpush1.msra.mxu0 0.0
    %2582 = vmatprep.subr.mxu0 0.0
    %2583 = vmatpush1.msra.mxu0 0.0
    %2584 = vmatprep.subr.mxu0 0.0
    %2585 = vmatpush1.msra.mxu0 0.0
    %2586 = vmatprep.subr.mxu0 0.0
    %2587 = vmatpush1.msra.mxu0 0.0
    %2588 = vmatprep.subr.mxu0 0.0
    %2589 = vmatpush1.msra.mxu0 0.0
    %2590 = vmatprep.subr.mxu0 0.0
    %2591 = vmatpush1.msra.mxu0 0.0
    %2592 = vmatprep.subr.mxu0 0.0
    %2593 = vmatpush1.msra.mxu0 0.0
    %2594 = vmatprep.subr.mxu0 0.0
    %2595 = vmatpush1.msra.mxu0 0.0
    %2596 = vmatprep.subr.mxu0 0.0
    %2597 = vmatpush1.msra.mxu0 0.0
    %2598 = vmatprep.subr.mxu0 0.0
    %2599 = vmatpush1.msra.mxu0 0.0
    %2600 = vmatprep.subr.mxu0 0.0
    %2601 = vmatpush1.msra.mxu0 0.0
    %2602 = vmatprep.subr.mxu0 0.0
    %2603 = vmatpush1.msra.mxu0 0.0
    %2604 = vmatprep.subr.mxu0 0.0
    %2605 = vmatpush1.msra.mxu0 0.0
    %2606 = vmatprep.subr.mxu0 0.0
    %2607 = vmatpush1.msra.mxu0 0.0
    %2608 = vmatprep.subr.mxu0 0.0
    %2609 = vmatpush1.msra.mxu0 0.0
    %2610 = vmatprep.subr.mxu0 0.0
    %2611 = vmatpush1.msra.mxu0 0.0
    %2612 = vmatprep.subr.mxu0 0.0
    %2613 = vmatpush1.msra.mxu0 0.0
    %2614 = vmatprep.subr.mxu0 0.0
    %2615 = vmatpush1.msra.mxu0 0.0
    %2616 = vmatprep.subr.mxu0 0.0
    %2617 = vmatpush1.msra.mxu0 0.0
    %2618 = vmatprep.subr.mxu0 0.0
    %2619 = vmatpush1.msra.mxu0 0.0
    %2620 = vmatprep.subr.mxu0 0.0
    %2621 = vmatpush1.msra.mxu0 0.0
    %2622 = vmatprep.subr.mxu0 0.0
    %2623 = vmatpush1.msra.mxu0 0.0
    %2624 = vmatprep.subr.mxu0 0.0
    %2625 = vmatpush1.msra.mxu0 0.0
    %2626 = vmatprep.subr.mxu0 0.0
    %2627 = vmatpush1.msra.mxu0 0.0
    %2628 = vmatprep.subr.mxu0 0.0
    %2629 = vmatpush1.msra.mxu0 0.0
    %2630 = vmatprep.subr.mxu0 0.0
    %2631 = vmatpush1.msra.mxu0 0.0
    %2632 = vmatprep.subr.mxu0 0.0
    %2633 = vmatpush1.msra.mxu0 0.0
    %2634 = vmatprep.subr.mxu0 0.0
    %2635 = vmatpush1.msra.mxu0 0.0
    %2636 = vmatprep.subr.mxu0 0.0
    %2637 = vmatpush1.msra.mxu0 0.0
    %2638 = vmatprep.subr.mxu0 0.0
    %2639 = vmatpush1.msra.mxu0 0.0
    %2640 = vmatprep.mubr.f32.mxu0 0.0
    %2641 = vmatmul.mubr.f32.gmra.mrb[0].mxu0 %v2574
    %v2642 = vpop.f32.mrb[0].mxu0
    %v2643 = vadd.f32 0.0, %v2642
    %v2644 = vpop.f32.mrb[0].mxu0
    %2645 = vdwg.mxu0
    %2646 = vrot.lane.b32.xlu0 %v370, 88
    %v2647 = vpop.permute.xlu0 %2646
    %v2650 = vsel %vm393, %v2413, 0
    %2652 = vmatprep.subr.mxu0 0.0
    %2653 = vmatpush1.msra.mxu0 %v2647
    %2654 = vmatprep.subr.mxu0 0.0
    %2655 = vmatpush1.msra.mxu0 0.0
    %2656 = vmatprep.subr.mxu0 0.0
    %2657 = vmatpush1.msra.mxu0 0.0
    %2658 = vmatprep.subr.mxu0 0.0
    %2659 = vmatpush1.msra.mxu0 0.0
    %2660 = vmatprep.subr.mxu0 0.0
    %2661 = vmatpush1.msra.mxu0 0.0
    %2662 = vmatprep.subr.mxu0 0.0
    %2663 = vmatpush1.msra.mxu0 0.0
    %2664 = vmatprep.subr.mxu0 0.0
    %2665 = vmatpush1.msra.mxu0 0.0
    %2666 = vmatprep.subr.mxu0 0.0
    %2667 = vmatpush1.msra.mxu0 0.0
    %2668 = vmatprep.subr.mxu0 0.0
    %2669 = vmatpush1.msra.mxu0 0.0
    %2670 = vmatprep.subr.mxu0 0.0
    %2671 = vmatpush1.msra.mxu0 0.0
    %2672 = vmatprep.subr.mxu0 0.0
    %2673 = vmatpush1.msra.mxu0 0.0
    %2674 = vmatprep.subr.mxu0 0.0
    %2675 = vmatpush1.msra.mxu0 0.0
    %2676 = vmatprep.subr.mxu0 0.0
    %2677 = vmatpush1.msra.mxu0 0.0
    %2678 = vmatprep.subr.mxu0 0.0
    %2679 = vmatpush1.msra.mxu0 0.0
    %2680 = vmatprep.subr.mxu0 0.0
    %2681 = vmatpush1.msra.mxu0 0.0
    %2682 = vmatprep.subr.mxu0 0.0
    %2683 = vmatpush1.msra.mxu0 0.0
    %2684 = vmatprep.subr.mxu0 0.0
    %2685 = vmatpush1.msra.mxu0 0.0
    %2686 = vmatprep.subr.mxu0 0.0
    %2687 = vmatpush1.msra.mxu0 0.0
    %2688 = vmatprep.subr.mxu0 0.0
    %2689 = vmatpush1.msra.mxu0 0.0
    %2690 = vmatprep.subr.mxu0 0.0
    %2691 = vmatpush1.msra.mxu0 0.0
    %2692 = vmatprep.subr.mxu0 0.0
    %2693 = vmatpush1.msra.mxu0 0.0
    %2694 = vmatprep.subr.mxu0 0.0
    %2695 = vmatpush1.msra.mxu0 0.0
    %2696 = vmatprep.subr.mxu0 0.0
    %2697 = vmatpush1.msra.mxu0 0.0
    %2698 = vmatprep.subr.mxu0 0.0
    %2699 = vmatpush1.msra.mxu0 0.0
    %2700 = vmatprep.subr.mxu0 0.0
    %2701 = vmatpush1.msra.mxu0 0.0
    %2702 = vmatprep.subr.mxu0 0.0
    %2703 = vmatpush1.msra.mxu0 0.0
    %2704 = vmatprep.subr.mxu0 0.0
    %2705 = vmatpush1.msra.mxu0 0.0
    %2706 = vmatprep.subr.mxu0 0.0
    %2707 = vmatpush1.msra.mxu0 0.0
    %2708 = vmatprep.subr.mxu0 0.0
    %2709 = vmatpush1.msra.mxu0 0.0
    %2710 = vmatprep.subr.mxu0 0.0
    %2711 = vmatpush1.msra.mxu0 0.0
    %2712 = vmatprep.subr.mxu0 0.0
    %2713 = vmatpush1.msra.mxu0 0.0
    %2714 = vmatprep.subr.mxu0 0.0
    %2715 = vmatpush1.msra.mxu0 0.0
    %2716 = vmatprep.mubr.f32.mxu0 0.0
    %2717 = vmatmul.mubr.f32.gmra.mrb[0].mxu0 %v2650
    %v2718 = vpop.f32.mrb[0].mxu0
    %v2719 = vadd.f32 0.0, %v2718
    %v2720 = vpop.f32.mrb[0].mxu0
    %2721 = vdwg.mxu0
    %2722 = vrot.lane.b32.xlu0 %v375, 88
    %v2723 = vpop.permute.xlu0 %2722
    %v2726 = vsel %vm393, %v2414, 0
    %2728 = vmatprep.subr.mxu0 0.0
    %2729 = vmatpush1.msra.mxu0 %v2723
    %2730 = vmatprep.subr.mxu0 0.0
    %2731 = vmatpush1.msra.mxu0 0.0
    %2732 = vmatprep.subr.mxu0 0.0
    %2733 = vmatpush1.msra.mxu0 0.0
    %2734 = vmatprep.subr.mxu0 0.0
    %2735 = vmatpush1.msra.mxu0 0.0
    %2736 = vmatprep.subr.mxu0 0.0
    %2737 = vmatpush1.msra.mxu0 0.0
    %2738 = vmatprep.subr.mxu0 0.0
    %2739 = vmatpush1.msra.mxu0 0.0
    %2740 = vmatprep.subr.mxu0 0.0
    %2741 = vmatpush1.msra.mxu0 0.0
    %2742 = vmatprep.subr.mxu0 0.0
    %2743 = vmatpush1.msra.mxu0 0.0
    %2744 = vmatprep.subr.mxu0 0.0
    %2745 = vmatpush1.msra.mxu0 0.0
    %2746 = vmatprep.subr.mxu0 0.0
    %2747 = vmatpush1.msra.mxu0 0.0
    %2748 = vmatprep.subr.mxu0 0.0
    %2749 = vmatpush1.msra.mxu0 0.0
    %2750 = vmatprep.subr.mxu0 0.0
    %2751 = vmatpush1.msra.mxu0 0.0
    %2752 = vmatprep.subr.mxu0 0.0
    %2753 = vmatpush1.msra.mxu0 0.0
    %2754 = vmatprep.subr.mxu0 0.0
    %2755 = vmatpush1.msra.mxu0 0.0
    %2756 = vmatprep.subr.mxu0 0.0
    %2757 = vmatpush1.msra.mxu0 0.0
    %2758 = vmatprep.subr.mxu0 0.0
    %2759 = vmatpush1.msra.mxu0 0.0
    %2760 = vmatprep.subr.mxu0 0.0
    %2761 = vmatpush1.msra.mxu0 0.0
    %2762 = vmatprep.subr.mxu0 0.0
    %2763 = vmatpush1.msra.mxu0 0.0
    %2764 = vmatprep.subr.mxu0 0.0
    %2765 = vmatpush1.msra.mxu0 0.0
    %2766 = vmatprep.subr.mxu0 0.0
    %2767 = vmatpush1.msra.mxu0 0.0
    %2768 = vmatprep.subr.mxu0 0.0
    %2769 = vmatpush1.msra.mxu0 0.0
    %2770 = vmatprep.subr.mxu0 0.0
    %2771 = vmatpush1.msra.mxu0 0.0
    %2772 = vmatprep.subr.mxu0 0.0
    %2773 = vmatpush1.msra.mxu0 0.0
    %2774 = vmatprep.subr.mxu0 0.0
    %2775 = vmatpush1.msra.mxu0 0.0
    %2776 = vmatprep.subr.mxu0 0.0
    %2777 = vmatpush1.msra.mxu0 0.0
    %2778 = vmatprep.subr.mxu0 0.0
    %2779 = vmatpush1.msra.mxu0 0.0
    %2780 = vmatprep.subr.mxu0 0.0
    %2781 = vmatpush1.msra.mxu0 0.0
    %2782 = vmatprep.subr.mxu0 0.0
    %2783 = vmatpush1.msra.mxu0 0.0
    %2784 = vmatprep.subr.mxu0 0.0
    %2785 = vmatpush1.msra.mxu0 0.0
    %2786 = vmatprep.subr.mxu0 0.0
    %2787 = vmatpush1.msra.mxu0 0.0
    %2788 = vmatprep.subr.mxu0 0.0
    %2789 = vmatpush1.msra.mxu0 0.0
    %2790 = vmatprep.subr.mxu0 0.0
    %2791 = vmatpush1.msra.mxu0 0.0
    %2792 = vmatprep.mubr.f32.mxu0 0.0
    %2793 = vmatmul.mubr.f32.gmra.mrb[0].mxu0 %v2726
    %v2794 = vpop.f32.mrb[0].mxu0
    %v2795 = vadd.f32 0.0, %v2794
    %v2796 = vpop.f32.mrb[0].mxu0
    %2797 = vdwg.mxu0
    %2798 = vrot.lane.b32.xlu0 %v380, 88
    %v2799 = vpop.permute.xlu0 %2798
    %v2802 = vsel %vm393, %v2415, 0
    %2804 = vmatprep.subr.mxu0 0.0
    %2805 = vmatpush1.msra.mxu0 %v2799
    %2806 = vmatprep.subr.mxu0 0.0
    %2807 = vmatpush1.msra.mxu0 0.0
    %2808 = vmatprep.subr.mxu0 0.0
    %2809 = vmatpush1.msra.mxu0 0.0
    %2810 = vmatprep.subr.mxu0 0.0
    %2811 = vmatpush1.msra.mxu0 0.0
    %2812 = vmatprep.subr.mxu0 0.0
    %2813 = vmatpush1.msra.mxu0 0.0
    %2814 = vmatprep.subr.mxu0 0.0
    %2815 = vmatpush1.msra.mxu0 0.0
    %2816 = vmatprep.subr.mxu0 0.0
    %2817 = vmatpush1.msra.mxu0 0.0
    %2818 = vmatprep.subr.mxu0 0.0
    %2819 = vmatpush1.msra.mxu0 0.0
    %2820 = vmatprep.subr.mxu0 0.0
    %2821 = vmatpush1.msra.mxu0 0.0
    %2822 = vmatprep.subr.mxu0 0.0
    %2823 = vmatpush1.msra.mxu0 0.0
    %2824 = vmatprep.subr.mxu0 0.0
    %2825 = vmatpush1.msra.mxu0 0.0
    %2826 = vmatprep.subr.mxu0 0.0
    %2827 = vmatpush1.msra.mxu0 0.0
    %2828 = vmatprep.subr.mxu0 0.0
    %2829 = vmatpush1.msra.mxu0 0.0
    %2830 = vmatprep.subr.mxu0 0.0
    %2831 = vmatpush1.msra.mxu0 0.0
    %2832 = vmatprep.subr.mxu0 0.0
    %2833 = vmatpush1.msra.mxu0 0.0
    %2834 = vmatprep.subr.mxu0 0.0
    %2835 = vmatpush1.msra.mxu0 0.0
    %2836 = vmatprep.subr.mxu0 0.0
    %2837 = vmatpush1.msra.mxu0 0.0
    %2838 = vmatprep.subr.mxu0 0.0
    %2839 = vmatpush1.msra.mxu0 0.0
    %2840 = vmatprep.subr.mxu0 0.0
    %2841 = vmatpush1.msra.mxu0 0.0
    %2842 = vmatprep.subr.mxu0 0.0
    %2843 = vmatpush1.msra.mxu0 0.0
    %2844 = vmatprep.subr.mxu0 0.0
    %2845 = vmatpush1.msra.mxu0 0.0
    %2846 = vmatprep.subr.mxu0 0.0
    %2847 = vmatpush1.msra.mxu0 0.0
    %2848 = vmatprep.subr.mxu0 0.0
    %2849 = vmatpush1.msra.mxu0 0.0
    %2850 = vmatprep.subr.mxu0 0.0
    %2851 = vmatpush1.msra.mxu0 0.0
    %2852 = vmatprep.subr.mxu0 0.0
    %2853 = vmatpush1.msra.mxu0 0.0
    %2854 = vmatprep.subr.mxu0 0.0
    %2855 = vmatpush1.msra.mxu0 0.0
    %2856 = vmatprep.subr.mxu0 0.0
    %2857 = vmatpush1.msra.mxu0 0.0
    %2858 = vmatprep.subr.mxu0 0.0
    %2859 = vmatpush1.msra.mxu0 0.0
    %2860 = vmatprep.subr.mxu0 0.0
    %2861 = vmatpush1.msra.mxu0 0.0
    %2862 = vmatprep.subr.mxu0 0.0
    %2863 = vmatpush1.msra.mxu0 0.0
    %2864 = vmatprep.subr.mxu0 0.0
    %2865 = vmatpush1.msra.mxu0 0.0
    %2866 = vmatprep.subr.mxu0 0.0
    %2867 = vmatpush1.msra.mxu0 0.0
    %2868 = vmatprep.mubr.f32.mxu0 0.0
    %2869 = vmatmul.mubr.f32.gmra.mrb[0].mxu0 %v2802
    %v2870 = vpop.f32.mrb[0].mxu0
    %v2871 = vadd.f32 0.0, %v2870
    %v2872 = vpop.f32.mrb[0].mxu0
    %2873 = vdwg.mxu0
    %2874 = vrot.lane.b32.xlu0 %v385, 88
    %v2875 = vpop.permute.xlu0 %2874
    %v2878 = vsel %vm393, %v2416, 0
    %2880 = vmatprep.subr.mxu0 0.0
    %2881 = vmatpush1.msra.mxu0 %v2875
    %2882 = vmatprep.subr.mxu0 0.0
    %2883 = vmatpush1.msra.mxu0 0.0
    %2884 = vmatprep.subr.mxu0 0.0
    %2885 = vmatpush1.msra.mxu0 0.0
    %2886 = vmatprep.subr.mxu0 0.0
    %2887 = vmatpush1.msra.mxu0 0.0
    %2888 = vmatprep.subr.mxu0 0.0
    %2889 = vmatpush1.msra.mxu0 0.0
    %2890 = vmatprep.subr.mxu0 0.0
    %2891 = vmatpush1.msra.mxu0 0.0
    %2892 = vmatprep.subr.mxu0 0.0
    %2893 = vmatpush1.msra.mxu0 0.0
    %2894 = vmatprep.subr.mxu0 0.0
    %2895 = vmatpush1.msra.mxu0 0.0
    %2896 = vmatprep.subr.mxu0 0.0
    %2897 = vmatpush1.msra.mxu0 0.0
    %2898 = vmatprep.subr.mxu0 0.0
    %2899 = vmatpush1.msra.mxu0 0.0
    %2900 = vmatprep.subr.mxu0 0.0
    %2901 = vmatpush1.msra.mxu0 0.0
    %2902 = vmatprep.subr.mxu0 0.0
    %2903 = vmatpush1.msra.mxu0 0.0
    %2904 = vmatprep.subr.mxu0 0.0
    %2905 = vmatpush1.msra.mxu0 0.0
    %2906 = vmatprep.subr.mxu0 0.0
    %2907 = vmatpush1.msra.mxu0 0.0
    %2908 = vmatprep.subr.mxu0 0.0
    %2909 = vmatpush1.msra.mxu0 0.0
    %2910 = vmatprep.subr.mxu0 0.0
    %2911 = vmatpush1.msra.mxu0 0.0
    %2912 = vmatprep.subr.mxu0 0.0
    %2913 = vmatpush1.msra.mxu0 0.0
    %2914 = vmatprep.subr.mxu0 0.0
    %2915 = vmatpush1.msra.mxu0 0.0
    %2916 = vmatprep.subr.mxu0 0.0
    %2917 = vmatpush1.msra.mxu0 0.0
    %2918 = vmatprep.subr.mxu0 0.0
    %2919 = vmatpush1.msra.mxu0 0.0
    %2920 = vmatprep.subr.mxu0 0.0
    %2921 = vmatpush1.msra.mxu0 0.0
    %2922 = vmatprep.subr.mxu0 0.0
    %2923 = vmatpush1.msra.mxu0 0.0
    %2924 = vmatprep.subr.mxu0 0.0
    %2925 = vmatpush1.msra.mxu0 0.0
    %2926 = vmatprep.subr.mxu0 0.0
    %2927 = vmatpush1.msra.mxu0 0.0
    %2928 = vmatprep.subr.mxu0 0.0
    %2929 = vmatpush1.msra.mxu0 0.0
    %2930 = vmatprep.subr.mxu0 0.0
    %2931 = vmatpush1.msra.mxu0 0.0
    %2932 = vmatprep.subr.mxu0 0.0
    %2933 = vmatpush1.msra.mxu0 0.0
    %2934 = vmatprep.subr.mxu0 0.0
    %2935 = vmatpush1.msra.mxu0 0.0
    %2936 = vmatprep.subr.mxu0 0.0
    %2937 = vmatpush1.msra.mxu0 0.0
    %2938 = vmatprep.subr.mxu0 0.0
    %2939 = vmatpush1.msra.mxu0 0.0
    %2940 = vmatprep.subr.mxu0 0.0
    %2941 = vmatpush1.msra.mxu0 0.0
    %2942 = vmatprep.subr.mxu0 0.0
    %2943 = vmatpush1.msra.mxu0 0.0
    %2944 = vmatprep.mubr.f32.mxu0 0.0
    %2945 = vmatmul.mubr.f32.gmra.mrb[0].mxu0 %v2878
    %v2946 = vpop.f32.mrb[0].mxu0
    %v2947 = vadd.f32 0.0, %v2946
    %v2948 = vpop.f32.mrb[0].mxu0
    %2949 = vdwg.mxu0
    %2950 = vrot.lane.b32.xlu0 %v390, 88
    %v2951 = vpop.permute.xlu0 %2950
    %v2954 = vsel %vm393, %v2417, 0
    %2956 = vmatprep.subr.mxu0 0.0
    %2957 = vmatpush1.msra.mxu0 %v2951
    %2958 = vmatprep.subr.mxu0 0.0
    %2959 = vmatpush1.msra.mxu0 0.0
    %2960 = vmatprep.subr.mxu0 0.0
    %2961 = vmatpush1.msra.mxu0 0.0
    %2962 = vmatprep.subr.mxu0 0.0
    %2963 = vmatpush1.msra.mxu0 0.0
    %2964 = vmatprep.subr.mxu0 0.0
    %2965 = vmatpush1.msra.mxu0 0.0
    %2966 = vmatprep.subr.mxu0 0.0
    %2967 = vmatpush1.msra.mxu0 0.0
    %2968 = vmatprep.subr.mxu0 0.0
    %2969 = vmatpush1.msra.mxu0 0.0
    %2970 = vmatprep.subr.mxu0 0.0
    %2971 = vmatpush1.msra.mxu0 0.0
    %2972 = vmatprep.subr.mxu0 0.0
    %2973 = vmatpush1.msra.mxu0 0.0
    %2974 = vmatprep.subr.mxu0 0.0
    %2975 = vmatpush1.msra.mxu0 0.0
    %2976 = vmatprep.subr.mxu0 0.0
    %2977 = vmatpush1.msra.mxu0 0.0
    %2978 = vmatprep.subr.mxu0 0.0
    %2979 = vmatpush1.msra.mxu0 0.0
    %2980 = vmatprep.subr.mxu0 0.0
    %2981 = vmatpush1.msra.mxu0 0.0
    %2982 = vmatprep.subr.mxu0 0.0
    %2983 = vmatpush1.msra.mxu0 0.0
    %2984 = vmatprep.subr.mxu0 0.0
    %2985 = vmatpush1.msra.mxu0 0.0
    %2986 = vmatprep.subr.mxu0 0.0
    %2987 = vmatpush1.msra.mxu0 0.0
    %2988 = vmatprep.subr.mxu0 0.0
    %2989 = vmatpush1.msra.mxu0 0.0
    %2990 = vmatprep.subr.mxu0 0.0
    %2991 = vmatpush1.msra.mxu0 0.0
    %2992 = vmatprep.subr.mxu0 0.0
    %2993 = vmatpush1.msra.mxu0 0.0
    %2994 = vmatprep.subr.mxu0 0.0
    %2995 = vmatpush1.msra.mxu0 0.0
    %2996 = vmatprep.subr.mxu0 0.0
    %2997 = vmatpush1.msra.mxu0 0.0
    %2998 = vmatprep.subr.mxu0 0.0
    %2999 = vmatpush1.msra.mxu0 0.0
    %3000 = vmatprep.subr.mxu0 0.0
    %3001 = vmatpush1.msra.mxu0 0.0
    %3002 = vmatprep.subr.mxu0 0.0
    %3003 = vmatpush1.msra.mxu0 0.0
    %3004 = vmatprep.subr.mxu0 0.0
    %3005 = vmatpush1.msra.mxu0 0.0
    %3006 = vmatprep.subr.mxu0 0.0
    %3007 = vmatpush1.msra.mxu0 0.0
    %3008 = vmatprep.subr.mxu0 0.0
    %3009 = vmatpush1.msra.mxu0 0.0
    %3010 = vmatprep.subr.mxu0 0.0
    %3011 = vmatpush1.msra.mxu0 0.0
    %3012 = vmatprep.subr.mxu0 0.0
    %3013 = vmatpush1.msra.mxu0 0.0
    %3014 = vmatprep.subr.mxu0 0.0
    %3015 = vmatpush1.msra.mxu0 0.0
    %3016 = vmatprep.subr.mxu0 0.0
    %3017 = vmatpush1.msra.mxu0 0.0
    %3018 = vmatprep.subr.mxu0 0.0
    %3019 = vmatpush1.msra.mxu0 0.0
    %3020 = vmatprep.mubr.f32.mxu0 0.0
    %3021 = vmatmul.mubr.f32.gmra.mrb[0].mxu0 %v2954
    %v3022 = vpop.f32.mrb[0].mxu0
    %v3023 = vadd.f32 0.0, %v3022
    %v3024 = vpop.f32.mrb[0].mxu0
    %3025 = vdwg.mxu0
    %3034 = vrot.lane.b32.xlu0 %v2491, 8
    %v3035 = vpop.permute.xlu0 %3034
    %3036 = vrot.lane.b32.xlu0 %v2567, 8
    %v3037 = vpop.permute.xlu0 %3036
    %3038 = vrot.lane.b32.xlu0 %v2643, 8
    %v3039 = vpop.permute.xlu0 %3038
    %3040 = vrot.lane.b32.xlu0 %v2719, 8
    %v3041 = vpop.permute.xlu0 %3040
    %3042 = vrot.lane.b32.xlu0 %v2795, 8
    %v3043 = vpop.permute.xlu0 %3042
    %3044 = vrot.lane.b32.xlu0 %v2871, 8
    %v3045 = vpop.permute.xlu0 %3044
    %3046 = vrot.lane.b32.xlu0 %v2947, 8
    %v3047 = vpop.permute.xlu0 %3046
    %3048 = vrot.lane.b32.xlu0 %v3023, 8
    %v3049 = vpop.permute.xlu0 %3048
    %vm3058 = vcmask 130112
    %3059 = vst.msk [vmem:[#allocation2] sm:$0xff] %vm3058, %v3035
    %3060 = vst.msk [vmem:[#allocation2 + $0x8] sm:$0xff] %vm3058, %v3037
    %3061 = vst.msk [vmem:[#allocation2 + $0x10] sm:$0xff] %vm3058, %v3039
    %3062 = vst.msk [vmem:[#allocation2 + $0x18] sm:$0xff] %vm3058, %v3041
    %3063 = vst.msk [vmem:[#allocation2 + $0x20] sm:$0xff] %vm3058, %v3043
    %3064 = vst.msk [vmem:[#allocation2 + $0x28] sm:$0xff] %vm3058, %v3045
    %3065 = vst.msk [vmem:[#allocation2 + $0x30] sm:$0xff] %vm3058, %v3047
    %3066 = vst.msk [vmem:[#allocation2 + $0x38] sm:$0xff] %vm3058, %v3049
    %3067 = vrot.lane.b32.xlu0 %v215, 112
    %v3068 = vpop.permute.xlu0 %3067
    %3069 = vrot.lane.b32.xlu0 %v355, 112
    %v3070 = vpop.permute.xlu0 %3069
    %v3071 = vsel %vm393, %v3068, 0
    %v3073 = vsel %vm393, %v3070, 0
    %3075 = vmatprep.subr.mxu0 0.0
    %3076 = vmatpush1.xpose.msra.mxu0 %v3073
    %3077 = vmatprep.subr.mxu0 0.0
    %3078 = vmatpush1.xpose.msra.mxu0 0.0
    %3079 = vmatprep.subr.mxu0 0.0
    %3080 = vmatpush1.xpose.msra.mxu0 0.0
    %3081 = vmatprep.subr.mxu0 0.0
    %3082 = vmatpush1.xpose.msra.mxu0 0.0
    %3083 = vmatprep.subr.mxu0 0.0
    %3084 = vmatpush1.xpose.msra.mxu0 0.0
    %3085 = vmatprep.subr.mxu0 0.0
    %3086 = vmatpush1.xpose.msra.mxu0 0.0
    %3087 = vmatprep.subr.mxu0 0.0
    %3088 = vmatpush1.xpose.msra.mxu0 0.0
    %3089 = vmatprep.subr.mxu0 0.0
    %3090 = vmatpush1.xpose.msra.mxu0 0.0
    %3091 = vmatprep.subr.mxu0 0.0
    %3092 = vmatpush1.xpose.msra.mxu0 0.0
    %3093 = vmatprep.subr.mxu0 0.0
    %3094 = vmatpush1.xpose.msra.mxu0 0.0
    %3095 = vmatprep.subr.mxu0 0.0
    %3096 = vmatpush1.xpose.msra.mxu0 0.0
    %3097 = vmatprep.subr.mxu0 0.0
    %3098 = vmatpush1.xpose.msra.mxu0 0.0
    %3099 = vmatprep.subr.mxu0 0.0
    %3100 = vmatpush1.xpose.msra.mxu0 0.0
    %3101 = vmatprep.subr.mxu0 0.0
    %3102 = vmatpush1.xpose.msra.mxu0 0.0
    %3103 = vmatprep.subr.mxu0 0.0
    %3104 = vmatpush1.xpose.msra.mxu0 0.0
    %3105 = vmatprep.subr.mxu0 0.0
    %3106 = vmatpush1.xpose.msra.mxu0 0.0
    %3107 = vmatprep.subr.mxu0 0.0
    %3108 = vmatpush1.xpose.msra.mxu0 0.0
    %3109 = vmatprep.subr.mxu0 0.0
    %3110 = vmatpush1.xpose.msra.mxu0 0.0
    %3111 = vmatprep.subr.mxu0 0.0
    %3112 = vmatpush1.xpose.msra.mxu0 0.0
    %3113 = vmatprep.subr.mxu0 0.0
    %3114 = vmatpush1.xpose.msra.mxu0 0.0
    %3115 = vmatprep.subr.mxu0 0.0
    %3116 = vmatpush1.xpose.msra.mxu0 0.0
    %3117 = vmatprep.subr.mxu0 0.0
    %3118 = vmatpush1.xpose.msra.mxu0 0.0
    %3119 = vmatprep.subr.mxu0 0.0
    %3120 = vmatpush1.xpose.msra.mxu0 0.0
    %3121 = vmatprep.subr.mxu0 0.0
    %3122 = vmatpush1.xpose.msra.mxu0 0.0
    %3123 = vmatprep.subr.mxu0 0.0
    %3124 = vmatpush1.xpose.msra.mxu0 0.0
    %3125 = vmatprep.subr.mxu0 0.0
    %3126 = vmatpush1.xpose.msra.mxu0 0.0
    %3127 = vmatprep.subr.mxu0 0.0
    %3128 = vmatpush1.xpose.msra.mxu0 0.0
    %3129 = vmatprep.subr.mxu0 0.0
    %3130 = vmatpush1.xpose.msra.mxu0 0.0
    %3131 = vmatprep.subr.mxu0 0.0
    %3132 = vmatpush1.xpose.msra.mxu0 0.0
    %3133 = vmatprep.subr.mxu0 0.0
    %3134 = vmatpush1.xpose.msra.mxu0 0.0
    %3135 = vmatprep.subr.mxu0 0.0
    %3136 = vmatpush1.xpose.msra.mxu0 0.0
    %3137 = vmatprep.subr.mxu0 0.0
    %3138 = vmatpush1.xpose.msra.mxu0 0.0
    %3139 = vmatprep.mubr.f32.mxu0 0.0
    %3140 = vmatmul.mubr.f32.gmra.mrb[0].mxu0 %v3071
    %v3141 = vpop.f32.mrb[0].mxu0
    %v3142 = vadd.f32 0.0, %v3141
    %v3143 = vpop.f32.mrb[0].mxu0
    %3144 = vdwg.mxu0
    %3145 = vrot.lane.b32.xlu0 %v220, 112
    %v3146 = vpop.permute.xlu0 %3145
    %3147 = vrot.lane.b32.xlu0 %v360, 112
    %v3148 = vpop.permute.xlu0 %3147
    %v3149 = vsel %vm393, %v3146, 0
    %v3151 = vsel %vm393, %v3148, 0
    %3153 = vmatprep.subr.mxu0 0.0
    %3154 = vmatpush1.xpose.msra.mxu0 %v3151
    %3155 = vmatprep.subr.mxu0 0.0
    %3156 = vmatpush1.xpose.msra.mxu0 0.0
    %3157 = vmatprep.subr.mxu0 0.0
    %3158 = vmatpush1.xpose.msra.mxu0 0.0
    %3159 = vmatprep.subr.mxu0 0.0
    %3160 = vmatpush1.xpose.msra.mxu0 0.0
    %3161 = vmatprep.subr.mxu0 0.0
    %3162 = vmatpush1.xpose.msra.mxu0 0.0
    %3163 = vmatprep.subr.mxu0 0.0
    %3164 = vmatpush1.xpose.msra.mxu0 0.0
    %3165 = vmatprep.subr.mxu0 0.0
    %3166 = vmatpush1.xpose.msra.mxu0 0.0
    %3167 = vmatprep.subr.mxu0 0.0
    %3168 = vmatpush1.xpose.msra.mxu0 0.0
    %3169 = vmatprep.subr.mxu0 0.0
    %3170 = vmatpush1.xpose.msra.mxu0 0.0
    %3171 = vmatprep.subr.mxu0 0.0
    %3172 = vmatpush1.xpose.msra.mxu0 0.0
    %3173 = vmatprep.subr.mxu0 0.0
    %3174 = vmatpush1.xpose.msra.mxu0 0.0
    %3175 = vmatprep.subr.mxu0 0.0
    %3176 = vmatpush1.xpose.msra.mxu0 0.0
    %3177 = vmatprep.subr.mxu0 0.0
    %3178 = vmatpush1.xpose.msra.mxu0 0.0
    %3179 = vmatprep.subr.mxu0 0.0
    %3180 = vmatpush1.xpose.msra.mxu0 0.0
    %3181 = vmatprep.subr.mxu0 0.0
    %3182 = vmatpush1.xpose.msra.mxu0 0.0
    %3183 = vmatprep.subr.mxu0 0.0
    %3184 = vmatpush1.xpose.msra.mxu0 0.0
    %3185 = vmatprep.subr.mxu0 0.0
    %3186 = vmatpush1.xpose.msra.mxu0 0.0
    %3187 = vmatprep.subr.mxu0 0.0
    %3188 = vmatpush1.xpose.msra.mxu0 0.0
    %3189 = vmatprep.subr.mxu0 0.0
    %3190 = vmatpush1.xpose.msra.mxu0 0.0
    %3191 = vmatprep.subr.mxu0 0.0
    %3192 = vmatpush1.xpose.msra.mxu0 0.0
    %3193 = vmatprep.subr.mxu0 0.0
    %3194 = vmatpush1.xpose.msra.mxu0 0.0
    %3195 = vmatprep.subr.mxu0 0.0
    %3196 = vmatpush1.xpose.msra.mxu0 0.0
    %3197 = vmatprep.subr.mxu0 0.0
    %3198 = vmatpush1.xpose.msra.mxu0 0.0
    %3199 = vmatprep.subr.mxu0 0.0
    %3200 = vmatpush1.xpose.msra.mxu0 0.0
    %3201 = vmatprep.subr.mxu0 0.0
    %3202 = vmatpush1.xpose.msra.mxu0 0.0
    %3203 = vmatprep.subr.mxu0 0.0
    %3204 = vmatpush1.xpose.msra.mxu0 0.0
    %3205 = vmatprep.subr.mxu0 0.0
    %3206 = vmatpush1.xpose.msra.mxu0 0.0
    %3207 = vmatprep.subr.mxu0 0.0
    %3208 = vmatpush1.xpose.msra.mxu0 0.0
    %3209 = vmatprep.subr.mxu0 0.0
    %3210 = vmatpush1.xpose.msra.mxu0 0.0
    %3211 = vmatprep.subr.mxu0 0.0
    %3212 = vmatpush1.xpose.msra.mxu0 0.0
    %3213 = vmatprep.subr.mxu0 0.0
    %3214 = vmatpush1.xpose.msra.mxu0 0.0
    %3215 = vmatprep.subr.mxu0 0.0
    %3216 = vmatpush1.xpose.msra.mxu0 0.0
    %3217 = vmatprep.mubr.f32.mxu0 0.0
    %3218 = vmatmul.mubr.f32.gmra.mrb[0].mxu0 %v3149
    %v3219 = vpop.f32.mrb[0].mxu0
    %v3220 = vadd.f32 0.0, %v3219
    %v3221 = vpop.f32.mrb[0].mxu0
    %3222 = vdwg.mxu0
    %3223 = vrot.lane.b32.xlu0 %v225, 112
    %v3224 = vpop.permute.xlu0 %3223
    %3225 = vrot.lane.b32.xlu0 %v365, 112
    %v3226 = vpop.permute.xlu0 %3225
    %v3227 = vsel %vm393, %v3224, 0
    %v3229 = vsel %vm393, %v3226, 0
    %3231 = vmatprep.subr.mxu0 0.0
    %3232 = vmatpush1.xpose.msra.mxu0 %v3229
    %3233 = vmatprep.subr.mxu0 0.0
    %3234 = vmatpush1.xpose.msra.mxu0 0.0
    %3235 = vmatprep.subr.mxu0 0.0
    %3236 = vmatpush1.xpose.msra.mxu0 0.0
    %3237 = vmatprep.subr.mxu0 0.0
    %3238 = vmatpush1.xpose.msra.mxu0 0.0
    %3239 = vmatprep.subr.mxu0 0.0
    %3240 = vmatpush1.xpose.msra.mxu0 0.0
    %3241 = vmatprep.subr.mxu0 0.0
    %3242 = vmatpush1.xpose.msra.mxu0 0.0
    %3243 = vmatprep.subr.mxu0 0.0
    %3244 = vmatpush1.xpose.msra.mxu0 0.0
    %3245 = vmatprep.subr.mxu0 0.0
    %3246 = vmatpush1.xpose.msra.mxu0 0.0
    %3247 = vmatprep.subr.mxu0 0.0
    %3248 = vmatpush1.xpose.msra.mxu0 0.0
    %3249 = vmatprep.subr.mxu0 0.0
    %3250 = vmatpush1.xpose.msra.mxu0 0.0
    %3251 = vmatprep.subr.mxu0 0.0
    %3252 = vmatpush1.xpose.msra.mxu0 0.0
    %3253 = vmatprep.subr.mxu0 0.0
    %3254 = vmatpush1.xpose.msra.mxu0 0.0
    %3255 = vmatprep.subr.mxu0 0.0
    %3256 = vmatpush1.xpose.msra.mxu0 0.0
    %3257 = vmatprep.subr.mxu0 0.0
    %3258 = vmatpush1.xpose.msra.mxu0 0.0
    %3259 = vmatprep.subr.mxu0 0.0
    %3260 = vmatpush1.xpose.msra.mxu0 0.0
    %3261 = vmatprep.subr.mxu0 0.0
    %3262 = vmatpush1.xpose.msra.mxu0 0.0
    %3263 = vmatprep.subr.mxu0 0.0
    %3264 = vmatpush1.xpose.msra.mxu0 0.0
    %3265 = vmatprep.subr.mxu0 0.0
    %3266 = vmatpush1.xpose.msra.mxu0 0.0
    %3267 = vmatprep.subr.mxu0 0.0
    %3268 = vmatpush1.xpose.msra.mxu0 0.0
    %3269 = vmatprep.subr.mxu0 0.0
    %3270 = vmatpush1.xpose.msra.mxu0 0.0
    %3271 = vmatprep.subr.mxu0 0.0
    %3272 = vmatpush1.xpose.msra.mxu0 0.0
    %3273 = vmatprep.subr.mxu0 0.0
    %3274 = vmatpush1.xpose.msra.mxu0 0.0
    %3275 = vmatprep.subr.mxu0 0.0
    %3276 = vmatpush1.xpose.msra.mxu0 0.0
    %3277 = vmatprep.subr.mxu0 0.0
    %3278 = vmatpush1.xpose.msra.mxu0 0.0
    %3279 = vmatprep.subr.mxu0 0.0
    %3280 = vmatpush1.xpose.msra.mxu0 0.0
    %3281 = vmatprep.subr.mxu0 0.0
    %3282 = vmatpush1.xpose.msra.mxu0 0.0
    %3283 = vmatprep.subr.mxu0 0.0
    %3284 = vmatpush1.xpose.msra.mxu0 0.0
    %3285 = vmatprep.subr.mxu0 0.0
    %3286 = vmatpush1.xpose.msra.mxu0 0.0
    %3287 = vmatprep.subr.mxu0 0.0
    %3288 = vmatpush1.xpose.msra.mxu0 0.0
    %3289 = vmatprep.subr.mxu0 0.0
    %3290 = vmatpush1.xpose.msra.mxu0 0.0
    %3291 = vmatprep.subr.mxu0 0.0
    %3292 = vmatpush1.xpose.msra.mxu0 0.0
    %3293 = vmatprep.subr.mxu0 0.0
    %3294 = vmatpush1.xpose.msra.mxu0 0.0
    %3295 = vmatprep.mubr.f32.mxu0 0.0
    %3296 = vmatmul.mubr.f32.gmra.mrb[0].mxu0 %v3227
    %v3297 = vpop.f32.mrb[0].mxu0
    %v3298 = vadd.f32 0.0, %v3297
    %v3299 = vpop.f32.mrb[0].mxu0
    %3300 = vdwg.mxu0
    %3301 = vrot.lane.b32.xlu0 %v230, 112
    %v3302 = vpop.permute.xlu0 %3301
    %3303 = vrot.lane.b32.xlu0 %v370, 112
    %v3304 = vpop.permute.xlu0 %3303
    %v3305 = vsel %vm393, %v3302, 0
    %v3307 = vsel %vm393, %v3304, 0
    %3309 = vmatprep.subr.mxu0 0.0
    %3310 = vmatpush1.xpose.msra.mxu0 %v3307
    %3311 = vmatprep.subr.mxu0 0.0
    %3312 = vmatpush1.xpose.msra.mxu0 0.0
    %3313 = vmatprep.subr.mxu0 0.0
    %3314 = vmatpush1.xpose.msra.mxu0 0.0
    %3315 = vmatprep.subr.mxu0 0.0
    %3316 = vmatpush1.xpose.msra.mxu0 0.0
    %3317 = vmatprep.subr.mxu0 0.0
    %3318 = vmatpush1.xpose.msra.mxu0 0.0
    %3319 = vmatprep.subr.mxu0 0.0
    %3320 = vmatpush1.xpose.msra.mxu0 0.0
    %3321 = vmatprep.subr.mxu0 0.0
    %3322 = vmatpush1.xpose.msra.mxu0 0.0
    %3323 = vmatprep.subr.mxu0 0.0
    %3324 = vmatpush1.xpose.msra.mxu0 0.0
    %3325 = vmatprep.subr.mxu0 0.0
    %3326 = vmatpush1.xpose.msra.mxu0 0.0
    %3327 = vmatprep.subr.mxu0 0.0
    %3328 = vmatpush1.xpose.msra.mxu0 0.0
    %3329 = vmatprep.subr.mxu0 0.0
    %3330 = vmatpush1.xpose.msra.mxu0 0.0
    %3331 = vmatprep.subr.mxu0 0.0
    %3332 = vmatpush1.xpose.msra.mxu0 0.0
    %3333 = vmatprep.subr.mxu0 0.0
    %3334 = vmatpush1.xpose.msra.mxu0 0.0
    %3335 = vmatprep.subr.mxu0 0.0
    %3336 = vmatpush1.xpose.msra.mxu0 0.0
    %3337 = vmatprep.subr.mxu0 0.0
    %3338 = vmatpush1.xpose.msra.mxu0 0.0
    %3339 = vmatprep.subr.mxu0 0.0
    %3340 = vmatpush1.xpose.msra.mxu0 0.0
    %3341 = vmatprep.subr.mxu0 0.0
    %3342 = vmatpush1.xpose.msra.mxu0 0.0
    %3343 = vmatprep.subr.mxu0 0.0
    %3344 = vmatpush1.xpose.msra.mxu0 0.0
    %3345 = vmatprep.subr.mxu0 0.0
    %3346 = vmatpush1.xpose.msra.mxu0 0.0
    %3347 = vmatprep.subr.mxu0 0.0
    %3348 = vmatpush1.xpose.msra.mxu0 0.0
    %3349 = vmatprep.subr.mxu0 0.0
    %3350 = vmatpush1.xpose.msra.mxu0 0.0
    %3351 = vmatprep.subr.mxu0 0.0
    %3352 = vmatpush1.xpose.msra.mxu0 0.0
    %3353 = vmatprep.subr.mxu0 0.0
    %3354 = vmatpush1.xpose.msra.mxu0 0.0
    %3355 = vmatprep.subr.mxu0 0.0
    %3356 = vmatpush1.xpose.msra.mxu0 0.0
    %3357 = vmatprep.subr.mxu0 0.0
    %3358 = vmatpush1.xpose.msra.mxu0 0.0
    %3359 = vmatprep.subr.mxu0 0.0
    %3360 = vmatpush1.xpose.msra.mxu0 0.0
    %3361 = vmatprep.subr.mxu0 0.0
    %3362 = vmatpush1.xpose.msra.mxu0 0.0
    %3363 = vmatprep.subr.mxu0 0.0
    %3364 = vmatpush1.xpose.msra.mxu0 0.0
    %3365 = vmatprep.subr.mxu0 0.0
    %3366 = vmatpush1.xpose.msra.mxu0 0.0
    %3367 = vmatprep.subr.mxu0 0.0
    %3368 = vmatpush1.xpose.msra.mxu0 0.0
    %3369 = vmatprep.subr.mxu0 0.0
    %3370 = vmatpush1.xpose.msra.mxu0 0.0
    %3371 = vmatprep.subr.mxu0 0.0
    %3372 = vmatpush1.xpose.msra.mxu0 0.0
    %3373 = vmatprep.mubr.f32.mxu0 0.0
    %3374 = vmatmul.mubr.f32.gmra.mrb[0].mxu0 %v3305
    %v3375 = vpop.f32.mrb[0].mxu0
    %v3376 = vadd.f32 0.0, %v3375
    %v3377 = vpop.f32.mrb[0].mxu0
    %3378 = vdwg.mxu0
    %3379 = vrot.lane.b32.xlu0 %v235, 112
    %v3380 = vpop.permute.xlu0 %3379
    %3381 = vrot.lane.b32.xlu0 %v375, 112
    %v3382 = vpop.permute.xlu0 %3381
    %v3383 = vsel %vm393, %v3380, 0
    %v3385 = vsel %vm393, %v3382, 0
    %3387 = vmatprep.subr.mxu0 0.0
    %3388 = vmatpush1.xpose.msra.mxu0 %v3385
    %3389 = vmatprep.subr.mxu0 0.0
    %3390 = vmatpush1.xpose.msra.mxu0 0.0
    %3391 = vmatprep.subr.mxu0 0.0
    %3392 = vmatpush1.xpose.msra.mxu0 0.0
    %3393 = vmatprep.subr.mxu0 0.0
    %3394 = vmatpush1.xpose.msra.mxu0 0.0
    %3395 = vmatprep.subr.mxu0 0.0
    %3396 = vmatpush1.xpose.msra.mxu0 0.0
    %3397 = vmatprep.subr.mxu0 0.0
    %3398 = vmatpush1.xpose.msra.mxu0 0.0
    %3399 = vmatprep.subr.mxu0 0.0
    %3400 = vmatpush1.xpose.msra.mxu0 0.0
    %3401 = vmatprep.subr.mxu0 0.0
    %3402 = vmatpush1.xpose.msra.mxu0 0.0
    %3403 = vmatprep.subr.mxu0 0.0
    %3404 = vmatpush1.xpose.msra.mxu0 0.0
    %3405 = vmatprep.subr.mxu0 0.0
    %3406 = vmatpush1.xpose.msra.mxu0 0.0
    %3407 = vmatprep.subr.mxu0 0.0
    %3408 = vmatpush1.xpose.msra.mxu0 0.0
    %3409 = vmatprep.subr.mxu0 0.0
    %3410 = vmatpush1.xpose.msra.mxu0 0.0
    %3411 = vmatprep.subr.mxu0 0.0
    %3412 = vmatpush1.xpose.msra.mxu0 0.0
    %3413 = vmatprep.subr.mxu0 0.0
    %3414 = vmatpush1.xpose.msra.mxu0 0.0
    %3415 = vmatprep.subr.mxu0 0.0
    %3416 = vmatpush1.xpose.msra.mxu0 0.0
    %3417 = vmatprep.subr.mxu0 0.0
    %3418 = vmatpush1.xpose.msra.mxu0 0.0
    %3419 = vmatprep.subr.mxu0 0.0
    %3420 = vmatpush1.xpose.msra.mxu0 0.0
    %3421 = vmatprep.subr.mxu0 0.0
    %3422 = vmatpush1.xpose.msra.mxu0 0.0
    %3423 = vmatprep.subr.mxu0 0.0
    %3424 = vmatpush1.xpose.msra.mxu0 0.0
    %3425 = vmatprep.subr.mxu0 0.0
    %3426 = vmatpush1.xpose.msra.mxu0 0.0
    %3427 = vmatprep.subr.mxu0 0.0
    %3428 = vmatpush1.xpose.msra.mxu0 0.0
    %3429 = vmatprep.subr.mxu0 0.0
    %3430 = vmatpush1.xpose.msra.mxu0 0.0
    %3431 = vmatprep.subr.mxu0 0.0
    %3432 = vmatpush1.xpose.msra.mxu0 0.0
    %3433 = vmatprep.subr.mxu0 0.0
    %3434 = vmatpush1.xpose.msra.mxu0 0.0
    %3435 = vmatprep.subr.mxu0 0.0
    %3436 = vmatpush1.xpose.msra.mxu0 0.0
    %3437 = vmatprep.subr.mxu0 0.0
    %3438 = vmatpush1.xpose.msra.mxu0 0.0
    %3439 = vmatprep.subr.mxu0 0.0
    %3440 = vmatpush1.xpose.msra.mxu0 0.0
    %3441 = vmatprep.subr.mxu0 0.0
    %3442 = vmatpush1.xpose.msra.mxu0 0.0
    %3443 = vmatprep.subr.mxu0 0.0
    %3444 = vmatpush1.xpose.msra.mxu0 0.0
    %3445 = vmatprep.subr.mxu0 0.0
    %3446 = vmatpush1.xpose.msra.mxu0 0.0
    %3447 = vmatprep.subr.mxu0 0.0
    %3448 = vmatpush1.xpose.msra.mxu0 0.0
    %3449 = vmatprep.subr.mxu0 0.0
    %3450 = vmatpush1.xpose.msra.mxu0 0.0
    %3451 = vmatprep.mubr.f32.mxu0 0.0
    %3452 = vmatmul.mubr.f32.gmra.mrb[0].mxu0 %v3383
    %v3453 = vpop.f32.mrb[0].mxu0
    %v3454 = vadd.f32 0.0, %v3453
    %v3455 = vpop.f32.mrb[0].mxu0
    %3456 = vdwg.mxu0
    %3457 = vrot.lane.b32.xlu0 %v240, 112
    %v3458 = vpop.permute.xlu0 %3457
    %3459 = vrot.lane.b32.xlu0 %v380, 112
    %v3460 = vpop.permute.xlu0 %3459
    %v3461 = vsel %vm393, %v3458, 0
    %v3463 = vsel %vm393, %v3460, 0
    %3465 = vmatprep.subr.mxu0 0.0
    %3466 = vmatpush1.xpose.msra.mxu0 %v3463
    %3467 = vmatprep.subr.mxu0 0.0
    %3468 = vmatpush1.xpose.msra.mxu0 0.0
    %3469 = vmatprep.subr.mxu0 0.0
    %3470 = vmatpush1.xpose.msra.mxu0 0.0
    %3471 = vmatprep.subr.mxu0 0.0
    %3472 = vmatpush1.xpose.msra.mxu0 0.0
    %3473 = vmatprep.subr.mxu0 0.0
    %3474 = vmatpush1.xpose.msra.mxu0 0.0
    %3475 = vmatprep.subr.mxu0 0.0
    %3476 = vmatpush1.xpose.msra.mxu0 0.0
    %3477 = vmatprep.subr.mxu0 0.0
    %3478 = vmatpush1.xpose.msra.mxu0 0.0
    %3479 = vmatprep.subr.mxu0 0.0
    %3480 = vmatpush1.xpose.msra.mxu0 0.0
    %3481 = vmatprep.subr.mxu0 0.0
    %3482 = vmatpush1.xpose.msra.mxu0 0.0
    %3483 = vmatprep.subr.mxu0 0.0
    %3484 = vmatpush1.xpose.msra.mxu0 0.0
    %3485 = vmatprep.subr.mxu0 0.0
    %3486 = vmatpush1.xpose.msra.mxu0 0.0
    %3487 = vmatprep.subr.mxu0 0.0
    %3488 = vmatpush1.xpose.msra.mxu0 0.0
    %3489 = vmatprep.subr.mxu0 0.0
    %3490 = vmatpush1.xpose.msra.mxu0 0.0
    %3491 = vmatprep.subr.mxu0 0.0
    %3492 = vmatpush1.xpose.msra.mxu0 0.0
    %3493 = vmatprep.subr.mxu0 0.0
    %3494 = vmatpush1.xpose.msra.mxu0 0.0
    %3495 = vmatprep.subr.mxu0 0.0
    %3496 = vmatpush1.xpose.msra.mxu0 0.0
    %3497 = vmatprep.subr.mxu0 0.0
    %3498 = vmatpush1.xpose.msra.mxu0 0.0
    %3499 = vmatprep.subr.mxu0 0.0
    %3500 = vmatpush1.xpose.msra.mxu0 0.0
    %3501 = vmatprep.subr.mxu0 0.0
    %3502 = vmatpush1.xpose.msra.mxu0 0.0
    %3503 = vmatprep.subr.mxu0 0.0
    %3504 = vmatpush1.xpose.msra.mxu0 0.0
    %3505 = vmatprep.subr.mxu0 0.0
    %3506 = vmatpush1.xpose.msra.mxu0 0.0
    %3507 = vmatprep.subr.mxu0 0.0
    %3508 = vmatpush1.xpose.msra.mxu0 0.0
    %3509 = vmatprep.subr.mxu0 0.0
    %3510 = vmatpush1.xpose.msra.mxu0 0.0
    %3511 = vmatprep.subr.mxu0 0.0
    %3512 = vmatpush1.xpose.msra.mxu0 0.0
    %3513 = vmatprep.subr.mxu0 0.0
    %3514 = vmatpush1.xpose.msra.mxu0 0.0
    %3515 = vmatprep.subr.mxu0 0.0
    %3516 = vmatpush1.xpose.msra.mxu0 0.0
    %3517 = vmatprep.subr.mxu0 0.0
    %3518 = vmatpush1.xpose.msra.mxu0 0.0
    %3519 = vmatprep.subr.mxu0 0.0
    %3520 = vmatpush1.xpose.msra.mxu0 0.0
    %3521 = vmatprep.subr.mxu0 0.0
    %3522 = vmatpush1.xpose.msra.mxu0 0.0
    %3523 = vmatprep.subr.mxu0 0.0
    %3524 = vmatpush1.xpose.msra.mxu0 0.0
    %3525 = vmatprep.subr.mxu0 0.0
    %3526 = vmatpush1.xpose.msra.mxu0 0.0
    %3527 = vmatprep.subr.mxu0 0.0
    %3528 = vmatpush1.xpose.msra.mxu0 0.0
    %3529 = vmatprep.mubr.f32.mxu0 0.0
    %3530 = vmatmul.mubr.f32.gmra.mrb[0].mxu0 %v3461
    %v3531 = vpop.f32.mrb[0].mxu0
    %v3532 = vadd.f32 0.0, %v3531
    %v3533 = vpop.f32.mrb[0].mxu0
    %3534 = vdwg.mxu0
    %3535 = vrot.lane.b32.xlu0 %v245, 112
    %v3536 = vpop.permute.xlu0 %3535
    %3537 = vrot.lane.b32.xlu0 %v385, 112
    %v3538 = vpop.permute.xlu0 %3537
    %v3539 = vsel %vm393, %v3536, 0
    %v3541 = vsel %vm393, %v3538, 0
    %3543 = vmatprep.subr.mxu0 0.0
    %3544 = vmatpush1.xpose.msra.mxu0 %v3541
    %3545 = vmatprep.subr.mxu0 0.0
    %3546 = vmatpush1.xpose.msra.mxu0 0.0
    %3547 = vmatprep.subr.mxu0 0.0
    %3548 = vmatpush1.xpose.msra.mxu0 0.0
    %3549 = vmatprep.subr.mxu0 0.0
    %3550 = vmatpush1.xpose.msra.mxu0 0.0
    %3551 = vmatprep.subr.mxu0 0.0
    %3552 = vmatpush1.xpose.msra.mxu0 0.0
    %3553 = vmatprep.subr.mxu0 0.0
    %3554 = vmatpush1.xpose.msra.mxu0 0.0
    %3555 = vmatprep.subr.mxu0 0.0
    %3556 = vmatpush1.xpose.msra.mxu0 0.0
    %3557 = vmatprep.subr.mxu0 0.0
    %3558 = vmatpush1.xpose.msra.mxu0 0.0
    %3559 = vmatprep.subr.mxu0 0.0
    %3560 = vmatpush1.xpose.msra.mxu0 0.0
    %3561 = vmatprep.subr.mxu0 0.0
    %3562 = vmatpush1.xpose.msra.mxu0 0.0
    %3563 = vmatprep.subr.mxu0 0.0
    %3564 = vmatpush1.xpose.msra.mxu0 0.0
    %3565 = vmatprep.subr.mxu0 0.0
    %3566 = vmatpush1.xpose.msra.mxu0 0.0
    %3567 = vmatprep.subr.mxu0 0.0
    %3568 = vmatpush1.xpose.msra.mxu0 0.0
    %3569 = vmatprep.subr.mxu0 0.0
    %3570 = vmatpush1.xpose.msra.mxu0 0.0
    %3571 = vmatprep.subr.mxu0 0.0
    %3572 = vmatpush1.xpose.msra.mxu0 0.0
    %3573 = vmatprep.subr.mxu0 0.0
    %3574 = vmatpush1.xpose.msra.mxu0 0.0
    %3575 = vmatprep.subr.mxu0 0.0
    %3576 = vmatpush1.xpose.msra.mxu0 0.0
    %3577 = vmatprep.subr.mxu0 0.0
    %3578 = vmatpush1.xpose.msra.mxu0 0.0
    %3579 = vmatprep.subr.mxu0 0.0
    %3580 = vmatpush1.xpose.msra.mxu0 0.0
    %3581 = vmatprep.subr.mxu0 0.0
    %3582 = vmatpush1.xpose.msra.mxu0 0.0
    %3583 = vmatprep.subr.mxu0 0.0
    %3584 = vmatpush1.xpose.msra.mxu0 0.0
    %3585 = vmatprep.subr.mxu0 0.0
    %3586 = vmatpush1.xpose.msra.mxu0 0.0
    %3587 = vmatprep.subr.mxu0 0.0
    %3588 = vmatpush1.xpose.msra.mxu0 0.0
    %3589 = vmatprep.subr.mxu0 0.0
    %3590 = vmatpush1.xpose.msra.mxu0 0.0
    %3591 = vmatprep.subr.mxu0 0.0
    %3592 = vmatpush1.xpose.msra.mxu0 0.0
    %3593 = vmatprep.subr.mxu0 0.0
    %3594 = vmatpush1.xpose.msra.mxu0 0.0
    %3595 = vmatprep.subr.mxu0 0.0
    %3596 = vmatpush1.xpose.msra.mxu0 0.0
    %3597 = vmatprep.subr.mxu0 0.0
    %3598 = vmatpush1.xpose.msra.mxu0 0.0
    %3599 = vmatprep.subr.mxu0 0.0
    %3600 = vmatpush1.xpose.msra.mxu0 0.0
    %3601 = vmatprep.subr.mxu0 0.0
    %3602 = vmatpush1.xpose.msra.mxu0 0.0
    %3603 = vmatprep.subr.mxu0 0.0
    %3604 = vmatpush1.xpose.msra.mxu0 0.0
    %3605 = vmatprep.subr.mxu0 0.0
    %3606 = vmatpush1.xpose.msra.mxu0 0.0
    %3607 = vmatprep.mubr.f32.mxu0 0.0
    %3608 = vmatmul.mubr.f32.gmra.mrb[0].mxu0 %v3539
    %v3609 = vpop.f32.mrb[0].mxu0
    %v3610 = vadd.f32 0.0, %v3609
    %v3611 = vpop.f32.mrb[0].mxu0
    %3612 = vdwg.mxu0
    %3613 = vrot.lane.b32.xlu0 %v250, 112
    %v3614 = vpop.permute.xlu0 %3613
    %3615 = vrot.lane.b32.xlu0 %v390, 112
    %v3616 = vpop.permute.xlu0 %3615
    %v3617 = vsel %vm393, %v3614, 0
    %v3619 = vsel %vm393, %v3616, 0
    %3621 = vmatprep.subr.mxu0 0.0
    %3622 = vmatpush1.xpose.msra.mxu0 %v3619
    %3623 = vmatprep.subr.mxu0 0.0
    %3624 = vmatpush1.xpose.msra.mxu0 0.0
    %3625 = vmatprep.subr.mxu0 0.0
    %3626 = vmatpush1.xpose.msra.mxu0 0.0
    %3627 = vmatprep.subr.mxu0 0.0
    %3628 = vmatpush1.xpose.msra.mxu0 0.0
    %3629 = vmatprep.subr.mxu0 0.0
    %3630 = vmatpush1.xpose.msra.mxu0 0.0
    %3631 = vmatprep.subr.mxu0 0.0
    %3632 = vmatpush1.xpose.msra.mxu0 0.0
    %3633 = vmatprep.subr.mxu0 0.0
    %3634 = vmatpush1.xpose.msra.mxu0 0.0
    %3635 = vmatprep.subr.mxu0 0.0
    %3636 = vmatpush1.xpose.msra.mxu0 0.0
    %3637 = vmatprep.subr.mxu0 0.0
    %3638 = vmatpush1.xpose.msra.mxu0 0.0
    %3639 = vmatprep.subr.mxu0 0.0
    %3640 = vmatpush1.xpose.msra.mxu0 0.0
    %3641 = vmatprep.subr.mxu0 0.0
    %3642 = vmatpush1.xpose.msra.mxu0 0.0
    %3643 = vmatprep.subr.mxu0 0.0
    %3644 = vmatpush1.xpose.msra.mxu0 0.0
    %3645 = vmatprep.subr.mxu0 0.0
    %3646 = vmatpush1.xpose.msra.mxu0 0.0
    %3647 = vmatprep.subr.mxu0 0.0
    %3648 = vmatpush1.xpose.msra.mxu0 0.0
    %3649 = vmatprep.subr.mxu0 0.0
    %3650 = vmatpush1.xpose.msra.mxu0 0.0
    %3651 = vmatprep.subr.mxu0 0.0
    %3652 = vmatpush1.xpose.msra.mxu0 0.0
    %3653 = vmatprep.subr.mxu0 0.0
    %3654 = vmatpush1.xpose.msra.mxu0 0.0
    %3655 = vmatprep.subr.mxu0 0.0
    %3656 = vmatpush1.xpose.msra.mxu0 0.0
    %3657 = vmatprep.subr.mxu0 0.0
    %3658 = vmatpush1.xpose.msra.mxu0 0.0
    %3659 = vmatprep.subr.mxu0 0.0
    %3660 = vmatpush1.xpose.msra.mxu0 0.0
    %3661 = vmatprep.subr.mxu0 0.0
    %3662 = vmatpush1.xpose.msra.mxu0 0.0
    %3663 = vmatprep.subr.mxu0 0.0
    %3664 = vmatpush1.xpose.msra.mxu0 0.0
    %3665 = vmatprep.subr.mxu0 0.0
    %3666 = vmatpush1.xpose.msra.mxu0 0.0
    %3667 = vmatprep.subr.mxu0 0.0
    %3668 = vmatpush1.xpose.msra.mxu0 0.0
    %3669 = vmatprep.subr.mxu0 0.0
    %3670 = vmatpush1.xpose.msra.mxu0 0.0
    %3671 = vmatprep.subr.mxu0 0.0
    %3672 = vmatpush1.xpose.msra.mxu0 0.0
    %3673 = vmatprep.subr.mxu0 0.0
    %3674 = vmatpush1.xpose.msra.mxu0 0.0
    %3675 = vmatprep.subr.mxu0 0.0
    %3676 = vmatpush1.xpose.msra.mxu0 0.0
    %3677 = vmatprep.subr.mxu0 0.0
    %3678 = vmatpush1.xpose.msra.mxu0 0.0
    %3679 = vmatprep.subr.mxu0 0.0
    %3680 = vmatpush1.xpose.msra.mxu0 0.0
    %3681 = vmatprep.subr.mxu0 0.0
    %3682 = vmatpush1.xpose.msra.mxu0 0.0
    %3683 = vmatprep.subr.mxu0 0.0
    %3684 = vmatpush1.xpose.msra.mxu0 0.0
    %3685 = vmatprep.mubr.f32.mxu0 0.0
    %3686 = vmatmul.mubr.f32.gmra.mrb[0].mxu0 %v3617
    %v3687 = vpop.f32.mrb[0].mxu0
    %v3688 = vadd.f32 0.0, %v3687
    %v3689 = vpop.f32.mrb[0].mxu0
    %3690 = vdwg.mxu0
    %v3691 = vsel %vm393, %v3142, -inf
    %3692 = vmax.xlane.f32.xlu0 %v3691
    %v3693 = vpop.xlane.xlu0 %3692
    %v3694 = vsel %vm393, %v3220, -inf
    %3695 = vmax.xlane.f32.xlu0 %v3694
    %v3696 = vpop.xlane.xlu0 %3695
    %v3697 = vsel %vm393, %v3298, -inf
    %3698 = vmax.xlane.f32.xlu0 %v3697
    %v3699 = vpop.xlane.xlu0 %3698
    %v3700 = vsel %vm393, %v3376, -inf
    %3701 = vmax.xlane.f32.xlu0 %v3700
    %v3702 = vpop.xlane.xlu0 %3701
    %v3703 = vsel %vm393, %v3454, -inf
    %3704 = vmax.xlane.f32.xlu0 %v3703
    %v3705 = vpop.xlane.xlu0 %3704
    %v3706 = vsel %vm393, %v3532, -inf
    %3707 = vmax.xlane.f32.xlu0 %v3706
    %v3708 = vpop.xlane.xlu0 %3707
    %v3709 = vsel %vm393, %v3610, -inf
    %3710 = vmax.xlane.f32.xlu0 %v3709
    %v3711 = vpop.xlane.xlu0 %3710
    %v3712 = vsel %vm393, %v3688, -inf
    %3713 = vmax.xlane.f32.xlu0 %v3712
    %v3714 = vpop.xlane.xlu0 %3713
    %v3715 = vsub.f32 %v3142, %v3693
    %v3716 = vsub.f32 %v3220, %v3696
    %v3717 = vsub.f32 %v3298, %v3699
    %v3718 = vsub.f32 %v3376, %v3702
    %v3719 = vsub.f32 %v3454, %v3705
    %v3720 = vsub.f32 %v3532, %v3708
    %v3721 = vsub.f32 %v3610, %v3711
    %v3722 = vsub.f32 %v3688, %v3714
    %v3723 = vmul.f32 %v3715, 1.442695
    %v3724 = vpow.pop %v3723
    %v3725 = vmul.f32 %v3716, 1.442695
    %v3726 = vpow.pop %v3725
    %v3727 = vmul.f32 %v3717, 1.442695
    %v3728 = vpow.pop %v3727
    %v3729 = vmul.f32 %v3718, 1.442695
    %v3730 = vpow.pop %v3729
    %v3731 = vmul.f32 %v3719, 1.442695
    %v3732 = vpow.pop %v3731
    %v3733 = vmul.f32 %v3720, 1.442695
    %v3734 = vpow.pop %v3733
    %v3735 = vmul.f32 %v3721, 1.442695
    %v3736 = vpow.pop %v3735
    %v3737 = vmul.f32 %v3722, 1.442695
    %v3738 = vpow.pop %v3737
    %v3739 = vsel %vm393, %v3724, 0.0
    %3740 = vadd.xlane.f32.xlu0 %v3739
    %v3741 = vpop.xlane.xlu0 %3740
    %v3742 = vsel %vm393, %v3726, 0.0
    %3743 = vadd.xlane.f32.xlu0 %v3742
    %v3744 = vpop.xlane.xlu0 %3743
    %v3745 = vsel %vm393, %v3728, 0.0
    %3746 = vadd.xlane.f32.xlu0 %v3745
    %v3747 = vpop.xlane.xlu0 %3746
    %v3748 = vsel %vm393, %v3730, 0.0
    %3749 = vadd.xlane.f32.xlu0 %v3748
    %v3750 = vpop.xlane.xlu0 %3749
    %v3751 = vsel %vm393, %v3732, 0.0
    %3752 = vadd.xlane.f32.xlu0 %v3751
    %v3753 = vpop.xlane.xlu0 %3752
    %v3754 = vsel %vm393, %v3734, 0.0
    %3755 = vadd.xlane.f32.xlu0 %v3754
    %v3756 = vpop.xlane.xlu0 %3755
    %v3757 = vsel %vm393, %v3736, 0.0
    %3758 = vadd.xlane.f32.xlu0 %v3757
    %v3759 = vpop.xlane.xlu0 %3758
    %v3760 = vsel %vm393, %v3738, 0.0
    %3761 = vadd.xlane.f32.xlu0 %v3760
    %v3762 = vpop.xlane.xlu0 %3761
    %v3763 = vrcp.pop %v3741
    %v3764 = vrcp.pop %v3744
    %v3765 = vrcp.pop %v3747
    %v3766 = vrcp.pop %v3750
    %v3767 = vrcp.pop %v3753
    %v3768 = vrcp.pop %v3756
    %v3769 = vrcp.pop %v3759
    %v3770 = vrcp.pop %v3762
    %v3771 = vmul.f32 %v3724, %v3763
    %v3772 = vmul.f32 %v3726, %v3764
    %v3773 = vmul.f32 %v3728, %v3765
    %v3774 = vmul.f32 %v3730, %v3766
    %v3775 = vmul.f32 %v3732, %v3767
    %v3776 = vmul.f32 %v3734, %v3768
    %v3777 = vmul.f32 %v3736, %v3769
    %v3778 = vmul.f32 %v3738, %v3770
    %3779 = vrot.lane.b32.xlu0 %v355, 80
    %v3780 = vpop.permute.xlu0 %3779
    %v3783 = vsel %vm393, %v3771, 0
    %3785 = vmatprep.subr.mxu0 0.0
    %3786 = vmatpush1.msra.mxu0 %v3780
    %3787 = vmatprep.subr.mxu0 0.0
    %3788 = vmatpush1.msra.mxu0 0.0
    %3789 = vmatprep.subr.mxu0 0.0
    %3790 = vmatpush1.msra.mxu0 0.0
    %3791 = vmatprep.subr.mxu0 0.0
    %3792 = vmatpush1.msra.mxu0 0.0
    %3793 = vmatprep.subr.mxu0 0.0
    %3794 = vmatpush1.msra.mxu0 0.0
    %3795 = vmatprep.subr.mxu0 0.0
    %3796 = vmatpush1.msra.mxu0 0.0
    %3797 = vmatprep.subr.mxu0 0.0
    %3798 = vmatpush1.msra.mxu0 0.0
    %3799 = vmatprep.subr.mxu0 0.0
    %3800 = vmatpush1.msra.mxu0 0.0
    %3801 = vmatprep.subr.mxu0 0.0
    %3802 = vmatpush1.msra.mxu0 0.0
    %3803 = vmatprep.subr.mxu0 0.0
    %3804 = vmatpush1.msra.mxu0 0.0
    %3805 = vmatprep.subr.mxu0 0.0
    %3806 = vmatpush1.msra.mxu0 0.0
    %3807 = vmatprep.subr.mxu0 0.0
    %3808 = vmatpush1.msra.mxu0 0.0
    %3809 = vmatprep.subr.mxu0 0.0
    %3810 = vmatpush1.msra.mxu0 0.0
    %3811 = vmatprep.subr.mxu0 0.0
    %3812 = vmatpush1.msra.mxu0 0.0
    %3813 = vmatprep.subr.mxu0 0.0
    %3814 = vmatpush1.msra.mxu0 0.0
    %3815 = vmatprep.subr.mxu0 0.0
    %3816 = vmatpush1.msra.mxu0 0.0
    %3817 = vmatprep.subr.mxu0 0.0
    %3818 = vmatpush1.msra.mxu0 0.0
    %3819 = vmatprep.subr.mxu0 0.0
    %3820 = vmatpush1.msra.mxu0 0.0
    %3821 = vmatprep.subr.mxu0 0.0
    %3822 = vmatpush1.msra.mxu0 0.0
    %3823 = vmatprep.subr.mxu0 0.0
    %3824 = vmatpush1.msra.mxu0 0.0
    %3825 = vmatprep.subr.mxu0 0.0
    %3826 = vmatpush1.msra.mxu0 0.0
    %3827 = vmatprep.subr.mxu0 0.0
    %3828 = vmatpush1.msra.mxu0 0.0
    %3829 = vmatprep.subr.mxu0 0.0
    %3830 = vmatpush1.msra.mxu0 0.0
    %3831 = vmatprep.subr.mxu0 0.0
    %3832 = vmatpush1.msra.mxu0 0.0
    %3833 = vmatprep.subr.mxu0 0.0
    %3834 = vmatpush1.msra.mxu0 0.0
    %3835 = vmatprep.subr.mxu0 0.0
    %3836 = vmatpush1.msra.mxu0 0.0
    %3837 = vmatprep.subr.mxu0 0.0
    %3838 = vmatpush1.msra.mxu0 0.0
    %3839 = vmatprep.subr.mxu0 0.0
    %3840 = vmatpush1.msra.mxu0 0.0
    %3841 = vmatprep.subr.mxu0 0.0
    %3842 = vmatpush1.msra.mxu0 0.0
    %3843 = vmatprep.subr.mxu0 0.0
    %3844 = vmatpush1.msra.mxu0 0.0
    %3845 = vmatprep.subr.mxu0 0.0
    %3846 = vmatpush1.msra.mxu0 0.0
    %3847 = vmatprep.subr.mxu0 0.0
    %3848 = vmatpush1.msra.mxu0 0.0
    %3849 = vmatprep.mubr.f32.mxu0 0.0
    %3850 = vmatmul.mubr.f32.gmra.mrb[0].mxu0 %v3783
    %v3851 = vpop.f32.mrb[0].mxu0
    %v3852 = vadd.f32 0.0, %v3851
    %v3853 = vpop.f32.mrb[0].mxu0
    %3854 = vdwg.mxu0
    %3855 = vrot.lane.b32.xlu0 %v360, 80
    %v3856 = vpop.permute.xlu0 %3855
    %v3859 = vsel %vm393, %v3772, 0
    %3861 = vmatprep.subr.mxu0 0.0
    %3862 = vmatpush1.msra.mxu0 %v3856
    %3863 = vmatprep.subr.mxu0 0.0
    %3864 = vmatpush1.msra.mxu0 0.0
    %3865 = vmatprep.subr.mxu0 0.0
    %3866 = vmatpush1.msra.mxu0 0.0
    %3867 = vmatprep.subr.mxu0 0.0
    %3868 = vmatpush1.msra.mxu0 0.0
    %3869 = vmatprep.subr.mxu0 0.0
    %3870 = vmatpush1.msra.mxu0 0.0
    %3871 = vmatprep.subr.mxu0 0.0
    %3872 = vmatpush1.msra.mxu0 0.0
    %3873 = vmatprep.subr.mxu0 0.0
    %3874 = vmatpush1.msra.mxu0 0.0
    %3875 = vmatprep.subr.mxu0 0.0
    %3876 = vmatpush1.msra.mxu0 0.0
    %3877 = vmatprep.subr.mxu0 0.0
    %3878 = vmatpush1.msra.mxu0 0.0
    %3879 = vmatprep.subr.mxu0 0.0
    %3880 = vmatpush1.msra.mxu0 0.0
    %3881 = vmatprep.subr.mxu0 0.0
    %3882 = vmatpush1.msra.mxu0 0.0
    %3883 = vmatprep.subr.mxu0 0.0
    %3884 = vmatpush1.msra.mxu0 0.0
    %3885 = vmatprep.subr.mxu0 0.0
    %3886 = vmatpush1.msra.mxu0 0.0
    %3887 = vmatprep.subr.mxu0 0.0
    %3888 = vmatpush1.msra.mxu0 0.0
    %3889 = vmatprep.subr.mxu0 0.0
    %3890 = vmatpush1.msra.mxu0 0.0
    %3891 = vmatprep.subr.mxu0 0.0
    %3892 = vmatpush1.msra.mxu0 0.0
    %3893 = vmatprep.subr.mxu0 0.0
    %3894 = vmatpush1.msra.mxu0 0.0
    %3895 = vmatprep.subr.mxu0 0.0
    %3896 = vmatpush1.msra.mxu0 0.0
    %3897 = vmatprep.subr.mxu0 0.0
    %3898 = vmatpush1.msra.mxu0 0.0
    %3899 = vmatprep.subr.mxu0 0.0
    %3900 = vmatpush1.msra.mxu0 0.0
    %3901 = vmatprep.subr.mxu0 0.0
    %3902 = vmatpush1.msra.mxu0 0.0
    %3903 = vmatprep.subr.mxu0 0.0
    %3904 = vmatpush1.msra.mxu0 0.0
    %3905 = vmatprep.subr.mxu0 0.0
    %3906 = vmatpush1.msra.mxu0 0.0
    %3907 = vmatprep.subr.mxu0 0.0
    %3908 = vmatpush1.msra.mxu0 0.0
    %3909 = vmatprep.subr.mxu0 0.0
    %3910 = vmatpush1.msra.mxu0 0.0
    %3911 = vmatprep.subr.mxu0 0.0
    %3912 = vmatpush1.msra.mxu0 0.0
    %3913 = vmatprep.subr.mxu0 0.0
    %3914 = vmatpush1.msra.mxu0 0.0
    %3915 = vmatprep.subr.mxu0 0.0
    %3916 = vmatpush1.msra.mxu0 0.0
    %3917 = vmatprep.subr.mxu0 0.0
    %3918 = vmatpush1.msra.mxu0 0.0
    %3919 = vmatprep.subr.mxu0 0.0
    %3920 = vmatpush1.msra.mxu0 0.0
    %3921 = vmatprep.subr.mxu0 0.0
    %3922 = vmatpush1.msra.mxu0 0.0
    %3923 = vmatprep.subr.mxu0 0.0
    %3924 = vmatpush1.msra.mxu0 0.0
    %3925 = vmatprep.mubr.f32.mxu0 0.0
    %3926 = vmatmul.mubr.f32.gmra.mrb[0].mxu0 %v3859
    %v3927 = vpop.f32.mrb[0].mxu0
    %v3928 = vadd.f32 0.0, %v3927
    %v3929 = vpop.f32.mrb[0].mxu0
    %3930 = vdwg.mxu0
    %3931 = vrot.lane.b32.xlu0 %v365, 80
    %v3932 = vpop.permute.xlu0 %3931
    %v3935 = vsel %vm393, %v3773, 0
    %3937 = vmatprep.subr.mxu0 0.0
    %3938 = vmatpush1.msra.mxu0 %v3932
    %3939 = vmatprep.subr.mxu0 0.0
    %3940 = vmatpush1.msra.mxu0 0.0
    %3941 = vmatprep.subr.mxu0 0.0
    %3942 = vmatpush1.msra.mxu0 0.0
    %3943 = vmatprep.subr.mxu0 0.0
    %3944 = vmatpush1.msra.mxu0 0.0
    %3945 = vmatprep.subr.mxu0 0.0
    %3946 = vmatpush1.msra.mxu0 0.0
    %3947 = vmatprep.subr.mxu0 0.0
    %3948 = vmatpush1.msra.mxu0 0.0
    %3949 = vmatprep.subr.mxu0 0.0
    %3950 = vmatpush1.msra.mxu0 0.0
    %3951 = vmatprep.subr.mxu0 0.0
    %3952 = vmatpush1.msra.mxu0 0.0
    %3953 = vmatprep.subr.mxu0 0.0
    %3954 = vmatpush1.msra.mxu0 0.0
    %3955 = vmatprep.subr.mxu0 0.0
    %3956 = vmatpush1.msra.mxu0 0.0
    %3957 = vmatprep.subr.mxu0 0.0
    %3958 = vmatpush1.msra.mxu0 0.0
    %3959 = vmatprep.subr.mxu0 0.0
    %3960 = vmatpush1.msra.mxu0 0.0
    %3961 = vmatprep.subr.mxu0 0.0
    %3962 = vmatpush1.msra.mxu0 0.0
    %3963 = vmatprep.subr.mxu0 0.0
    %3964 = vmatpush1.msra.mxu0 0.0
    %3965 = vmatprep.subr.mxu0 0.0
    %3966 = vmatpush1.msra.mxu0 0.0
    %3967 = vmatprep.subr.mxu0 0.0
    %3968 = vmatpush1.msra.mxu0 0.0
    %3969 = vmatprep.subr.mxu0 0.0
    %3970 = vmatpush1.msra.mxu0 0.0
    %3971 = vmatprep.subr.mxu0 0.0
    %3972 = vmatpush1.msra.mxu0 0.0
    %3973 = vmatprep.subr.mxu0 0.0
    %3974 = vmatpush1.msra.mxu0 0.0
    %3975 = vmatprep.subr.mxu0 0.0
    %3976 = vmatpush1.msra.mxu0 0.0
    %3977 = vmatprep.subr.mxu0 0.0
    %3978 = vmatpush1.msra.mxu0 0.0
    %3979 = vmatprep.subr.mxu0 0.0
    %3980 = vmatpush1.msra.mxu0 0.0
    %3981 = vmatprep.subr.mxu0 0.0
    %3982 = vmatpush1.msra.mxu0 0.0
    %3983 = vmatprep.subr.mxu0 0.0
    %3984 = vmatpush1.msra.mxu0 0.0
    %3985 = vmatprep.subr.mxu0 0.0
    %3986 = vmatpush1.msra.mxu0 0.0
    %3987 = vmatprep.subr.mxu0 0.0
    %3988 = vmatpush1.msra.mxu0 0.0
    %3989 = vmatprep.subr.mxu0 0.0
    %3990 = vmatpush1.msra.mxu0 0.0
    %3991 = vmatprep.subr.mxu0 0.0
    %3992 = vmatpush1.msra.mxu0 0.0
    %3993 = vmatprep.subr.mxu0 0.0
    %3994 = vmatpush1.msra.mxu0 0.0
    %3995 = vmatprep.subr.mxu0 0.0
    %3996 = vmatpush1.msra.mxu0 0.0
    %3997 = vmatprep.subr.mxu0 0.0
    %3998 = vmatpush1.msra.mxu0 0.0
    %3999 = vmatprep.subr.mxu0 0.0
    %4000 = vmatpush1.msra.mxu0 0.0
    %4001 = vmatprep.mubr.f32.mxu0 0.0
    %4002 = vmatmul.mubr.f32.gmra.mrb[0].mxu0 %v3935
    %v4003 = vpop.f32.mrb[0].mxu0
    %v4004 = vadd.f32 0.0, %v4003
    %v4005 = vpop.f32.mrb[0].mxu0
    %4006 = vdwg.mxu0
    %4007 = vrot.lane.b32.xlu0 %v370, 80
    %v4008 = vpop.permute.xlu0 %4007
    %v4011 = vsel %vm393, %v3774, 0
    %4013 = vmatprep.subr.mxu0 0.0
    %4014 = vmatpush1.msra.mxu0 %v4008
    %4015 = vmatprep.subr.mxu0 0.0
    %4016 = vmatpush1.msra.mxu0 0.0
    %4017 = vmatprep.subr.mxu0 0.0
    %4018 = vmatpush1.msra.mxu0 0.0
    %4019 = vmatprep.subr.mxu0 0.0
    %4020 = vmatpush1.msra.mxu0 0.0
    %4021 = vmatprep.subr.mxu0 0.0
    %4022 = vmatpush1.msra.mxu0 0.0
    %4023 = vmatprep.subr.mxu0 0.0
    %4024 = vmatpush1.msra.mxu0 0.0
    %4025 = vmatprep.subr.mxu0 0.0
    %4026 = vmatpush1.msra.mxu0 0.0
    %4027 = vmatprep.subr.mxu0 0.0
    %4028 = vmatpush1.msra.mxu0 0.0
    %4029 = vmatprep.subr.mxu0 0.0
    %4030 = vmatpush1.msra.mxu0 0.0
    %4031 = vmatprep.subr.mxu0 0.0
    %4032 = vmatpush1.msra.mxu0 0.0
    %4033 = vmatprep.subr.mxu0 0.0
    %4034 = vmatpush1.msra.mxu0 0.0
    %4035 = vmatprep.subr.mxu0 0.0
    %4036 = vmatpush1.msra.mxu0 0.0
    %4037 = vmatprep.subr.mxu0 0.0
    %4038 = vmatpush1.msra.mxu0 0.0
    %4039 = vmatprep.subr.mxu0 0.0
    %4040 = vmatpush1.msra.mxu0 0.0
    %4041 = vmatprep.subr.mxu0 0.0
    %4042 = vmatpush1.msra.mxu0 0.0
    %4043 = vmatprep.subr.mxu0 0.0
    %4044 = vmatpush1.msra.mxu0 0.0
    %4045 = vmatprep.subr.mxu0 0.0
    %4046 = vmatpush1.msra.mxu0 0.0
    %4047 = vmatprep.subr.mxu0 0.0
    %4048 = vmatpush1.msra.mxu0 0.0
    %4049 = vmatprep.subr.mxu0 0.0
    %4050 = vmatpush1.msra.mxu0 0.0
    %4051 = vmatprep.subr.mxu0 0.0
    %4052 = vmatpush1.msra.mxu0 0.0
    %4053 = vmatprep.subr.mxu0 0.0
    %4054 = vmatpush1.msra.mxu0 0.0
    %4055 = vmatprep.subr.mxu0 0.0
    %4056 = vmatpush1.msra.mxu0 0.0
    %4057 = vmatprep.subr.mxu0 0.0
    %4058 = vmatpush1.msra.mxu0 0.0
    %4059 = vmatprep.subr.mxu0 0.0
    %4060 = vmatpush1.msra.mxu0 0.0
    %4061 = vmatprep.subr.mxu0 0.0
    %4062 = vmatpush1.msra.mxu0 0.0
    %4063 = vmatprep.subr.mxu0 0.0
    %4064 = vmatpush1.msra.mxu0 0.0
    %4065 = vmatprep.subr.mxu0 0.0
    %4066 = vmatpush1.msra.mxu0 0.0
    %4067 = vmatprep.subr.mxu0 0.0
    %4068 = vmatpush1.msra.mxu0 0.0
    %4069 = vmatprep.subr.mxu0 0.0
    %4070 = vmatpush1.msra.mxu0 0.0
    %4071 = vmatprep.subr.mxu0 0.0
    %4072 = vmatpush1.msra.mxu0 0.0
    %4073 = vmatprep.subr.mxu0 0.0
    %4074 = vmatpush1.msra.mxu0 0.0
    %4075 = vmatprep.subr.mxu0 0.0
    %4076 = vmatpush1.msra.mxu0 0.0
    %4077 = vmatprep.mubr.f32.mxu0 0.0
    %4078 = vmatmul.mubr.f32.gmra.mrb[0].mxu0 %v4011
    %v4079 = vpop.f32.mrb[0].mxu0
    %v4080 = vadd.f32 0.0, %v4079
    %v4081 = vpop.f32.mrb[0].mxu0
    %4082 = vdwg.mxu0
    %4083 = vrot.lane.b32.xlu0 %v375, 80
    %v4084 = vpop.permute.xlu0 %4083
    %v4087 = vsel %vm393, %v3775, 0
    %4089 = vmatprep.subr.mxu0 0.0
    %4090 = vmatpush1.msra.mxu0 %v4084
    %4091 = vmatprep.subr.mxu0 0.0
    %4092 = vmatpush1.msra.mxu0 0.0
    %4093 = vmatprep.subr.mxu0 0.0
    %4094 = vmatpush1.msra.mxu0 0.0
    %4095 = vmatprep.subr.mxu0 0.0
    %4096 = vmatpush1.msra.mxu0 0.0
    %4097 = vmatprep.subr.mxu0 0.0
    %4098 = vmatpush1.msra.mxu0 0.0
    %4099 = vmatprep.subr.mxu0 0.0
    %4100 = vmatpush1.msra.mxu0 0.0
    %4101 = vmatprep.subr.mxu0 0.0
    %4102 = vmatpush1.msra.mxu0 0.0
    %4103 = vmatprep.subr.mxu0 0.0
    %4104 = vmatpush1.msra.mxu0 0.0
    %4105 = vmatprep.subr.mxu0 0.0
    %4106 = vmatpush1.msra.mxu0 0.0
    %4107 = vmatprep.subr.mxu0 0.0
    %4108 = vmatpush1.msra.mxu0 0.0
    %4109 = vmatprep.subr.mxu0 0.0
    %4110 = vmatpush1.msra.mxu0 0.0
    %4111 = vmatprep.subr.mxu0 0.0
    %4112 = vmatpush1.msra.mxu0 0.0
    %4113 = vmatprep.subr.mxu0 0.0
    %4114 = vmatpush1.msra.mxu0 0.0
    %4115 = vmatprep.subr.mxu0 0.0
    %4116 = vmatpush1.msra.mxu0 0.0
    %4117 = vmatprep.subr.mxu0 0.0
    %4118 = vmatpush1.msra.mxu0 0.0
    %4119 = vmatprep.subr.mxu0 0.0
    %4120 = vmatpush1.msra.mxu0 0.0
    %4121 = vmatprep.subr.mxu0 0.0
    %4122 = vmatpush1.msra.mxu0 0.0
    %4123 = vmatprep.subr.mxu0 0.0
    %4124 = vmatpush1.msra.mxu0 0.0
    %4125 = vmatprep.subr.mxu0 0.0
    %4126 = vmatpush1.msra.mxu0 0.0
    %4127 = vmatprep.subr.mxu0 0.0
    %4128 = vmatpush1.msra.mxu0 0.0
    %4129 = vmatprep.subr.mxu0 0.0
    %4130 = vmatpush1.msra.mxu0 0.0
    %4131 = vmatprep.subr.mxu0 0.0
    %4132 = vmatpush1.msra.mxu0 0.0
    %4133 = vmatprep.subr.mxu0 0.0
    %4134 = vmatpush1.msra.mxu0 0.0
    %4135 = vmatprep.subr.mxu0 0.0
    %4136 = vmatpush1.msra.mxu0 0.0
    %4137 = vmatprep.subr.mxu0 0.0
    %4138 = vmatpush1.msra.mxu0 0.0
    %4139 = vmatprep.subr.mxu0 0.0
    %4140 = vmatpush1.msra.mxu0 0.0
    %4141 = vmatprep.subr.mxu0 0.0
    %4142 = vmatpush1.msra.mxu0 0.0
    %4143 = vmatprep.subr.mxu0 0.0
    %4144 = vmatpush1.msra.mxu0 0.0
    %4145 = vmatprep.subr.mxu0 0.0
    %4146 = vmatpush1.msra.mxu0 0.0
    %4147 = vmatprep.subr.mxu0 0.0
    %4148 = vmatpush1.msra.mxu0 0.0
    %4149 = vmatprep.subr.mxu0 0.0
    %4150 = vmatpush1.msra.mxu0 0.0
    %4151 = vmatprep.subr.mxu0 0.0
    %4152 = vmatpush1.msra.mxu0 0.0
    %4153 = vmatprep.mubr.f32.mxu0 0.0
    %4154 = vmatmul.mubr.f32.gmra.mrb[0].mxu0 %v4087
    %v4155 = vpop.f32.mrb[0].mxu0
    %v4156 = vadd.f32 0.0, %v4155
    %v4157 = vpop.f32.mrb[0].mxu0
    %4158 = vdwg.mxu0
    %4159 = vrot.lane.b32.xlu0 %v380, 80
    %v4160 = vpop.permute.xlu0 %4159
    %v4163 = vsel %vm393, %v3776, 0
    %4165 = vmatprep.subr.mxu0 0.0
    %4166 = vmatpush1.msra.mxu0 %v4160
    %4167 = vmatprep.subr.mxu0 0.0
    %4168 = vmatpush1.msra.mxu0 0.0
    %4169 = vmatprep.subr.mxu0 0.0
    %4170 = vmatpush1.msra.mxu0 0.0
    %4171 = vmatprep.subr.mxu0 0.0
    %4172 = vmatpush1.msra.mxu0 0.0
    %4173 = vmatprep.subr.mxu0 0.0
    %4174 = vmatpush1.msra.mxu0 0.0
    %4175 = vmatprep.subr.mxu0 0.0
    %4176 = vmatpush1.msra.mxu0 0.0
    %4177 = vmatprep.subr.mxu0 0.0
    %4178 = vmatpush1.msra.mxu0 0.0
    %4179 = vmatprep.subr.mxu0 0.0
    %4180 = vmatpush1.msra.mxu0 0.0
    %4181 = vmatprep.subr.mxu0 0.0
    %4182 = vmatpush1.msra.mxu0 0.0
    %4183 = vmatprep.subr.mxu0 0.0
    %4184 = vmatpush1.msra.mxu0 0.0
    %4185 = vmatprep.subr.mxu0 0.0
    %4186 = vmatpush1.msra.mxu0 0.0
    %4187 = vmatprep.subr.mxu0 0.0
    %4188 = vmatpush1.msra.mxu0 0.0
    %4189 = vmatprep.subr.mxu0 0.0
    %4190 = vmatpush1.msra.mxu0 0.0
    %4191 = vmatprep.subr.mxu0 0.0
    %4192 = vmatpush1.msra.mxu0 0.0
    %4193 = vmatprep.subr.mxu0 0.0
    %4194 = vmatpush1.msra.mxu0 0.0
    %4195 = vmatprep.subr.mxu0 0.0
    %4196 = vmatpush1.msra.mxu0 0.0
    %4197 = vmatprep.subr.mxu0 0.0
    %4198 = vmatpush1.msra.mxu0 0.0
    %4199 = vmatprep.subr.mxu0 0.0
    %4200 = vmatpush1.msra.mxu0 0.0
    %4201 = vmatprep.subr.mxu0 0.0
    %4202 = vmatpush1.msra.mxu0 0.0
    %4203 = vmatprep.subr.mxu0 0.0
    %4204 = vmatpush1.msra.mxu0 0.0
    %4205 = vmatprep.subr.mxu0 0.0
    %4206 = vmatpush1.msra.mxu0 0.0
    %4207 = vmatprep.subr.mxu0 0.0
    %4208 = vmatpush1.msra.mxu0 0.0
    %4209 = vmatprep.subr.mxu0 0.0
    %4210 = vmatpush1.msra.mxu0 0.0
    %4211 = vmatprep.subr.mxu0 0.0
    %4212 = vmatpush1.msra.mxu0 0.0
    %4213 = vmatprep.subr.mxu0 0.0
    %4214 = vmatpush1.msra.mxu0 0.0
    %4215 = vmatprep.subr.mxu0 0.0
    %4216 = vmatpush1.msra.mxu0 0.0
    %4217 = vmatprep.subr.mxu0 0.0
    %4218 = vmatpush1.msra.mxu0 0.0
    %4219 = vmatprep.subr.mxu0 0.0
    %4220 = vmatpush1.msra.mxu0 0.0
    %4221 = vmatprep.subr.mxu0 0.0
    %4222 = vmatpush1.msra.mxu0 0.0
    %4223 = vmatprep.subr.mxu0 0.0
    %4224 = vmatpush1.msra.mxu0 0.0
    %4225 = vmatprep.subr.mxu0 0.0
    %4226 = vmatpush1.msra.mxu0 0.0
    %4227 = vmatprep.subr.mxu0 0.0
    %4228 = vmatpush1.msra.mxu0 0.0
    %4229 = vmatprep.mubr.f32.mxu0 0.0
    %4230 = vmatmul.mubr.f32.gmra.mrb[0].mxu0 %v4163
    %v4231 = vpop.f32.mrb[0].mxu0
    %v4232 = vadd.f32 0.0, %v4231
    %v4233 = vpop.f32.mrb[0].mxu0
    %4234 = vdwg.mxu0
    %4235 = vrot.lane.b32.xlu0 %v385, 80
    %v4236 = vpop.permute.xlu0 %4235
    %v4239 = vsel %vm393, %v3777, 0
    %4241 = vmatprep.subr.mxu0 0.0
    %4242 = vmatpush1.msra.mxu0 %v4236
    %4243 = vmatprep.subr.mxu0 0.0
    %4244 = vmatpush1.msra.mxu0 0.0
    %4245 = vmatprep.subr.mxu0 0.0
    %4246 = vmatpush1.msra.mxu0 0.0
    %4247 = vmatprep.subr.mxu0 0.0
    %4248 = vmatpush1.msra.mxu0 0.0
    %4249 = vmatprep.subr.mxu0 0.0
    %4250 = vmatpush1.msra.mxu0 0.0
    %4251 = vmatprep.subr.mxu0 0.0
    %4252 = vmatpush1.msra.mxu0 0.0
    %4253 = vmatprep.subr.mxu0 0.0
    %4254 = vmatpush1.msra.mxu0 0.0
    %4255 = vmatprep.subr.mxu0 0.0
    %4256 = vmatpush1.msra.mxu0 0.0
    %4257 = vmatprep.subr.mxu0 0.0
    %4258 = vmatpush1.msra.mxu0 0.0
    %4259 = vmatprep.subr.mxu0 0.0
    %4260 = vmatpush1.msra.mxu0 0.0
    %4261 = vmatprep.subr.mxu0 0.0
    %4262 = vmatpush1.msra.mxu0 0.0
    %4263 = vmatprep.subr.mxu0 0.0
    %4264 = vmatpush1.msra.mxu0 0.0
    %4265 = vmatprep.subr.mxu0 0.0
    %4266 = vmatpush1.msra.mxu0 0.0
    %4267 = vmatprep.subr.mxu0 0.0
    %4268 = vmatpush1.msra.mxu0 0.0
    %4269 = vmatprep.subr.mxu0 0.0
    %4270 = vmatpush1.msra.mxu0 0.0
    %4271 = vmatprep.subr.mxu0 0.0
    %4272 = vmatpush1.msra.mxu0 0.0
    %4273 = vmatprep.subr.mxu0 0.0
    %4274 = vmatpush1.msra.mxu0 0.0
    %4275 = vmatprep.subr.mxu0 0.0
    %4276 = vmatpush1.msra.mxu0 0.0
    %4277 = vmatprep.subr.mxu0 0.0
    %4278 = vmatpush1.msra.mxu0 0.0
    %4279 = vmatprep.subr.mxu0 0.0
    %4280 = vmatpush1.msra.mxu0 0.0
    %4281 = vmatprep.subr.mxu0 0.0
    %4282 = vmatpush1.msra.mxu0 0.0
    %4283 = vmatprep.subr.mxu0 0.0
    %4284 = vmatpush1.msra.mxu0 0.0
    %4285 = vmatprep.subr.mxu0 0.0
    %4286 = vmatpush1.msra.mxu0 0.0
    %4287 = vmatprep.subr.mxu0 0.0
    %4288 = vmatpush1.msra.mxu0 0.0
    %4289 = vmatprep.subr.mxu0 0.0
    %4290 = vmatpush1.msra.mxu0 0.0
    %4291 = vmatprep.subr.mxu0 0.0
    %4292 = vmatpush1.msra.mxu0 0.0
    %4293 = vmatprep.subr.mxu0 0.0
    %4294 = vmatpush1.msra.mxu0 0.0
    %4295 = vmatprep.subr.mxu0 0.0
    %4296 = vmatpush1.msra.mxu0 0.0
    %4297 = vmatprep.subr.mxu0 0.0
    %4298 = vmatpush1.msra.mxu0 0.0
    %4299 = vmatprep.subr.mxu0 0.0
    %4300 = vmatpush1.msra.mxu0 0.0
    %4301 = vmatprep.subr.mxu0 0.0
    %4302 = vmatpush1.msra.mxu0 0.0
    %4303 = vmatprep.subr.mxu0 0.0
    %4304 = vmatpush1.msra.mxu0 0.0
    %4305 = vmatprep.mubr.f32.mxu0 0.0
    %4306 = vmatmul.mubr.f32.gmra.mrb[0].mxu0 %v4239
    %v4307 = vpop.f32.mrb[0].mxu0
    %v4308 = vadd.f32 0.0, %v4307
    %v4309 = vpop.f32.mrb[0].mxu0
    %4310 = vdwg.mxu0
    %4311 = vrot.lane.b32.xlu0 %v390, 80
    %v4312 = vpop.permute.xlu0 %4311
    %v4315 = vsel %vm393, %v3778, 0
    %4317 = vmatprep.subr.mxu0 0.0
    %4318 = vmatpush1.msra.mxu0 %v4312
    %4319 = vmatprep.subr.mxu0 0.0
    %4320 = vmatpush1.msra.mxu0 0.0
    %4321 = vmatprep.subr.mxu0 0.0
    %4322 = vmatpush1.msra.mxu0 0.0
    %4323 = vmatprep.subr.mxu0 0.0
    %4324 = vmatpush1.msra.mxu0 0.0
    %4325 = vmatprep.subr.mxu0 0.0
    %4326 = vmatpush1.msra.mxu0 0.0
    %4327 = vmatprep.subr.mxu0 0.0
    %4328 = vmatpush1.msra.mxu0 0.0
    %4329 = vmatprep.subr.mxu0 0.0
    %4330 = vmatpush1.msra.mxu0 0.0
    %4331 = vmatprep.subr.mxu0 0.0
    %4332 = vmatpush1.msra.mxu0 0.0
    %4333 = vmatprep.subr.mxu0 0.0
    %4334 = vmatpush1.msra.mxu0 0.0
    %4335 = vmatprep.subr.mxu0 0.0
    %4336 = vmatpush1.msra.mxu0 0.0
    %4337 = vmatprep.subr.mxu0 0.0
    %4338 = vmatpush1.msra.mxu0 0.0
    %4339 = vmatprep.subr.mxu0 0.0
    %4340 = vmatpush1.msra.mxu0 0.0
    %4341 = vmatprep.subr.mxu0 0.0
    %4342 = vmatpush1.msra.mxu0 0.0
    %4343 = vmatprep.subr.mxu0 0.0
    %4344 = vmatpush1.msra.mxu0 0.0
    %4345 = vmatprep.subr.mxu0 0.0
    %4346 = vmatpush1.msra.mxu0 0.0
    %4347 = vmatprep.subr.mxu0 0.0
    %4348 = vmatpush1.msra.mxu0 0.0
    %4349 = vmatprep.subr.mxu0 0.0
    %4350 = vmatpush1.msra.mxu0 0.0
    %4351 = vmatprep.subr.mxu0 0.0
    %4352 = vmatpush1.msra.mxu0 0.0
    %4353 = vmatprep.subr.mxu0 0.0
    %4354 = vmatpush1.msra.mxu0 0.0
    %4355 = vmatprep.subr.mxu0 0.0
    %4356 = vmatpush1.msra.mxu0 0.0
    %4357 = vmatprep.subr.mxu0 0.0
    %4358 = vmatpush1.msra.mxu0 0.0
    %4359 = vmatprep.subr.mxu0 0.0
    %4360 = vmatpush1.msra.mxu0 0.0
    %4361 = vmatprep.subr.mxu0 0.0
    %4362 = vmatpush1.msra.mxu0 0.0
    %4363 = vmatprep.subr.mxu0 0.0
    %4364 = vmatpush1.msra.mxu0 0.0
    %4365 = vmatprep.subr.mxu0 0.0
    %4366 = vmatpush1.msra.mxu0 0.0
    %4367 = vmatprep.subr.mxu0 0.0
    %4368 = vmatpush1.msra.mxu0 0.0
    %4369 = vmatprep.subr.mxu0 0.0
    %4370 = vmatpush1.msra.mxu0 0.0
    %4371 = vmatprep.subr.mxu0 0.0
    %4372 = vmatpush1.msra.mxu0 0.0
    %4373 = vmatprep.subr.mxu0 0.0
    %4374 = vmatpush1.msra.mxu0 0.0
    %4375 = vmatprep.subr.mxu0 0.0
    %4376 = vmatpush1.msra.mxu0 0.0
    %4377 = vmatprep.subr.mxu0 0.0
    %4378 = vmatpush1.msra.mxu0 0.0
    %4379 = vmatprep.subr.mxu0 0.0
    %4380 = vmatpush1.msra.mxu0 0.0
    %4381 = vmatprep.mubr.f32.mxu0 0.0
    %4382 = vmatmul.mubr.f32.gmra.mrb[0].mxu0 %v4315
    %v4383 = vpop.f32.mrb[0].mxu0
    %v4384 = vadd.f32 0.0, %v4383
    %v4385 = vpop.f32.mrb[0].mxu0
    %4386 = vdwg.mxu0
    %4395 = vrot.lane.b32.xlu0 %v3852, 16
    %v4396 = vpop.permute.xlu0 %4395
    %4397 = vrot.lane.b32.xlu0 %v3928, 16
    %v4398 = vpop.permute.xlu0 %4397
    %4399 = vrot.lane.b32.xlu0 %v4004, 16
    %v4400 = vpop.permute.xlu0 %4399
    %4401 = vrot.lane.b32.xlu0 %v4080, 16
    %v4402 = vpop.permute.xlu0 %4401
    %4403 = vrot.lane.b32.xlu0 %v4156, 16
    %v4404 = vpop.permute.xlu0 %4403
    %4405 = vrot.lane.b32.xlu0 %v4232, 16
    %v4406 = vpop.permute.xlu0 %4405
    %4407 = vrot.lane.b32.xlu0 %v4308, 16
    %v4408 = vpop.permute.xlu0 %4407
    %4409 = vrot.lane.b32.xlu0 %v4384, 16
    %v4410 = vpop.permute.xlu0 %4409
    %vm4419 = vcmask 195712
    %4420 = vst.msk [vmem:[#allocation2] sm:$0xff] %vm4419, %v4396
    %4421 = vst.msk [vmem:[#allocation2 + $0x8] sm:$0xff] %vm4419, %v4398
    %4422 = vst.msk [vmem:[#allocation2 + $0x10] sm:$0xff] %vm4419, %v4400
    %4423 = vst.msk [vmem:[#allocation2 + $0x18] sm:$0xff] %vm4419, %v4402
    %4424 = vst.msk [vmem:[#allocation2 + $0x20] sm:$0xff] %vm4419, %v4404
    %4425 = vst.msk [vmem:[#allocation2 + $0x28] sm:$0xff] %vm4419, %v4406
    %4426 = vst.msk [vmem:[#allocation2 + $0x30] sm:$0xff] %vm4419, %v4408
    %4427 = vst.msk [vmem:[#allocation2 + $0x38] sm:$0xff] %vm4419, %v4410
    %4428 = vrot.lane.b32.xlu0 %v215, 104
    %v4429 = vpop.permute.xlu0 %4428
    %4430 = vrot.lane.b32.xlu0 %v355, 104
    %v4431 = vpop.permute.xlu0 %4430
    %v4432 = vsel %vm393, %v4429, 0
    %v4434 = vsel %vm393, %v4431, 0
    %4436 = vmatprep.subr.mxu0 0.0
    %4437 = vmatpush1.xpose.msra.mxu0 %v4434
    %4438 = vmatprep.subr.mxu0 0.0
    %4439 = vmatpush1.xpose.msra.mxu0 0.0
    %4440 = vmatprep.subr.mxu0 0.0
    %4441 = vmatpush1.xpose.msra.mxu0 0.0
    %4442 = vmatprep.subr.mxu0 0.0
    %4443 = vmatpush1.xpose.msra.mxu0 0.0
    %4444 = vmatprep.subr.mxu0 0.0
    %4445 = vmatpush1.xpose.msra.mxu0 0.0
    %4446 = vmatprep.subr.mxu0 0.0
    %4447 = vmatpush1.xpose.msra.mxu0 0.0
    %4448 = vmatprep.subr.mxu0 0.0
    %4449 = vmatpush1.xpose.msra.mxu0 0.0
    %4450 = vmatprep.subr.mxu0 0.0
    %4451 = vmatpush1.xpose.msra.mxu0 0.0
    %4452 = vmatprep.subr.mxu0 0.0
    %4453 = vmatpush1.xpose.msra.mxu0 0.0
    %4454 = vmatprep.subr.mxu0 0.0
    %4455 = vmatpush1.xpose.msra.mxu0 0.0
    %4456 = vmatprep.subr.mxu0 0.0
    %4457 = vmatpush1.xpose.msra.mxu0 0.0
    %4458 = vmatprep.subr.mxu0 0.0
    %4459 = vmatpush1.xpose.msra.mxu0 0.0
    %4460 = vmatprep.subr.mxu0 0.0
    %4461 = vmatpush1.xpose.msra.mxu0 0.0
    %4462 = vmatprep.subr.mxu0 0.0
    %4463 = vmatpush1.xpose.msra.mxu0 0.0
    %4464 = vmatprep.subr.mxu0 0.0
    %4465 = vmatpush1.xpose.msra.mxu0 0.0
    %4466 = vmatprep.subr.mxu0 0.0
    %4467 = vmatpush1.xpose.msra.mxu0 0.0
    %4468 = vmatprep.subr.mxu0 0.0
    %4469 = vmatpush1.xpose.msra.mxu0 0.0
    %4470 = vmatprep.subr.mxu0 0.0
    %4471 = vmatpush1.xpose.msra.mxu0 0.0
    %4472 = vmatprep.subr.mxu0 0.0
    %4473 = vmatpush1.xpose.msra.mxu0 0.0
    %4474 = vmatprep.subr.mxu0 0.0
    %4475 = vmatpush1.xpose.msra.mxu0 0.0
    %4476 = vmatprep.subr.mxu0 0.0
    %4477 = vmatpush1.xpose.msra.mxu0 0.0
    %4478 = vmatprep.subr.mxu0 0.0
    %4479 = vmatpush1.xpose.msra.mxu0 0.0
    %4480 = vmatprep.subr.mxu0 0.0
    %4481 = vmatpush1.xpose.msra.mxu0 0.0
    %4482 = vmatprep.subr.mxu0 0.0
    %4483 = vmatpush1.xpose.msra.mxu0 0.0
    %4484 = vmatprep.subr.mxu0 0.0
    %4485 = vmatpush1.xpose.msra.mxu0 0.0
    %4486 = vmatprep.subr.mxu0 0.0
    %4487 = vmatpush1.xpose.msra.mxu0 0.0
    %4488 = vmatprep.subr.mxu0 0.0
    %4489 = vmatpush1.xpose.msra.mxu0 0.0
    %4490 = vmatprep.subr.mxu0 0.0
    %4491 = vmatpush1.xpose.msra.mxu0 0.0
    %4492 = vmatprep.subr.mxu0 0.0
    %4493 = vmatpush1.xpose.msra.mxu0 0.0
    %4494 = vmatprep.subr.mxu0 0.0
    %4495 = vmatpush1.xpose.msra.mxu0 0.0
    %4496 = vmatprep.subr.mxu0 0.0
    %4497 = vmatpush1.xpose.msra.mxu0 0.0
    %4498 = vmatprep.subr.mxu0 0.0
    %4499 = vmatpush1.xpose.msra.mxu0 0.0
    %4500 = vmatprep.mubr.f32.mxu0 0.0
    %4501 = vmatmul.mubr.f32.gmra.mrb[0].mxu0 %v4432
    %v4502 = vpop.f32.mrb[0].mxu0
    %v4503 = vadd.f32 0.0, %v4502
    %v4504 = vpop.f32.mrb[0].mxu0
    %4505 = vdwg.mxu0
    %4506 = vrot.lane.b32.xlu0 %v220, 104
    %v4507 = vpop.permute.xlu0 %4506
    %4508 = vrot.lane.b32.xlu0 %v360, 104
    %v4509 = vpop.permute.xlu0 %4508
    %v4510 = vsel %vm393, %v4507, 0
    %v4512 = vsel %vm393, %v4509, 0
    %4514 = vmatprep.subr.mxu0 0.0
    %4515 = vmatpush1.xpose.msra.mxu0 %v4512
    %4516 = vmatprep.subr.mxu0 0.0
    %4517 = vmatpush1.xpose.msra.mxu0 0.0
    %4518 = vmatprep.subr.mxu0 0.0
    %4519 = vmatpush1.xpose.msra.mxu0 0.0
    %4520 = vmatprep.subr.mxu0 0.0
    %4521 = vmatpush1.xpose.msra.mxu0 0.0
    %4522 = vmatprep.subr.mxu0 0.0
    %4523 = vmatpush1.xpose.msra.mxu0 0.0
    %4524 = vmatprep.subr.mxu0 0.0
    %4525 = vmatpush1.xpose.msra.mxu0 0.0
    %4526 = vmatprep.subr.mxu0 0.0
    %4527 = vmatpush1.xpose.msra.mxu0 0.0
    %4528 = vmatprep.subr.mxu0 0.0
    %4529 = vmatpush1.xpose.msra.mxu0 0.0
    %4530 = vmatprep.subr.mxu0 0.0
    %4531 = vmatpush1.xpose.msra.mxu0 0.0
    %4532 = vmatprep.subr.mxu0 0.0
    %4533 = vmatpush1.xpose.msra.mxu0 0.0
    %4534 = vmatprep.subr.mxu0 0.0
    %4535 = vmatpush1.xpose.msra.mxu0 0.0
    %4536 = vmatprep.subr.mxu0 0.0
    %4537 = vmatpush1.xpose.msra.mxu0 0.0
    %4538 = vmatprep.subr.mxu0 0.0
    %4539 = vmatpush1.xpose.msra.mxu0 0.0
    %4540 = vmatprep.subr.mxu0 0.0
    %4541 = vmatpush1.xpose.msra.mxu0 0.0
    %4542 = vmatprep.subr.mxu0 0.0
    %4543 = vmatpush1.xpose.msra.mxu0 0.0
    %4544 = vmatprep.subr.mxu0 0.0
    %4545 = vmatpush1.xpose.msra.mxu0 0.0
    %4546 = vmatprep.subr.mxu0 0.0
    %4547 = vmatpush1.xpose.msra.mxu0 0.0
    %4548 = vmatprep.subr.mxu0 0.0
    %4549 = vmatpush1.xpose.msra.mxu0 0.0
    %4550 = vmatprep.subr.mxu0 0.0
    %4551 = vmatpush1.xpose.msra.mxu0 0.0
    %4552 = vmatprep.subr.mxu0 0.0
    %4553 = vmatpush1.xpose.msra.mxu0 0.0
    %4554 = vmatprep.subr.mxu0 0.0
    %4555 = vmatpush1.xpose.msra.mxu0 0.0
    %4556 = vmatprep.subr.mxu0 0.0
    %4557 = vmatpush1.xpose.msra.mxu0 0.0
    %4558 = vmatprep.subr.mxu0 0.0
    %4559 = vmatpush1.xpose.msra.mxu0 0.0
    %4560 = vmatprep.subr.mxu0 0.0
    %4561 = vmatpush1.xpose.msra.mxu0 0.0
    %4562 = vmatprep.subr.mxu0 0.0
    %4563 = vmatpush1.xpose.msra.mxu0 0.0
    %4564 = vmatprep.subr.mxu0 0.0
    %4565 = vmatpush1.xpose.msra.mxu0 0.0
    %4566 = vmatprep.subr.mxu0 0.0
    %4567 = vmatpush1.xpose.msra.mxu0 0.0
    %4568 = vmatprep.subr.mxu0 0.0
    %4569 = vmatpush1.xpose.msra.mxu0 0.0
    %4570 = vmatprep.subr.mxu0 0.0
    %4571 = vmatpush1.xpose.msra.mxu0 0.0
    %4572 = vmatprep.subr.mxu0 0.0
    %4573 = vmatpush1.xpose.msra.mxu0 0.0
    %4574 = vmatprep.subr.mxu0 0.0
    %4575 = vmatpush1.xpose.msra.mxu0 0.0
    %4576 = vmatprep.subr.mxu0 0.0
    %4577 = vmatpush1.xpose.msra.mxu0 0.0
    %4578 = vmatprep.mubr.f32.mxu0 0.0
    %4579 = vmatmul.mubr.f32.gmra.mrb[0].mxu0 %v4510
    %v4580 = vpop.f32.mrb[0].mxu0
    %v4581 = vadd.f32 0.0, %v4580
    %v4582 = vpop.f32.mrb[0].mxu0
    %4583 = vdwg.mxu0
    %4584 = vrot.lane.b32.xlu0 %v225, 104
    %v4585 = vpop.permute.xlu0 %4584
    %4586 = vrot.lane.b32.xlu0 %v365, 104
    %v4587 = vpop.permute.xlu0 %4586
    %v4588 = vsel %vm393, %v4585, 0
    %v4590 = vsel %vm393, %v4587, 0
    %4592 = vmatprep.subr.mxu0 0.0
    %4593 = vmatpush1.xpose.msra.mxu0 %v4590
    %4594 = vmatprep.subr.mxu0 0.0
    %4595 = vmatpush1.xpose.msra.mxu0 0.0
    %4596 = vmatprep.subr.mxu0 0.0
    %4597 = vmatpush1.xpose.msra.mxu0 0.0
    %4598 = vmatprep.subr.mxu0 0.0
    %4599 = vmatpush1.xpose.msra.mxu0 0.0
    %4600 = vmatprep.subr.mxu0 0.0
    %4601 = vmatpush1.xpose.msra.mxu0 0.0
    %4602 = vmatprep.subr.mxu0 0.0
    %4603 = vmatpush1.xpose.msra.mxu0 0.0
    %4604 = vmatprep.subr.mxu0 0.0
    %4605 = vmatpush1.xpose.msra.mxu0 0.0
    %4606 = vmatprep.subr.mxu0 0.0
    %4607 = vmatpush1.xpose.msra.mxu0 0.0
    %4608 = vmatprep.subr.mxu0 0.0
    %4609 = vmatpush1.xpose.msra.mxu0 0.0
    %4610 = vmatprep.subr.mxu0 0.0
    %4611 = vmatpush1.xpose.msra.mxu0 0.0
    %4612 = vmatprep.subr.mxu0 0.0
    %4613 = vmatpush1.xpose.msra.mxu0 0.0
    %4614 = vmatprep.subr.mxu0 0.0
    %4615 = vmatpush1.xpose.msra.mxu0 0.0
    %4616 = vmatprep.subr.mxu0 0.0
    %4617 = vmatpush1.xpose.msra.mxu0 0.0
    %4618 = vmatprep.subr.mxu0 0.0
    %4619 = vmatpush1.xpose.msra.mxu0 0.0
    %4620 = vmatprep.subr.mxu0 0.0
    %4621 = vmatpush1.xpose.msra.mxu0 0.0
    %4622 = vmatprep.subr.mxu0 0.0
    %4623 = vmatpush1.xpose.msra.mxu0 0.0
    %4624 = vmatprep.subr.mxu0 0.0
    %4625 = vmatpush1.xpose.msra.mxu0 0.0
    %4626 = vmatprep.subr.mxu0 0.0
    %4627 = vmatpush1.xpose.msra.mxu0 0.0
    %4628 = vmatprep.subr.mxu0 0.0
    %4629 = vmatpush1.xpose.msra.mxu0 0.0
    %4630 = vmatprep.subr.mxu0 0.0
    %4631 = vmatpush1.xpose.msra.mxu0 0.0
    %4632 = vmatprep.subr.mxu0 0.0
    %4633 = vmatpush1.xpose.msra.mxu0 0.0
    %4634 = vmatprep.subr.mxu0 0.0
    %4635 = vmatpush1.xpose.msra.mxu0 0.0
    %4636 = vmatprep.subr.mxu0 0.0
    %4637 = vmatpush1.xpose.msra.mxu0 0.0
    %4638 = vmatprep.subr.mxu0 0.0
    %4639 = vmatpush1.xpose.msra.mxu0 0.0
    %4640 = vmatprep.subr.mxu0 0.0
    %4641 = vmatpush1.xpose.msra.mxu0 0.0
    %4642 = vmatprep.subr.mxu0 0.0
    %4643 = vmatpush1.xpose.msra.mxu0 0.0
    %4644 = vmatprep.subr.mxu0 0.0
    %4645 = vmatpush1.xpose.msra.mxu0 0.0
    %4646 = vmatprep.subr.mxu0 0.0
    %4647 = vmatpush1.xpose.msra.mxu0 0.0
    %4648 = vmatprep.subr.mxu0 0.0
    %4649 = vmatpush1.xpose.msra.mxu0 0.0
    %4650 = vmatprep.subr.mxu0 0.0
    %4651 = vmatpush1.xpose.msra.mxu0 0.0
    %4652 = vmatprep.subr.mxu0 0.0
    %4653 = vmatpush1.xpose.msra.mxu0 0.0
    %4654 = vmatprep.subr.mxu0 0.0
    %4655 = vmatpush1.xpose.msra.mxu0 0.0
    %4656 = vmatprep.mubr.f32.mxu0 0.0
    %4657 = vmatmul.mubr.f32.gmra.mrb[0].mxu0 %v4588
    %v4658 = vpop.f32.mrb[0].mxu0
    %v4659 = vadd.f32 0.0, %v4658
    %v4660 = vpop.f32.mrb[0].mxu0
    %4661 = vdwg.mxu0
    %4662 = vrot.lane.b32.xlu0 %v230, 104
    %v4663 = vpop.permute.xlu0 %4662
    %4664 = vrot.lane.b32.xlu0 %v370, 104
    %v4665 = vpop.permute.xlu0 %4664
    %v4666 = vsel %vm393, %v4663, 0
    %v4668 = vsel %vm393, %v4665, 0
    %4670 = vmatprep.subr.mxu0 0.0
    %4671 = vmatpush1.xpose.msra.mxu0 %v4668
    %4672 = vmatprep.subr.mxu0 0.0
    %4673 = vmatpush1.xpose.msra.mxu0 0.0
    %4674 = vmatprep.subr.mxu0 0.0
    %4675 = vmatpush1.xpose.msra.mxu0 0.0
    %4676 = vmatprep.subr.mxu0 0.0
    %4677 = vmatpush1.xpose.msra.mxu0 0.0
    %4678 = vmatprep.subr.mxu0 0.0
    %4679 = vmatpush1.xpose.msra.mxu0 0.0
    %4680 = vmatprep.subr.mxu0 0.0
    %4681 = vmatpush1.xpose.msra.mxu0 0.0
    %4682 = vmatprep.subr.mxu0 0.0
    %4683 = vmatpush1.xpose.msra.mxu0 0.0
    %4684 = vmatprep.subr.mxu0 0.0
    %4685 = vmatpush1.xpose.msra.mxu0 0.0
    %4686 = vmatprep.subr.mxu0 0.0
    %4687 = vmatpush1.xpose.msra.mxu0 0.0
    %4688 = vmatprep.subr.mxu0 0.0
    %4689 = vmatpush1.xpose.msra.mxu0 0.0
    %4690 = vmatprep.subr.mxu0 0.0
    %4691 = vmatpush1.xpose.msra.mxu0 0.0
    %4692 = vmatprep.subr.mxu0 0.0
    %4693 = vmatpush1.xpose.msra.mxu0 0.0
    %4694 = vmatprep.subr.mxu0 0.0
    %4695 = vmatpush1.xpose.msra.mxu0 0.0
    %4696 = vmatprep.subr.mxu0 0.0
    %4697 = vmatpush1.xpose.msra.mxu0 0.0
    %4698 = vmatprep.subr.mxu0 0.0
    %4699 = vmatpush1.xpose.msra.mxu0 0.0
    %4700 = vmatprep.subr.mxu0 0.0
    %4701 = vmatpush1.xpose.msra.mxu0 0.0
    %4702 = vmatprep.subr.mxu0 0.0
    %4703 = vmatpush1.xpose.msra.mxu0 0.0
    %4704 = vmatprep.subr.mxu0 0.0
    %4705 = vmatpush1.xpose.msra.mxu0 0.0
    %4706 = vmatprep.subr.mxu0 0.0
    %4707 = vmatpush1.xpose.msra.mxu0 0.0
    %4708 = vmatprep.subr.mxu0 0.0
    %4709 = vmatpush1.xpose.msra.mxu0 0.0
    %4710 = vmatprep.subr.mxu0 0.0
    %4711 = vmatpush1.xpose.msra.mxu0 0.0
    %4712 = vmatprep.subr.mxu0 0.0
    %4713 = vmatpush1.xpose.msra.mxu0 0.0
    %4714 = vmatprep.subr.mxu0 0.0
    %4715 = vmatpush1.xpose.msra.mxu0 0.0
    %4716 = vmatprep.subr.mxu0 0.0
    %4717 = vmatpush1.xpose.msra.mxu0 0.0
    %4718 = vmatprep.subr.mxu0 0.0
    %4719 = vmatpush1.xpose.msra.mxu0 0.0
    %4720 = vmatprep.subr.mxu0 0.0
    %4721 = vmatpush1.xpose.msra.mxu0 0.0
    %4722 = vmatprep.subr.mxu0 0.0
    %4723 = vmatpush1.xpose.msra.mxu0 0.0
    %4724 = vmatprep.subr.mxu0 0.0
    %4725 = vmatpush1.xpose.msra.mxu0 0.0
    %4726 = vmatprep.subr.mxu0 0.0
    %4727 = vmatpush1.xpose.msra.mxu0 0.0
    %4728 = vmatprep.subr.mxu0 0.0
    %4729 = vmatpush1.xpose.msra.mxu0 0.0
    %4730 = vmatprep.subr.mxu0 0.0
    %4731 = vmatpush1.xpose.msra.mxu0 0.0
    %4732 = vmatprep.subr.mxu0 0.0
    %4733 = vmatpush1.xpose.msra.mxu0 0.0
    %4734 = vmatprep.mubr.f32.mxu0 0.0
    %4735 = vmatmul.mubr.f32.gmra.mrb[0].mxu0 %v4666
    %v4736 = vpop.f32.mrb[0].mxu0
    %v4737 = vadd.f32 0.0, %v4736
    %v4738 = vpop.f32.mrb[0].mxu0
    %4739 = vdwg.mxu0
    %4740 = vrot.lane.b32.xlu0 %v235, 104
    %v4741 = vpop.permute.xlu0 %4740
    %4742 = vrot.lane.b32.xlu0 %v375, 104
    %v4743 = vpop.permute.xlu0 %4742
    %v4744 = vsel %vm393, %v4741, 0
    %v4746 = vsel %vm393, %v4743, 0
    %4748 = vmatprep.subr.mxu0 0.0
    %4749 = vmatpush1.xpose.msra.mxu0 %v4746
    %4750 = vmatprep.subr.mxu0 0.0
    %4751 = vmatpush1.xpose.msra.mxu0 0.0
    %4752 = vmatprep.subr.mxu0 0.0
    %4753 = vmatpush1.xpose.msra.mxu0 0.0
    %4754 = vmatprep.subr.mxu0 0.0
    %4755 = vmatpush1.xpose.msra.mxu0 0.0
    %4756 = vmatprep.subr.mxu0 0.0
    %4757 = vmatpush1.xpose.msra.mxu0 0.0
    %4758 = vmatprep.subr.mxu0 0.0
    %4759 = vmatpush1.xpose.msra.mxu0 0.0
    %4760 = vmatprep.subr.mxu0 0.0
    %4761 = vmatpush1.xpose.msra.mxu0 0.0
    %4762 = vmatprep.subr.mxu0 0.0
    %4763 = vmatpush1.xpose.msra.mxu0 0.0
    %4764 = vmatprep.subr.mxu0 0.0
    %4765 = vmatpush1.xpose.msra.mxu0 0.0
    %4766 = vmatprep.subr.mxu0 0.0
    %4767 = vmatpush1.xpose.msra.mxu0 0.0
    %4768 = vmatprep.subr.mxu0 0.0
    %4769 = vmatpush1.xpose.msra.mxu0 0.0
    %4770 = vmatprep.subr.mxu0 0.0
    %4771 = vmatpush1.xpose.msra.mxu0 0.0
    %4772 = vmatprep.subr.mxu0 0.0
    %4773 = vmatpush1.xpose.msra.mxu0 0.0
    %4774 = vmatprep.subr.mxu0 0.0
    %4775 = vmatpush1.xpose.msra.mxu0 0.0
    %4776 = vmatprep.subr.mxu0 0.0
    %4777 = vmatpush1.xpose.msra.mxu0 0.0
    %4778 = vmatprep.subr.mxu0 0.0
    %4779 = vmatpush1.xpose.msra.mxu0 0.0
    %4780 = vmatprep.subr.mxu0 0.0
    %4781 = vmatpush1.xpose.msra.mxu0 0.0
    %4782 = vmatprep.subr.mxu0 0.0
    %4783 = vmatpush1.xpose.msra.mxu0 0.0
    %4784 = vmatprep.subr.mxu0 0.0
    %4785 = vmatpush1.xpose.msra.mxu0 0.0
    %4786 = vmatprep.subr.mxu0 0.0
    %4787 = vmatpush1.xpose.msra.mxu0 0.0
    %4788 = vmatprep.subr.mxu0 0.0
    %4789 = vmatpush1.xpose.msra.mxu0 0.0
    %4790 = vmatprep.subr.mxu0 0.0
    %4791 = vmatpush1.xpose.msra.mxu0 0.0
    %4792 = vmatprep.subr.mxu0 0.0
    %4793 = vmatpush1.xpose.msra.mxu0 0.0
    %4794 = vmatprep.subr.mxu0 0.0
    %4795 = vmatpush1.xpose.msra.mxu0 0.0
    %4796 = vmatprep.subr.mxu0 0.0
    %4797 = vmatpush1.xpose.msra.mxu0 0.0
    %4798 = vmatprep.subr.mxu0 0.0
    %4799 = vmatpush1.xpose.msra.mxu0 0.0
    %4800 = vmatprep.subr.mxu0 0.0
    %4801 = vmatpush1.xpose.msra.mxu0 0.0
    %4802 = vmatprep.subr.mxu0 0.0
    %4803 = vmatpush1.xpose.msra.mxu0 0.0
    %4804 = vmatprep.subr.mxu0 0.0
    %4805 = vmatpush1.xpose.msra.mxu0 0.0
    %4806 = vmatprep.subr.mxu0 0.0
    %4807 = vmatpush1.xpose.msra.mxu0 0.0
    %4808 = vmatprep.subr.mxu0 0.0
    %4809 = vmatpush1.xpose.msra.mxu0 0.0
    %4810 = vmatprep.subr.mxu0 0.0
    %4811 = vmatpush1.xpose.msra.mxu0 0.0
    %4812 = vmatprep.mubr.f32.mxu0 0.0
    %4813 = vmatmul.mubr.f32.gmra.mrb[0].mxu0 %v4744
    %v4814 = vpop.f32.mrb[0].mxu0
    %v4815 = vadd.f32 0.0, %v4814
    %v4816 = vpop.f32.mrb[0].mxu0
    %4817 = vdwg.mxu0
    %4818 = vrot.lane.b32.xlu0 %v240, 104
    %v4819 = vpop.permute.xlu0 %4818
    %4820 = vrot.lane.b32.xlu0 %v380, 104
    %v4821 = vpop.permute.xlu0 %4820
    %v4822 = vsel %vm393, %v4819, 0
    %v4824 = vsel %vm393, %v4821, 0
    %4826 = vmatprep.subr.mxu0 0.0
    %4827 = vmatpush1.xpose.msra.mxu0 %v4824
    %4828 = vmatprep.subr.mxu0 0.0
    %4829 = vmatpush1.xpose.msra.mxu0 0.0
    %4830 = vmatprep.subr.mxu0 0.0
    %4831 = vmatpush1.xpose.msra.mxu0 0.0
    %4832 = vmatprep.subr.mxu0 0.0
    %4833 = vmatpush1.xpose.msra.mxu0 0.0
    %4834 = vmatprep.subr.mxu0 0.0
    %4835 = vmatpush1.xpose.msra.mxu0 0.0
    %4836 = vmatprep.subr.mxu0 0.0
    %4837 = vmatpush1.xpose.msra.mxu0 0.0
    %4838 = vmatprep.subr.mxu0 0.0
    %4839 = vmatpush1.xpose.msra.mxu0 0.0
    %4840 = vmatprep.subr.mxu0 0.0
    %4841 = vmatpush1.xpose.msra.mxu0 0.0
    %4842 = vmatprep.subr.mxu0 0.0
    %4843 = vmatpush1.xpose.msra.mxu0 0.0
    %4844 = vmatprep.subr.mxu0 0.0
    %4845 = vmatpush1.xpose.msra.mxu0 0.0
    %4846 = vmatprep.subr.mxu0 0.0
    %4847 = vmatpush1.xpose.msra.mxu0 0.0
    %4848 = vmatprep.subr.mxu0 0.0
    %4849 = vmatpush1.xpose.msra.mxu0 0.0
    %4850 = vmatprep.subr.mxu0 0.0
    %4851 = vmatpush1.xpose.msra.mxu0 0.0
    %4852 = vmatprep.subr.mxu0 0.0
    %4853 = vmatpush1.xpose.msra.mxu0 0.0
    %4854 = vmatprep.subr.mxu0 0.0
    %4855 = vmatpush1.xpose.msra.mxu0 0.0
    %4856 = vmatprep.subr.mxu0 0.0
    %4857 = vmatpush1.xpose.msra.mxu0 0.0
    %4858 = vmatprep.subr.mxu0 0.0
    %4859 = vmatpush1.xpose.msra.mxu0 0.0
    %4860 = vmatprep.subr.mxu0 0.0
    %4861 = vmatpush1.xpose.msra.mxu0 0.0
    %4862 = vmatprep.subr.mxu0 0.0
    %4863 = vmatpush1.xpose.msra.mxu0 0.0
    %4864 = vmatprep.subr.mxu0 0.0
    %4865 = vmatpush1.xpose.msra.mxu0 0.0
    %4866 = vmatprep.subr.mxu0 0.0
    %4867 = vmatpush1.xpose.msra.mxu0 0.0
    %4868 = vmatprep.subr.mxu0 0.0
    %4869 = vmatpush1.xpose.msra.mxu0 0.0
    %4870 = vmatprep.subr.mxu0 0.0
    %4871 = vmatpush1.xpose.msra.mxu0 0.0
    %4872 = vmatprep.subr.mxu0 0.0
    %4873 = vmatpush1.xpose.msra.mxu0 0.0
    %4874 = vmatprep.subr.mxu0 0.0
    %4875 = vmatpush1.xpose.msra.mxu0 0.0
    %4876 = vmatprep.subr.mxu0 0.0
    %4877 = vmatpush1.xpose.msra.mxu0 0.0
    %4878 = vmatprep.subr.mxu0 0.0
    %4879 = vmatpush1.xpose.msra.mxu0 0.0
    %4880 = vmatprep.subr.mxu0 0.0
    %4881 = vmatpush1.xpose.msra.mxu0 0.0
    %4882 = vmatprep.subr.mxu0 0.0
    %4883 = vmatpush1.xpose.msra.mxu0 0.0
    %4884 = vmatprep.subr.mxu0 0.0
    %4885 = vmatpush1.xpose.msra.mxu0 0.0
    %4886 = vmatprep.subr.mxu0 0.0
    %4887 = vmatpush1.xpose.msra.mxu0 0.0
    %4888 = vmatprep.subr.mxu0 0.0
    %4889 = vmatpush1.xpose.msra.mxu0 0.0
    %4890 = vmatprep.mubr.f32.mxu0 0.0
    %4891 = vmatmul.mubr.f32.gmra.mrb[0].mxu0 %v4822
    %v4892 = vpop.f32.mrb[0].mxu0
    %v4893 = vadd.f32 0.0, %v4892
    %v4894 = vpop.f32.mrb[0].mxu0
    %4895 = vdwg.mxu0
    %4896 = vrot.lane.b32.xlu0 %v245, 104
    %v4897 = vpop.permute.xlu0 %4896
    %4898 = vrot.lane.b32.xlu0 %v385, 104
    %v4899 = vpop.permute.xlu0 %4898
    %v4900 = vsel %vm393, %v4897, 0
    %v4902 = vsel %vm393, %v4899, 0
    %4904 = vmatprep.subr.mxu0 0.0
    %4905 = vmatpush1.xpose.msra.mxu0 %v4902
    %4906 = vmatprep.subr.mxu0 0.0
    %4907 = vmatpush1.xpose.msra.mxu0 0.0
    %4908 = vmatprep.subr.mxu0 0.0
    %4909 = vmatpush1.xpose.msra.mxu0 0.0
    %4910 = vmatprep.subr.mxu0 0.0
    %4911 = vmatpush1.xpose.msra.mxu0 0.0
    %4912 = vmatprep.subr.mxu0 0.0
    %4913 = vmatpush1.xpose.msra.mxu0 0.0
    %4914 = vmatprep.subr.mxu0 0.0
    %4915 = vmatpush1.xpose.msra.mxu0 0.0
    %4916 = vmatprep.subr.mxu0 0.0
    %4917 = vmatpush1.xpose.msra.mxu0 0.0
    %4918 = vmatprep.subr.mxu0 0.0
    %4919 = vmatpush1.xpose.msra.mxu0 0.0
    %4920 = vmatprep.subr.mxu0 0.0
    %4921 = vmatpush1.xpose.msra.mxu0 0.0
    %4922 = vmatprep.subr.mxu0 0.0
    %4923 = vmatpush1.xpose.msra.mxu0 0.0
    %4924 = vmatprep.subr.mxu0 0.0
    %4925 = vmatpush1.xpose.msra.mxu0 0.0
    %4926 = vmatprep.subr.mxu0 0.0
    %4927 = vmatpush1.xpose.msra.mxu0 0.0
    %4928 = vmatprep.subr.mxu0 0.0
    %4929 = vmatpush1.xpose.msra.mxu0 0.0
    %4930 = vmatprep.subr.mxu0 0.0
    %4931 = vmatpush1.xpose.msra.mxu0 0.0
    %4932 = vmatprep.subr.mxu0 0.0
    %4933 = vmatpush1.xpose.msra.mxu0 0.0
    %4934 = vmatprep.subr.mxu0 0.0
    %4935 = vmatpush1.xpose.msra.mxu0 0.0
    %4936 = vmatprep.subr.mxu0 0.0
    %4937 = vmatpush1.xpose.msra.mxu0 0.0
    %4938 = vmatprep.subr.mxu0 0.0
    %4939 = vmatpush1.xpose.msra.mxu0 0.0
    %4940 = vmatprep.subr.mxu0 0.0
    %4941 = vmatpush1.xpose.msra.mxu0 0.0
    %4942 = vmatprep.subr.mxu0 0.0
    %4943 = vmatpush1.xpose.msra.mxu0 0.0
    %4944 = vmatprep.subr.mxu0 0.0
    %4945 = vmatpush1.xpose.msra.mxu0 0.0
    %4946 = vmatprep.subr.mxu0 0.0
    %4947 = vmatpush1.xpose.msra.mxu0 0.0
    %4948 = vmatprep.subr.mxu0 0.0
    %4949 = vmatpush1.xpose.msra.mxu0 0.0
    %4950 = vmatprep.subr.mxu0 0.0
    %4951 = vmatpush1.xpose.msra.mxu0 0.0
    %4952 = vmatprep.subr.mxu0 0.0
    %4953 = vmatpush1.xpose.msra.mxu0 0.0
    %4954 = vmatprep.subr.mxu0 0.0
    %4955 = vmatpush1.xpose.msra.mxu0 0.0
    %4956 = vmatprep.subr.mxu0 0.0
    %4957 = vmatpush1.xpose.msra.mxu0 0.0
    %4958 = vmatprep.subr.mxu0 0.0
    %4959 = vmatpush1.xpose.msra.mxu0 0.0
    %4960 = vmatprep.subr.mxu0 0.0
    %4961 = vmatpush1.xpose.msra.mxu0 0.0
    %4962 = vmatprep.subr.mxu0 0.0
    %4963 = vmatpush1.xpose.msra.mxu0 0.0
    %4964 = vmatprep.subr.mxu0 0.0
    %4965 = vmatpush1.xpose.msra.mxu0 0.0
    %4966 = vmatprep.subr.mxu0 0.0
    %4967 = vmatpush1.xpose.msra.mxu0 0.0
    %4968 = vmatprep.mubr.f32.mxu0 0.0
    %4969 = vmatmul.mubr.f32.gmra.mrb[0].mxu0 %v4900
    %v4970 = vpop.f32.mrb[0].mxu0
    %v4971 = vadd.f32 0.0, %v4970
    %v4972 = vpop.f32.mrb[0].mxu0
    %4973 = vdwg.mxu0
    %4974 = vrot.lane.b32.xlu0 %v250, 104
    %v4975 = vpop.permute.xlu0 %4974
    %4976 = vrot.lane.b32.xlu0 %v390, 104
    %v4977 = vpop.permute.xlu0 %4976
    %v4978 = vsel %vm393, %v4975, 0
    %v4980 = vsel %vm393, %v4977, 0
    %4982 = vmatprep.subr.mxu0 0.0
    %4983 = vmatpush1.xpose.msra.mxu0 %v4980
    %4984 = vmatprep.subr.mxu0 0.0
    %4985 = vmatpush1.xpose.msra.mxu0 0.0
    %4986 = vmatprep.subr.mxu0 0.0
    %4987 = vmatpush1.xpose.msra.mxu0 0.0
    %4988 = vmatprep.subr.mxu0 0.0
    %4989 = vmatpush1.xpose.msra.mxu0 0.0
    %4990 = vmatprep.subr.mxu0 0.0
    %4991 = vmatpush1.xpose.msra.mxu0 0.0
    %4992 = vmatprep.subr.mxu0 0.0
    %4993 = vmatpush1.xpose.msra.mxu0 0.0
    %4994 = vmatprep.subr.mxu0 0.0
    %4995 = vmatpush1.xpose.msra.mxu0 0.0
    %4996 = vmatprep.subr.mxu0 0.0
    %4997 = vmatpush1.xpose.msra.mxu0 0.0
    %4998 = vmatprep.subr.mxu0 0.0
    %4999 = vmatpush1.xpose.msra.mxu0 0.0
    %5000 = vmatprep.subr.mxu0 0.0
    %5001 = vmatpush1.xpose.msra.mxu0 0.0
    %5002 = vmatprep.subr.mxu0 0.0
    %5003 = vmatpush1.xpose.msra.mxu0 0.0
    %5004 = vmatprep.subr.mxu0 0.0
    %5005 = vmatpush1.xpose.msra.mxu0 0.0
    %5006 = vmatprep.subr.mxu0 0.0
    %5007 = vmatpush1.xpose.msra.mxu0 0.0
    %5008 = vmatprep.subr.mxu0 0.0
    %5009 = vmatpush1.xpose.msra.mxu0 0.0
    %5010 = vmatprep.subr.mxu0 0.0
    %5011 = vmatpush1.xpose.msra.mxu0 0.0
    %5012 = vmatprep.subr.mxu0 0.0
    %5013 = vmatpush1.xpose.msra.mxu0 0.0
    %5014 = vmatprep.subr.mxu0 0.0
    %5015 = vmatpush1.xpose.msra.mxu0 0.0
    %5016 = vmatprep.subr.mxu0 0.0
    %5017 = vmatpush1.xpose.msra.mxu0 0.0
    %5018 = vmatprep.subr.mxu0 0.0
    %5019 = vmatpush1.xpose.msra.mxu0 0.0
    %5020 = vmatprep.subr.mxu0 0.0
    %5021 = vmatpush1.xpose.msra.mxu0 0.0
    %5022 = vmatprep.subr.mxu0 0.0
    %5023 = vmatpush1.xpose.msra.mxu0 0.0
    %5024 = vmatprep.subr.mxu0 0.0
    %5025 = vmatpush1.xpose.msra.mxu0 0.0
    %5026 = vmatprep.subr.mxu0 0.0
    %5027 = vmatpush1.xpose.msra.mxu0 0.0
    %5028 = vmatprep.subr.mxu0 0.0
    %5029 = vmatpush1.xpose.msra.mxu0 0.0
    %5030 = vmatprep.subr.mxu0 0.0
    %5031 = vmatpush1.xpose.msra.mxu0 0.0
    %5032 = vmatprep.subr.mxu0 0.0
    %5033 = vmatpush1.xpose.msra.mxu0 0.0
    %5034 = vmatprep.subr.mxu0 0.0
    %5035 = vmatpush1.xpose.msra.mxu0 0.0
    %5036 = vmatprep.subr.mxu0 0.0
    %5037 = vmatpush1.xpose.msra.mxu0 0.0
    %5038 = vmatprep.subr.mxu0 0.0
    %5039 = vmatpush1.xpose.msra.mxu0 0.0
    %5040 = vmatprep.subr.mxu0 0.0
    %5041 = vmatpush1.xpose.msra.mxu0 0.0
    %5042 = vmatprep.subr.mxu0 0.0
    %5043 = vmatpush1.xpose.msra.mxu0 0.0
    %5044 = vmatprep.subr.mxu0 0.0
    %5045 = vmatpush1.xpose.msra.mxu0 0.0
    %5046 = vmatprep.mubr.f32.mxu0 0.0
    %5047 = vmatmul.mubr.f32.gmra.mrb[0].mxu0 %v4978
    %v5048 = vpop.f32.mrb[0].mxu0
    %v5049 = vadd.f32 0.0, %v5048
    %v5050 = vpop.f32.mrb[0].mxu0
    %5051 = vdwg.mxu0
    %v5052 = vsel %vm393, %v4503, -inf
    %5053 = vmax.xlane.f32.xlu0 %v5052
    %v5054 = vpop.xlane.xlu0 %5053
    %v5055 = vsel %vm393, %v4581, -inf
    %5056 = vmax.xlane.f32.xlu0 %v5055
    %v5057 = vpop.xlane.xlu0 %5056
    %v5058 = vsel %vm393, %v4659, -inf
    %5059 = vmax.xlane.f32.xlu0 %v5058
    %v5060 = vpop.xlane.xlu0 %5059
    %v5061 = vsel %vm393, %v4737, -inf
    %5062 = vmax.xlane.f32.xlu0 %v5061
    %v5063 = vpop.xlane.xlu0 %5062
    %v5064 = vsel %vm393, %v4815, -inf
    %5065 = vmax.xlane.f32.xlu0 %v5064
    %v5066 = vpop.xlane.xlu0 %5065
    %v5067 = vsel %vm393, %v4893, -inf
    %5068 = vmax.xlane.f32.xlu0 %v5067
    %v5069 = vpop.xlane.xlu0 %5068
    %v5070 = vsel %vm393, %v4971, -inf
    %5071 = vmax.xlane.f32.xlu0 %v5070
    %v5072 = vpop.xlane.xlu0 %5071
    %v5073 = vsel %vm393, %v5049, -inf
    %5074 = vmax.xlane.f32.xlu0 %v5073
    %v5075 = vpop.xlane.xlu0 %5074
    %v5076 = vsub.f32 %v4503, %v5054
    %v5077 = vsub.f32 %v4581, %v5057
    %v5078 = vsub.f32 %v4659, %v5060
    %v5079 = vsub.f32 %v4737, %v5063
    %v5080 = vsub.f32 %v4815, %v5066
    %v5081 = vsub.f32 %v4893, %v5069
    %v5082 = vsub.f32 %v4971, %v5072
    %v5083 = vsub.f32 %v5049, %v5075
    %v5084 = vmul.f32 %v5076, 1.442695
    %v5085 = vpow.pop %v5084
    %v5086 = vmul.f32 %v5077, 1.442695
    %v5087 = vpow.pop %v5086
    %v5088 = vmul.f32 %v5078, 1.442695
    %v5089 = vpow.pop %v5088
    %v5090 = vmul.f32 %v5079, 1.442695
    %v5091 = vpow.pop %v5090
    %v5092 = vmul.f32 %v5080, 1.442695
    %v5093 = vpow.pop %v5092
    %v5094 = vmul.f32 %v5081, 1.442695
    %v5095 = vpow.pop %v5094
    %v5096 = vmul.f32 %v5082, 1.442695
    %v5097 = vpow.pop %v5096
    %v5098 = vmul.f32 %v5083, 1.442695
    %v5099 = vpow.pop %v5098
    %v5100 = vsel %vm393, %v5085, 0.0
    %5101 = vadd.xlane.f32.xlu0 %v5100
    %v5102 = vpop.xlane.xlu0 %5101
    %v5103 = vsel %vm393, %v5087, 0.0
    %5104 = vadd.xlane.f32.xlu0 %v5103
    %v5105 = vpop.xlane.xlu0 %5104
    %v5106 = vsel %vm393, %v5089, 0.0
    %5107 = vadd.xlane.f32.xlu0 %v5106
    %v5108 = vpop.xlane.xlu0 %5107
    %v5109 = vsel %vm393, %v5091, 0.0
    %5110 = vadd.xlane.f32.xlu0 %v5109
    %v5111 = vpop.xlane.xlu0 %5110
    %v5112 = vsel %vm393, %v5093, 0.0
    %5113 = vadd.xlane.f32.xlu0 %v5112
    %v5114 = vpop.xlane.xlu0 %5113
    %v5115 = vsel %vm393, %v5095, 0.0
    %5116 = vadd.xlane.f32.xlu0 %v5115
    %v5117 = vpop.xlane.xlu0 %5116
    %v5118 = vsel %vm393, %v5097, 0.0
    %5119 = vadd.xlane.f32.xlu0 %v5118
    %v5120 = vpop.xlane.xlu0 %5119
    %v5121 = vsel %vm393, %v5099, 0.0
    %5122 = vadd.xlane.f32.xlu0 %v5121
    %v5123 = vpop.xlane.xlu0 %5122
    %v5124 = vrcp.pop %v5102
    %v5125 = vrcp.pop %v5105
    %v5126 = vrcp.pop %v5108
    %v5127 = vrcp.pop %v5111
    %v5128 = vrcp.pop %v5114
    %v5129 = vrcp.pop %v5117
    %v5130 = vrcp.pop %v5120
    %v5131 = vrcp.pop %v5123
    %v5132 = vmul.f32 %v5085, %v5124
    %v5133 = vmul.f32 %v5087, %v5125
    %v5134 = vmul.f32 %v5089, %v5126
    %v5135 = vmul.f32 %v5091, %v5127
    %v5136 = vmul.f32 %v5093, %v5128
    %v5137 = vmul.f32 %v5095, %v5129
    %v5138 = vmul.f32 %v5097, %v5130
    %v5139 = vmul.f32 %v5099, %v5131
    %5140 = vrot.lane.b32.xlu0 %v355, 72
    %v5141 = vpop.permute.xlu0 %5140
    %v5144 = vsel %vm393, %v5132, 0
    %5146 = vmatprep.subr.mxu0 0.0
    %5147 = vmatpush1.msra.mxu0 %v5141
    %5148 = vmatprep.subr.mxu0 0.0
    %5149 = vmatpush1.msra.mxu0 0.0
    %5150 = vmatprep.subr.mxu0 0.0
    %5151 = vmatpush1.msra.mxu0 0.0
    %5152 = vmatprep.subr.mxu0 0.0
    %5153 = vmatpush1.msra.mxu0 0.0
    %5154 = vmatprep.subr.mxu0 0.0
    %5155 = vmatpush1.msra.mxu0 0.0
    %5156 = vmatprep.subr.mxu0 0.0
    %5157 = vmatpush1.msra.mxu0 0.0
    %5158 = vmatprep.subr.mxu0 0.0
    %5159 = vmatpush1.msra.mxu0 0.0
    %5160 = vmatprep.subr.mxu0 0.0
    %5161 = vmatpush1.msra.mxu0 0.0
    %5162 = vmatprep.subr.mxu0 0.0
    %5163 = vmatpush1.msra.mxu0 0.0
    %5164 = vmatprep.subr.mxu0 0.0
    %5165 = vmatpush1.msra.mxu0 0.0
    %5166 = vmatprep.subr.mxu0 0.0
    %5167 = vmatpush1.msra.mxu0 0.0
    %5168 = vmatprep.subr.mxu0 0.0
    %5169 = vmatpush1.msra.mxu0 0.0
    %5170 = vmatprep.subr.mxu0 0.0
    %5171 = vmatpush1.msra.mxu0 0.0
    %5172 = vmatprep.subr.mxu0 0.0
    %5173 = vmatpush1.msra.mxu0 0.0
    %5174 = vmatprep.subr.mxu0 0.0
    %5175 = vmatpush1.msra.mxu0 0.0
    %5176 = vmatprep.subr.mxu0 0.0
    %5177 = vmatpush1.msra.mxu0 0.0
    %5178 = vmatprep.subr.mxu0 0.0
    %5179 = vmatpush1.msra.mxu0 0.0
    %5180 = vmatprep.subr.mxu0 0.0
    %5181 = vmatpush1.msra.mxu0 0.0
    %5182 = vmatprep.subr.mxu0 0.0
    %5183 = vmatpush1.msra.mxu0 0.0
    %5184 = vmatprep.subr.mxu0 0.0
    %5185 = vmatpush1.msra.mxu0 0.0
    %5186 = vmatprep.subr.mxu0 0.0
    %5187 = vmatpush1.msra.mxu0 0.0
    %5188 = vmatprep.subr.mxu0 0.0
    %5189 = vmatpush1.msra.mxu0 0.0
    %5190 = vmatprep.subr.mxu0 0.0
    %5191 = vmatpush1.msra.mxu0 0.0
    %5192 = vmatprep.subr.mxu0 0.0
    %5193 = vmatpush1.msra.mxu0 0.0
    %5194 = vmatprep.subr.mxu0 0.0
    %5195 = vmatpush1.msra.mxu0 0.0
    %5196 = vmatprep.subr.mxu0 0.0
    %5197 = vmatpush1.msra.mxu0 0.0
    %5198 = vmatprep.subr.mxu0 0.0
    %5199 = vmatpush1.msra.mxu0 0.0
    %5200 = vmatprep.subr.mxu0 0.0
    %5201 = vmatpush1.msra.mxu0 0.0
    %5202 = vmatprep.subr.mxu0 0.0
    %5203 = vmatpush1.msra.mxu0 0.0
    %5204 = vmatprep.subr.mxu0 0.0
    %5205 = vmatpush1.msra.mxu0 0.0
    %5206 = vmatprep.subr.mxu0 0.0
    %5207 = vmatpush1.msra.mxu0 0.0
    %5208 = vmatprep.subr.mxu0 0.0
    %5209 = vmatpush1.msra.mxu0 0.0
    %5210 = vmatprep.mubr.f32.mxu0 0.0
    %5211 = vmatmul.mubr.f32.gmra.mrb[0].mxu0 %v5144
    %v5212 = vpop.f32.mrb[0].mxu0
    %v5213 = vadd.f32 0.0, %v5212
    %v5214 = vpop.f32.mrb[0].mxu0
    %5215 = vdwg.mxu0
    %5216 = vrot.lane.b32.xlu0 %v360, 72
    %v5217 = vpop.permute.xlu0 %5216
    %v5220 = vsel %vm393, %v5133, 0
    %5222 = vmatprep.subr.mxu0 0.0
    %5223 = vmatpush1.msra.mxu0 %v5217
    %5224 = vmatprep.subr.mxu0 0.0
    %5225 = vmatpush1.msra.mxu0 0.0
    %5226 = vmatprep.subr.mxu0 0.0
    %5227 = vmatpush1.msra.mxu0 0.0
    %5228 = vmatprep.subr.mxu0 0.0
    %5229 = vmatpush1.msra.mxu0 0.0
    %5230 = vmatprep.subr.mxu0 0.0
    %5231 = vmatpush1.msra.mxu0 0.0
    %5232 = vmatprep.subr.mxu0 0.0
    %5233 = vmatpush1.msra.mxu0 0.0
    %5234 = vmatprep.subr.mxu0 0.0
    %5235 = vmatpush1.msra.mxu0 0.0
    %5236 = vmatprep.subr.mxu0 0.0
    %5237 = vmatpush1.msra.mxu0 0.0
    %5238 = vmatprep.subr.mxu0 0.0
    %5239 = vmatpush1.msra.mxu0 0.0
    %5240 = vmatprep.subr.mxu0 0.0
    %5241 = vmatpush1.msra.mxu0 0.0
    %5242 = vmatprep.subr.mxu0 0.0
    %5243 = vmatpush1.msra.mxu0 0.0
    %5244 = vmatprep.subr.mxu0 0.0
    %5245 = vmatpush1.msra.mxu0 0.0
    %5246 = vmatprep.subr.mxu0 0.0
    %5247 = vmatpush1.msra.mxu0 0.0
    %5248 = vmatprep.subr.mxu0 0.0
    %5249 = vmatpush1.msra.mxu0 0.0
    %5250 = vmatprep.subr.mxu0 0.0
    %5251 = vmatpush1.msra.mxu0 0.0
    %5252 = vmatprep.subr.mxu0 0.0
    %5253 = vmatpush1.msra.mxu0 0.0
    %5254 = vmatprep.subr.mxu0 0.0
    %5255 = vmatpush1.msra.mxu0 0.0
    %5256 = vmatprep.subr.mxu0 0.0
    %5257 = vmatpush1.msra.mxu0 0.0
    %5258 = vmatprep.subr.mxu0 0.0
    %5259 = vmatpush1.msra.mxu0 0.0
    %5260 = vmatprep.subr.mxu0 0.0
    %5261 = vmatpush1.msra.mxu0 0.0
    %5262 = vmatprep.subr.mxu0 0.0
    %5263 = vmatpush1.msra.mxu0 0.0
    %5264 = vmatprep.subr.mxu0 0.0
    %5265 = vmatpush1.msra.mxu0 0.0
    %5266 = vmatprep.subr.mxu0 0.0
    %5267 = vmatpush1.msra.mxu0 0.0
    %5268 = vmatprep.subr.mxu0 0.0
    %5269 = vmatpush1.msra.mxu0 0.0
    %5270 = vmatprep.subr.mxu0 0.0
    %5271 = vmatpush1.msra.mxu0 0.0
    %5272 = vmatprep.subr.mxu0 0.0
    %5273 = vmatpush1.msra.mxu0 0.0
    %5274 = vmatprep.subr.mxu0 0.0
    %5275 = vmatpush1.msra.mxu0 0.0
    %5276 = vmatprep.subr.mxu0 0.0
    %5277 = vmatpush1.msra.mxu0 0.0
    %5278 = vmatprep.subr.mxu0 0.0
    %5279 = vmatpush1.msra.mxu0 0.0
    %5280 = vmatprep.subr.mxu0 0.0
    %5281 = vmatpush1.msra.mxu0 0.0
    %5282 = vmatprep.subr.mxu0 0.0
    %5283 = vmatpush1.msra.mxu0 0.0
    %5284 = vmatprep.subr.mxu0 0.0
    %5285 = vmatpush1.msra.mxu0 0.0
    %5286 = vmatprep.mubr.f32.mxu0 0.0
    %5287 = vmatmul.mubr.f32.gmra.mrb[0].mxu0 %v5220
    %v5288 = vpop.f32.mrb[0].mxu0
    %v5289 = vadd.f32 0.0, %v5288
    %v5290 = vpop.f32.mrb[0].mxu0
    %5291 = vdwg.mxu0
    %5292 = vrot.lane.b32.xlu0 %v365, 72
    %v5293 = vpop.permute.xlu0 %5292
    %v5296 = vsel %vm393, %v5134, 0
    %5298 = vmatprep.subr.mxu0 0.0
    %5299 = vmatpush1.msra.mxu0 %v5293
    %5300 = vmatprep.subr.mxu0 0.0
    %5301 = vmatpush1.msra.mxu0 0.0
    %5302 = vmatprep.subr.mxu0 0.0
    %5303 = vmatpush1.msra.mxu0 0.0
    %5304 = vmatprep.subr.mxu0 0.0
    %5305 = vmatpush1.msra.mxu0 0.0
    %5306 = vmatprep.subr.mxu0 0.0
    %5307 = vmatpush1.msra.mxu0 0.0
    %5308 = vmatprep.subr.mxu0 0.0
    %5309 = vmatpush1.msra.mxu0 0.0
    %5310 = vmatprep.subr.mxu0 0.0
    %5311 = vmatpush1.msra.mxu0 0.0
    %5312 = vmatprep.subr.mxu0 0.0
    %5313 = vmatpush1.msra.mxu0 0.0
    %5314 = vmatprep.subr.mxu0 0.0
    %5315 = vmatpush1.msra.mxu0 0.0
    %5316 = vmatprep.subr.mxu0 0.0
    %5317 = vmatpush1.msra.mxu0 0.0
    %5318 = vmatprep.subr.mxu0 0.0
    %5319 = vmatpush1.msra.mxu0 0.0
    %5320 = vmatprep.subr.mxu0 0.0
    %5321 = vmatpush1.msra.mxu0 0.0
    %5322 = vmatprep.subr.mxu0 0.0
    %5323 = vmatpush1.msra.mxu0 0.0
    %5324 = vmatprep.subr.mxu0 0.0
    %5325 = vmatpush1.msra.mxu0 0.0
    %5326 = vmatprep.subr.mxu0 0.0
    %5327 = vmatpush1.msra.mxu0 0.0
    %5328 = vmatprep.subr.mxu0 0.0
    %5329 = vmatpush1.msra.mxu0 0.0
    %5330 = vmatprep.subr.mxu0 0.0
    %5331 = vmatpush1.msra.mxu0 0.0
    %5332 = vmatprep.subr.mxu0 0.0
    %5333 = vmatpush1.msra.mxu0 0.0
    %5334 = vmatprep.subr.mxu0 0.0
    %5335 = vmatpush1.msra.mxu0 0.0
    %5336 = vmatprep.subr.mxu0 0.0
    %5337 = vmatpush1.msra.mxu0 0.0
    %5338 = vmatprep.subr.mxu0 0.0
    %5339 = vmatpush1.msra.mxu0 0.0
    %5340 = vmatprep.subr.mxu0 0.0
    %5341 = vmatpush1.msra.mxu0 0.0
    %5342 = vmatprep.subr.mxu0 0.0
    %5343 = vmatpush1.msra.mxu0 0.0
    %5344 = vmatprep.subr.mxu0 0.0
    %5345 = vmatpush1.msra.mxu0 0.0
    %5346 = vmatprep.subr.mxu0 0.0
    %5347 = vmatpush1.msra.mxu0 0.0
    %5348 = vmatprep.subr.mxu0 0.0
    %5349 = vmatpush1.msra.mxu0 0.0
    %5350 = vmatprep.subr.mxu0 0.0
    %5351 = vmatpush1.msra.mxu0 0.0
    %5352 = vmatprep.subr.mxu0 0.0
    %5353 = vmatpush1.msra.mxu0 0.0
    %5354 = vmatprep.subr.mxu0 0.0
    %5355 = vmatpush1.msra.mxu0 0.0
    %5356 = vmatprep.subr.mxu0 0.0
    %5357 = vmatpush1.msra.mxu0 0.0
    %5358 = vmatprep.subr.mxu0 0.0
    %5359 = vmatpush1.msra.mxu0 0.0
    %5360 = vmatprep.subr.mxu0 0.0
    %5361 = vmatpush1.msra.mxu0 0.0
    %5362 = vmatprep.mubr.f32.mxu0 0.0
    %5363 = vmatmul.mubr.f32.gmra.mrb[0].mxu0 %v5296
    %v5364 = vpop.f32.mrb[0].mxu0
    %v5365 = vadd.f32 0.0, %v5364
    %v5366 = vpop.f32.mrb[0].mxu0
    %5367 = vdwg.mxu0
    %5368 = vrot.lane.b32.xlu0 %v370, 72
    %v5369 = vpop.permute.xlu0 %5368
    %v5372 = vsel %vm393, %v5135, 0
    %5374 = vmatprep.subr.mxu0 0.0
    %5375 = vmatpush1.msra.mxu0 %v5369
    %5376 = vmatprep.subr.mxu0 0.0
    %5377 = vmatpush1.msra.mxu0 0.0
    %5378 = vmatprep.subr.mxu0 0.0
    %5379 = vmatpush1.msra.mxu0 0.0
    %5380 = vmatprep.subr.mxu0 0.0
    %5381 = vmatpush1.msra.mxu0 0.0
    %5382 = vmatprep.subr.mxu0 0.0
    %5383 = vmatpush1.msra.mxu0 0.0
    %5384 = vmatprep.subr.mxu0 0.0
    %5385 = vmatpush1.msra.mxu0 0.0
    %5386 = vmatprep.subr.mxu0 0.0
    %5387 = vmatpush1.msra.mxu0 0.0
    %5388 = vmatprep.subr.mxu0 0.0
    %5389 = vmatpush1.msra.mxu0 0.0
    %5390 = vmatprep.subr.mxu0 0.0
    %5391 = vmatpush1.msra.mxu0 0.0
    %5392 = vmatprep.subr.mxu0 0.0
    %5393 = vmatpush1.msra.mxu0 0.0
    %5394 = vmatprep.subr.mxu0 0.0
    %5395 = vmatpush1.msra.mxu0 0.0
    %5396 = vmatprep.subr.mxu0 0.0
    %5397 = vmatpush1.msra.mxu0 0.0
    %5398 = vmatprep.subr.mxu0 0.0
    %5399 = vmatpush1.msra.mxu0 0.0
    %5400 = vmatprep.subr.mxu0 0.0
    %5401 = vmatpush1.msra.mxu0 0.0
    %5402 = vmatprep.subr.mxu0 0.0
    %5403 = vmatpush1.msra.mxu0 0.0
    %5404 = vmatprep.subr.mxu0 0.0
    %5405 = vmatpush1.msra.mxu0 0.0
    %5406 = vmatprep.subr.mxu0 0.0
    %5407 = vmatpush1.msra.mxu0 0.0
    %5408 = vmatprep.subr.mxu0 0.0
    %5409 = vmatpush1.msra.mxu0 0.0
    %5410 = vmatprep.subr.mxu0 0.0
    %5411 = vmatpush1.msra.mxu0 0.0
    %5412 = vmatprep.subr.mxu0 0.0
    %5413 = vmatpush1.msra.mxu0 0.0
    %5414 = vmatprep.subr.mxu0 0.0
    %5415 = vmatpush1.msra.mxu0 0.0
    %5416 = vmatprep.subr.mxu0 0.0
    %5417 = vmatpush1.msra.mxu0 0.0
    %5418 = vmatprep.subr.mxu0 0.0
    %5419 = vmatpush1.msra.mxu0 0.0
    %5420 = vmatprep.subr.mxu0 0.0
    %5421 = vmatpush1.msra.mxu0 0.0
    %5422 = vmatprep.subr.mxu0 0.0
    %5423 = vmatpush1.msra.mxu0 0.0
    %5424 = vmatprep.subr.mxu0 0.0
    %5425 = vmatpush1.msra.mxu0 0.0
    %5426 = vmatprep.subr.mxu0 0.0
    %5427 = vmatpush1.msra.mxu0 0.0
    %5428 = vmatprep.subr.mxu0 0.0
    %5429 = vmatpush1.msra.mxu0 0.0
    %5430 = vmatprep.subr.mxu0 0.0
    %5431 = vmatpush1.msra.mxu0 0.0
    %5432 = vmatprep.subr.mxu0 0.0
    %5433 = vmatpush1.msra.mxu0 0.0
    %5434 = vmatprep.subr.mxu0 0.0
    %5435 = vmatpush1.msra.mxu0 0.0
    %5436 = vmatprep.subr.mxu0 0.0
    %5437 = vmatpush1.msra.mxu0 0.0
    %5438 = vmatprep.mubr.f32.mxu0 0.0
    %5439 = vmatmul.mubr.f32.gmra.mrb[0].mxu0 %v5372
    %v5440 = vpop.f32.mrb[0].mxu0
    %v5441 = vadd.f32 0.0, %v5440
    %v5442 = vpop.f32.mrb[0].mxu0
    %5443 = vdwg.mxu0
    %5444 = vrot.lane.b32.xlu0 %v375, 72
    %v5445 = vpop.permute.xlu0 %5444
    %v5448 = vsel %vm393, %v5136, 0
    %5450 = vmatprep.subr.mxu0 0.0
    %5451 = vmatpush1.msra.mxu0 %v5445
    %5452 = vmatprep.subr.mxu0 0.0
    %5453 = vmatpush1.msra.mxu0 0.0
    %5454 = vmatprep.subr.mxu0 0.0
    %5455 = vmatpush1.msra.mxu0 0.0
    %5456 = vmatprep.subr.mxu0 0.0
    %5457 = vmatpush1.msra.mxu0 0.0
    %5458 = vmatprep.subr.mxu0 0.0
    %5459 = vmatpush1.msra.mxu0 0.0
    %5460 = vmatprep.subr.mxu0 0.0
    %5461 = vmatpush1.msra.mxu0 0.0
    %5462 = vmatprep.subr.mxu0 0.0
    %5463 = vmatpush1.msra.mxu0 0.0
    %5464 = vmatprep.subr.mxu0 0.0
    %5465 = vmatpush1.msra.mxu0 0.0
    %5466 = vmatprep.subr.mxu0 0.0
    %5467 = vmatpush1.msra.mxu0 0.0
    %5468 = vmatprep.subr.mxu0 0.0
    %5469 = vmatpush1.msra.mxu0 0.0
    %5470 = vmatprep.subr.mxu0 0.0
    %5471 = vmatpush1.msra.mxu0 0.0
    %5472 = vmatprep.subr.mxu0 0.0
    %5473 = vmatpush1.msra.mxu0 0.0
    %5474 = vmatprep.subr.mxu0 0.0
    %5475 = vmatpush1.msra.mxu0 0.0
    %5476 = vmatprep.subr.mxu0 0.0
    %5477 = vmatpush1.msra.mxu0 0.0
    %5478 = vmatprep.subr.mxu0 0.0
    %5479 = vmatpush1.msra.mxu0 0.0
    %5480 = vmatprep.subr.mxu0 0.0
    %5481 = vmatpush1.msra.mxu0 0.0
    %5482 = vmatprep.subr.mxu0 0.0
    %5483 = vmatpush1.msra.mxu0 0.0
    %5484 = vmatprep.subr.mxu0 0.0
    %5485 = vmatpush1.msra.mxu0 0.0
    %5486 = vmatprep.subr.mxu0 0.0
    %5487 = vmatpush1.msra.mxu0 0.0
    %5488 = vmatprep.subr.mxu0 0.0
    %5489 = vmatpush1.msra.mxu0 0.0
    %5490 = vmatprep.subr.mxu0 0.0
    %5491 = vmatpush1.msra.mxu0 0.0
    %5492 = vmatprep.subr.mxu0 0.0
    %5493 = vmatpush1.msra.mxu0 0.0
    %5494 = vmatprep.subr.mxu0 0.0
    %5495 = vmatpush1.msra.mxu0 0.0
    %5496 = vmatprep.subr.mxu0 0.0
    %5497 = vmatpush1.msra.mxu0 0.0
    %5498 = vmatprep.subr.mxu0 0.0
    %5499 = vmatpush1.msra.mxu0 0.0
    %5500 = vmatprep.subr.mxu0 0.0
    %5501 = vmatpush1.msra.mxu0 0.0
    %5502 = vmatprep.subr.mxu0 0.0
    %5503 = vmatpush1.msra.mxu0 0.0
    %5504 = vmatprep.subr.mxu0 0.0
    %5505 = vmatpush1.msra.mxu0 0.0
    %5506 = vmatprep.subr.mxu0 0.0
    %5507 = vmatpush1.msra.mxu0 0.0
    %5508 = vmatprep.subr.mxu0 0.0
    %5509 = vmatpush1.msra.mxu0 0.0
    %5510 = vmatprep.subr.mxu0 0.0
    %5511 = vmatpush1.msra.mxu0 0.0
    %5512 = vmatprep.subr.mxu0 0.0
    %5513 = vmatpush1.msra.mxu0 0.0
    %5514 = vmatprep.mubr.f32.mxu0 0.0
    %5515 = vmatmul.mubr.f32.gmra.mrb[0].mxu0 %v5448
    %v5516 = vpop.f32.mrb[0].mxu0
    %v5517 = vadd.f32 0.0, %v5516
    %v5518 = vpop.f32.mrb[0].mxu0
    %5519 = vdwg.mxu0
    %5520 = vrot.lane.b32.xlu0 %v380, 72
    %v5521 = vpop.permute.xlu0 %5520
    %v5524 = vsel %vm393, %v5137, 0
    %5526 = vmatprep.subr.mxu0 0.0
    %5527 = vmatpush1.msra.mxu0 %v5521
    %5528 = vmatprep.subr.mxu0 0.0
    %5529 = vmatpush1.msra.mxu0 0.0
    %5530 = vmatprep.subr.mxu0 0.0
    %5531 = vmatpush1.msra.mxu0 0.0
    %5532 = vmatprep.subr.mxu0 0.0
    %5533 = vmatpush1.msra.mxu0 0.0
    %5534 = vmatprep.subr.mxu0 0.0
    %5535 = vmatpush1.msra.mxu0 0.0
    %5536 = vmatprep.subr.mxu0 0.0
    %5537 = vmatpush1.msra.mxu0 0.0
    %5538 = vmatprep.subr.mxu0 0.0
    %5539 = vmatpush1.msra.mxu0 0.0
    %5540 = vmatprep.subr.mxu0 0.0
    %5541 = vmatpush1.msra.mxu0 0.0
    %5542 = vmatprep.subr.mxu0 0.0
    %5543 = vmatpush1.msra.mxu0 0.0
    %5544 = vmatprep.subr.mxu0 0.0
    %5545 = vmatpush1.msra.mxu0 0.0
    %5546 = vmatprep.subr.mxu0 0.0
    %5547 = vmatpush1.msra.mxu0 0.0
    %5548 = vmatprep.subr.mxu0 0.0
    %5549 = vmatpush1.msra.mxu0 0.0
    %5550 = vmatprep.subr.mxu0 0.0
    %5551 = vmatpush1.msra.mxu0 0.0
    %5552 = vmatprep.subr.mxu0 0.0
    %5553 = vmatpush1.msra.mxu0 0.0
    %5554 = vmatprep.subr.mxu0 0.0
    %5555 = vmatpush1.msra.mxu0 0.0
    %5556 = vmatprep.subr.mxu0 0.0
    %5557 = vmatpush1.msra.mxu0 0.0
    %5558 = vmatprep.subr.mxu0 0.0
    %5559 = vmatpush1.msra.mxu0 0.0
    %5560 = vmatprep.subr.mxu0 0.0
    %5561 = vmatpush1.msra.mxu0 0.0
    %5562 = vmatprep.subr.mxu0 0.0
    %5563 = vmatpush1.msra.mxu0 0.0
    %5564 = vmatprep.subr.mxu0 0.0
    %5565 = vmatpush1.msra.mxu0 0.0
    %5566 = vmatprep.subr.mxu0 0.0
    %5567 = vmatpush1.msra.mxu0 0.0
    %5568 = vmatprep.subr.mxu0 0.0
    %5569 = vmatpush1.msra.mxu0 0.0
    %5570 = vmatprep.subr.mxu0 0.0
    %5571 = vmatpush1.msra.mxu0 0.0
    %5572 = vmatprep.subr.mxu0 0.0
    %5573 = vmatpush1.msra.mxu0 0.0
    %5574 = vmatprep.subr.mxu0 0.0
    %5575 = vmatpush1.msra.mxu0 0.0
    %5576 = vmatprep.subr.mxu0 0.0
    %5577 = vmatpush1.msra.mxu0 0.0
    %5578 = vmatprep.subr.mxu0 0.0
    %5579 = vmatpush1.msra.mxu0 0.0
    %5580 = vmatprep.subr.mxu0 0.0
    %5581 = vmatpush1.msra.mxu0 0.0
    %5582 = vmatprep.subr.mxu0 0.0
    %5583 = vmatpush1.msra.mxu0 0.0
    %5584 = vmatprep.subr.mxu0 0.0
    %5585 = vmatpush1.msra.mxu0 0.0
    %5586 = vmatprep.subr.mxu0 0.0
    %5587 = vmatpush1.msra.mxu0 0.0
    %5588 = vmatprep.subr.mxu0 0.0
    %5589 = vmatpush1.msra.mxu0 0.0
    %5590 = vmatprep.mubr.f32.mxu0 0.0
    %5591 = vmatmul.mubr.f32.gmra.mrb[0].mxu0 %v5524
    %v5592 = vpop.f32.mrb[0].mxu0
    %v5593 = vadd.f32 0.0, %v5592
    %v5594 = vpop.f32.mrb[0].mxu0
    %5595 = vdwg.mxu0
    %5596 = vrot.lane.b32.xlu0 %v385, 72
    %v5597 = vpop.permute.xlu0 %5596
    %v5600 = vsel %vm393, %v5138, 0
    %5602 = vmatprep.subr.mxu0 0.0
    %5603 = vmatpush1.msra.mxu0 %v5597
    %5604 = vmatprep.subr.mxu0 0.0
    %5605 = vmatpush1.msra.mxu0 0.0
    %5606 = vmatprep.subr.mxu0 0.0
    %5607 = vmatpush1.msra.mxu0 0.0
    %5608 = vmatprep.subr.mxu0 0.0
    %5609 = vmatpush1.msra.mxu0 0.0
    %5610 = vmatprep.subr.mxu0 0.0
    %5611 = vmatpush1.msra.mxu0 0.0
    %5612 = vmatprep.subr.mxu0 0.0
    %5613 = vmatpush1.msra.mxu0 0.0
    %5614 = vmatprep.subr.mxu0 0.0
    %5615 = vmatpush1.msra.mxu0 0.0
    %5616 = vmatprep.subr.mxu0 0.0
    %5617 = vmatpush1.msra.mxu0 0.0
    %5618 = vmatprep.subr.mxu0 0.0
    %5619 = vmatpush1.msra.mxu0 0.0
    %5620 = vmatprep.subr.mxu0 0.0
    %5621 = vmatpush1.msra.mxu0 0.0
    %5622 = vmatprep.subr.mxu0 0.0
    %5623 = vmatpush1.msra.mxu0 0.0
    %5624 = vmatprep.subr.mxu0 0.0
    %5625 = vmatpush1.msra.mxu0 0.0
    %5626 = vmatprep.subr.mxu0 0.0
    %5627 = vmatpush1.msra.mxu0 0.0
    %5628 = vmatprep.subr.mxu0 0.0
    %5629 = vmatpush1.msra.mxu0 0.0
    %5630 = vmatprep.subr.mxu0 0.0
    %5631 = vmatpush1.msra.mxu0 0.0
    %5632 = vmatprep.subr.mxu0 0.0
    %5633 = vmatpush1.msra.mxu0 0.0
    %5634 = vmatprep.subr.mxu0 0.0
    %5635 = vmatpush1.msra.mxu0 0.0
    %5636 = vmatprep.subr.mxu0 0.0
    %5637 = vmatpush1.msra.mxu0 0.0
    %5638 = vmatprep.subr.mxu0 0.0
    %5639 = vmatpush1.msra.mxu0 0.0
    %5640 = vmatprep.subr.mxu0 0.0
    %5641 = vmatpush1.msra.mxu0 0.0
    %5642 = vmatprep.subr.mxu0 0.0
    %5643 = vmatpush1.msra.mxu0 0.0
    %5644 = vmatprep.subr.mxu0 0.0
    %5645 = vmatpush1.msra.mxu0 0.0
    %5646 = vmatprep.subr.mxu0 0.0
    %5647 = vmatpush1.msra.mxu0 0.0
    %5648 = vmatprep.subr.mxu0 0.0
    %5649 = vmatpush1.msra.mxu0 0.0
    %5650 = vmatprep.subr.mxu0 0.0
    %5651 = vmatpush1.msra.mxu0 0.0
    %5652 = vmatprep.subr.mxu0 0.0
    %5653 = vmatpush1.msra.mxu0 0.0
    %5654 = vmatprep.subr.mxu0 0.0
    %5655 = vmatpush1.msra.mxu0 0.0
    %5656 = vmatprep.subr.mxu0 0.0
    %5657 = vmatpush1.msra.mxu0 0.0
    %5658 = vmatprep.subr.mxu0 0.0
    %5659 = vmatpush1.msra.mxu0 0.0
    %5660 = vmatprep.subr.mxu0 0.0
    %5661 = vmatpush1.msra.mxu0 0.0
    %5662 = vmatprep.subr.mxu0 0.0
    %5663 = vmatpush1.msra.mxu0 0.0
    %5664 = vmatprep.subr.mxu0 0.0
    %5665 = vmatpush1.msra.mxu0 0.0
    %5666 = vmatprep.mubr.f32.mxu0 0.0
    %5667 = vmatmul.mubr.f32.gmra.mrb[0].mxu0 %v5600
    %v5668 = vpop.f32.mrb[0].mxu0
    %v5669 = vadd.f32 0.0, %v5668
    %v5670 = vpop.f32.mrb[0].mxu0
    %5671 = vdwg.mxu0
    %5672 = vrot.lane.b32.xlu0 %v390, 72
    %v5673 = vpop.permute.xlu0 %5672
    %v5676 = vsel %vm393, %v5139, 0
    %5678 = vmatprep.subr.mxu0 0.0
    %5679 = vmatpush1.msra.mxu0 %v5673
    %5680 = vmatprep.subr.mxu0 0.0
    %5681 = vmatpush1.msra.mxu0 0.0
    %5682 = vmatprep.subr.mxu0 0.0
    %5683 = vmatpush1.msra.mxu0 0.0
    %5684 = vmatprep.subr.mxu0 0.0
    %5685 = vmatpush1.msra.mxu0 0.0
    %5686 = vmatprep.subr.mxu0 0.0
    %5687 = vmatpush1.msra.mxu0 0.0
    %5688 = vmatprep.subr.mxu0 0.0
    %5689 = vmatpush1.msra.mxu0 0.0
    %5690 = vmatprep.subr.mxu0 0.0
    %5691 = vmatpush1.msra.mxu0 0.0
    %5692 = vmatprep.subr.mxu0 0.0
    %5693 = vmatpush1.msra.mxu0 0.0
    %5694 = vmatprep.subr.mxu0 0.0
    %5695 = vmatpush1.msra.mxu0 0.0
    %5696 = vmatprep.subr.mxu0 0.0
    %5697 = vmatpush1.msra.mxu0 0.0
    %5698 = vmatprep.subr.mxu0 0.0
    %5699 = vmatpush1.msra.mxu0 0.0
    %5700 = vmatprep.subr.mxu0 0.0
    %5701 = vmatpush1.msra.mxu0 0.0
    %5702 = vmatprep.subr.mxu0 0.0
    %5703 = vmatpush1.msra.mxu0 0.0
    %5704 = vmatprep.subr.mxu0 0.0
    %5705 = vmatpush1.msra.mxu0 0.0
    %5706 = vmatprep.subr.mxu0 0.0
    %5707 = vmatpush1.msra.mxu0 0.0
    %5708 = vmatprep.subr.mxu0 0.0
    %5709 = vmatpush1.msra.mxu0 0.0
    %5710 = vmatprep.subr.mxu0 0.0
    %5711 = vmatpush1.msra.mxu0 0.0
    %5712 = vmatprep.subr.mxu0 0.0
    %5713 = vmatpush1.msra.mxu0 0.0
    %5714 = vmatprep.subr.mxu0 0.0
    %5715 = vmatpush1.msra.mxu0 0.0
    %5716 = vmatprep.subr.mxu0 0.0
    %5717 = vmatpush1.msra.mxu0 0.0
    %5718 = vmatprep.subr.mxu0 0.0
    %5719 = vmatpush1.msra.mxu0 0.0
    %5720 = vmatprep.subr.mxu0 0.0
    %5721 = vmatpush1.msra.mxu0 0.0
    %5722 = vmatprep.subr.mxu0 0.0
    %5723 = vmatpush1.msra.mxu0 0.0
    %5724 = vmatprep.subr.mxu0 0.0
    %5725 = vmatpush1.msra.mxu0 0.0
    %5726 = vmatprep.subr.mxu0 0.0
    %5727 = vmatpush1.msra.mxu0 0.0
    %5728 = vmatprep.subr.mxu0 0.0
    %5729 = vmatpush1.msra.mxu0 0.0
    %5730 = vmatprep.subr.mxu0 0.0
    %5731 = vmatpush1.msra.mxu0 0.0
    %5732 = vmatprep.subr.mxu0 0.0
    %5733 = vmatpush1.msra.mxu0 0.0
    %5734 = vmatprep.subr.mxu0 0.0
    %5735 = vmatpush1.msra.mxu0 0.0
    %5736 = vmatprep.subr.mxu0 0.0
    %5737 = vmatpush1.msra.mxu0 0.0
    %5738 = vmatprep.subr.mxu0 0.0
    %5739 = vmatpush1.msra.mxu0 0.0
    %5740 = vmatprep.subr.mxu0 0.0
    %5741 = vmatpush1.msra.mxu0 0.0
    %5742 = vmatprep.mubr.f32.mxu0 0.0
    %5743 = vmatmul.mubr.f32.gmra.mrb[0].mxu0 %v5676
    %v5744 = vpop.f32.mrb[0].mxu0
    %v5745 = vadd.f32 0.0, %v5744
    %v5746 = vpop.f32.mrb[0].mxu0
    %5747 = vdwg.mxu0
    %5756 = vrot.lane.b32.xlu0 %v5213, 24
    %v5757 = vpop.permute.xlu0 %5756
    %5758 = vrot.lane.b32.xlu0 %v5289, 24
    %v5759 = vpop.permute.xlu0 %5758
    %5760 = vrot.lane.b32.xlu0 %v5365, 24
    %v5761 = vpop.permute.xlu0 %5760
    %5762 = vrot.lane.b32.xlu0 %v5441, 24
    %v5763 = vpop.permute.xlu0 %5762
    %5764 = vrot.lane.b32.xlu0 %v5517, 24
    %v5765 = vpop.permute.xlu0 %5764
    %5766 = vrot.lane.b32.xlu0 %v5593, 24
    %v5767 = vpop.permute.xlu0 %5766
    %5768 = vrot.lane.b32.xlu0 %v5669, 24
    %v5769 = vpop.permute.xlu0 %5768
    %5770 = vrot.lane.b32.xlu0 %v5745, 24
    %v5771 = vpop.permute.xlu0 %5770
    %vm5780 = vcmask 261312
    %5781 = vst.msk [vmem:[#allocation2] sm:$0xff] %vm5780, %v5757
    %5782 = vst.msk [vmem:[#allocation2 + $0x8] sm:$0xff] %vm5780, %v5759
    %5783 = vst.msk [vmem:[#allocation2 + $0x10] sm:$0xff] %vm5780, %v5761
    %5784 = vst.msk [vmem:[#allocation2 + $0x18] sm:$0xff] %vm5780, %v5763
    %5785 = vst.msk [vmem:[#allocation2 + $0x20] sm:$0xff] %vm5780, %v5765
    %5786 = vst.msk [vmem:[#allocation2 + $0x28] sm:$0xff] %vm5780, %v5767
    %5787 = vst.msk [vmem:[#allocation2 + $0x30] sm:$0xff] %vm5780, %v5769
    %5788 = vst.msk [vmem:[#allocation2 + $0x38] sm:$0xff] %vm5780, %v5771
    %v5789 = vld [vmem:[#allocation2] sm:$0xff]
    %v5790 = vld [vmem:[#allocation2 + $0x8] sm:$0xff]
    %v5791 = vld [vmem:[#allocation2 + $0x10] sm:$0xff]
    %v5792 = vld [vmem:[#allocation2 + $0x18] sm:$0xff]
    %v5793 = vld [vmem:[#allocation2 + $0x20] sm:$0xff]
    %v5794 = vld [vmem:[#allocation2 + $0x28] sm:$0xff]
    %v5795 = vld [vmem:[#allocation2 + $0x30] sm:$0xff]
    %v5796 = vld [vmem:[#allocation2 + $0x38] sm:$0xff]
    %v5797 = vadd.f32 %v215, %v5789
    %v5798 = vadd.f32 %v220, %v5790
    %v5799 = vadd.f32 %v225, %v5791
    %v5800 = vadd.f32 %v230, %v5792
    %v5801 = vadd.f32 %v235, %v5793
    %v5802 = vadd.f32 %v240, %v5794
    %v5803 = vadd.f32 %v245, %v5795
    %v5804 = vadd.f32 %v250, %v5796
    %v5805 = vld [vmem:[#allocation11] sm:$0xff]
    %v5806 = vld [vmem:[#allocation11 + $0x8] sm:$0xff]
    %v5807 = vld [vmem:[#allocation11 + $0x10] sm:$0xff]
    %v5808 = vld [vmem:[#allocation11 + $0x18] sm:$0xff]
    %v5809 = vld [vmem:[%s7] sm:$0x1]
    %v5811 = vlaneseq
    %v5812 = vshrl.u32 %v5811, 7
    %v5813 = vsub.s32 0, %v5812
    %v5814 = vrot.slane %v5809, %v5813
    %vm5816 = vcmask 261120
    %v5818 = vsel %vm5816, %v5797, 0
    %v5821 = vsel %vm5816, %v5798, 0
    %v5824 = vsel %vm5816, %v5799, 0
    %v5827 = vsel %vm5816, %v5800, 0
    %v5830 = vsel %vm5816, %v5801, 0
    %v5833 = vsel %vm5816, %v5802, 0
    %v5836 = vsel %vm5816, %v5803, 0
    %v5839 = vsel %vm5816, %v5804, 0
    %5841 = vmatprep.subr.mxu0 0.0
    %5842 = vmatpush1.msra.mxu0 %v5805
    %5843 = vmatprep.subr.mxu0 0.0
    %5844 = vmatpush1.msra.mxu0 %v5806
    %5845 = vmatprep.subr.mxu0 0.0
    %5846 = vmatpush1.msra.mxu0 %v5807
    %5847 = vmatprep.subr.mxu0 0.0
    %5848 = vmatpush1.msra.mxu0 %v5808
    %5849 = vmatprep.subr.mxu0 0.0
    %5850 = vmatpush1.msra.mxu0 0.0
    %5851 = vmatprep.subr.mxu0 0.0
    %5852 = vmatpush1.msra.mxu0 0.0
    %5853 = vmatprep.subr.mxu0 0.0
    %5854 = vmatpush1.msra.mxu0 0.0
    %5855 = vmatprep.subr.mxu0 0.0
    %5856 = vmatpush1.msra.mxu0 0.0
    %5857 = vmatprep.subr.mxu0 0.0
    %5858 = vmatpush1.msra.mxu0 0.0
    %5859 = vmatprep.subr.mxu0 0.0
    %5860 = vmatpush1.msra.mxu0 0.0
    %5861 = vmatprep.subr.mxu0 0.0
    %5862 = vmatpush1.msra.mxu0 0.0
    %5863 = vmatprep.subr.mxu0 0.0
    %5864 = vmatpush1.msra.mxu0 0.0
    %5865 = vmatprep.subr.mxu0 0.0
    %5866 = vmatpush1.msra.mxu0 0.0
    %5867 = vmatprep.subr.mxu0 0.0
    %5868 = vmatpush1.msra.mxu0 0.0
    %5869 = vmatprep.subr.mxu0 0.0
    %5870 = vmatpush1.msra.mxu0 0.0
    %5871 = vmatprep.subr.mxu0 0.0
    %5872 = vmatpush1.msra.mxu0 0.0
    %5873 = vmatprep.subr.mxu0 0.0
    %5874 = vmatpush1.msra.mxu0 0.0
    %5875 = vmatprep.subr.mxu0 0.0
    %5876 = vmatpush1.msra.mxu0 0.0
    %5877 = vmatprep.subr.mxu0 0.0
    %5878 = vmatpush1.msra.mxu0 0.0
    %5879 = vmatprep.subr.mxu0 0.0
    %5880 = vmatpush1.msra.mxu0 0.0
    %5881 = vmatprep.subr.mxu0 0.0
    %5882 = vmatpush1.msra.mxu0 0.0
    %5883 = vmatprep.subr.mxu0 0.0
    %5884 = vmatpush1.msra.mxu0 0.0
    %5885 = vmatprep.subr.mxu0 0.0
    %5886 = vmatpush1.msra.mxu0 0.0
    %5887 = vmatprep.subr.mxu0 0.0
    %5888 = vmatpush1.msra.mxu0 0.0
    %5889 = vmatprep.subr.mxu0 0.0
    %5890 = vmatpush1.msra.mxu0 0.0
    %5891 = vmatprep.subr.mxu0 0.0
    %5892 = vmatpush1.msra.mxu0 0.0
    %5893 = vmatprep.subr.mxu0 0.0
    %5894 = vmatpush1.msra.mxu0 0.0
    %5895 = vmatprep.subr.mxu0 0.0
    %5896 = vmatpush1.msra.mxu0 0.0
    %5897 = vmatprep.subr.mxu0 0.0
    %5898 = vmatpush1.msra.mxu0 0.0
    %5899 = vmatprep.subr.mxu0 0.0
    %5900 = vmatpush1.msra.mxu0 0.0
    %5901 = vmatprep.subr.mxu0 0.0
    %5902 = vmatpush1.msra.mxu0 0.0
    %5903 = vmatprep.subr.mxu0 0.0
    %5904 = vmatpush1.msra.mxu0 0.0
    %5905 = vmatprep.mubr.f32.mxu0 0.0
    %5906 = vmatmul.mubr.f32.gmra.mrb[0].mxu0 %v5818
    %v5907 = vpop.f32.mrb[0].mxu0
    %v5908 = vadd.f32 %v5814, %v5907
    %v5909 = vpop.f32.mrb[0].mxu0
    %5910 = vmatprep.mubr.f32.mxu0 0.0
    %5911 = vmatmul.mubr.f32.gmra.mrb[0].mxu0 %v5821
    %v5912 = vpop.f32.mrb[0].mxu0
    %v5913 = vadd.f32 %v5814, %v5912
    %v5914 = vpop.f32.mrb[0].mxu0
    %5915 = vmatprep.mubr.f32.mxu0 0.0
    %5916 = vmatmul.mubr.f32.gmra.mrb[0].mxu0 %v5824
    %v5917 = vpop.f32.mrb[0].mxu0
    %v5918 = vadd.f32 %v5814, %v5917
    %v5919 = vpop.f32.mrb[0].mxu0
    %5920 = vmatprep.mubr.f32.mxu0 0.0
    %5921 = vmatmul.mubr.f32.gmra.mrb[0].mxu0 %v5827
    %v5922 = vpop.f32.mrb[0].mxu0
    %v5923 = vadd.f32 %v5814, %v5922
    %v5924 = vpop.f32.mrb[0].mxu0
    %5925 = vmatprep.mubr.f32.mxu0 0.0
    %5926 = vmatmul.mubr.f32.gmra.mrb[0].mxu0 %v5830
    %v5927 = vpop.f32.mrb[0].mxu0
    %v5928 = vadd.f32 %v5814, %v5927
    %v5929 = vpop.f32.mrb[0].mxu0
    %5930 = vmatprep.mubr.f32.mxu0 0.0
    %5931 = vmatmul.mubr.f32.gmra.mrb[0].mxu0 %v5833
    %v5932 = vpop.f32.mrb[0].mxu0
    %v5933 = vadd.f32 %v5814, %v5932
    %v5934 = vpop.f32.mrb[0].mxu0
    %5935 = vmatprep.mubr.f32.mxu0 0.0
    %5936 = vmatmul.mubr.f32.gmra.mrb[0].mxu0 %v5836
    %v5937 = vpop.f32.mrb[0].mxu0
    %v5938 = vadd.f32 %v5814, %v5937
    %v5939 = vpop.f32.mrb[0].mxu0
    %5940 = vmatprep.mubr.f32.mxu0 0.0
    %5941 = vmatmul.mubr.f32.gmra.mrb[0].mxu0 %v5839
    %v5942 = vpop.f32.mrb[0].mxu0
    %v5943 = vadd.f32 %v5814, %v5942
    %v5944 = vpop.f32.mrb[0].mxu0
    %5945 = vdwg.mxu0
    %v5946 = vmax.f32 %v5908, 0.0
    %v5947 = vmax.f32 %v5913, 0.0
    %v5948 = vmax.f32 %v5918, 0.0
    %v5949 = vmax.f32 %v5923, 0.0
    %v5950 = vmax.f32 %v5928, 0.0
    %v5951 = vmax.f32 %v5933, 0.0
    %v5952 = vmax.f32 %v5938, 0.0
    %v5953 = vmax.f32 %v5943, 0.0
    %v5954 = vadd.f32 %v5797, %v5946
    %v5955 = vadd.f32 %v5798, %v5947
    %v5956 = vadd.f32 %v5799, %v5948
    %v5957 = vadd.f32 %v5800, %v5949
    %v5958 = vadd.f32 %v5801, %v5950
    %v5959 = vadd.f32 %v5802, %v5951
    %v5960 = vadd.f32 %v5803, %v5952
    %v5961 = vadd.f32 %v5804, %v5953
    %5962 = vst.msk [vmem:[#allocation12] sm:$0xff] %vm5816, %v5954
    %5963 = vst.msk [vmem:[#allocation12 + $0x8] sm:$0xff] %vm5816, %v5955
    %5964 = vst.msk [vmem:[#allocation12 + $0x10] sm:$0xff] %vm5816, %v5956
    %5965 = vst.msk [vmem:[#allocation12 + $0x18] sm:$0xff] %vm5816, %v5957
    %5966 = vst.msk [vmem:[#allocation12 + $0x20] sm:$0xff] %vm5816, %v5958
    %5967 = vst.msk [vmem:[#allocation12 + $0x28] sm:$0xff] %vm5816, %v5959
    %5968 = vst.msk [vmem:[#allocation12 + $0x30] sm:$0xff] %vm5816, %v5960
    %5969 = vst.msk [vmem:[#allocation12 + $0x38] sm:$0xff] %vm5816, %v5961
    // Predicated region
    $region54: #{tpu_custom_call.1} parent=1 // pred_check
      _
    $region55: #{tpu_custom_call.1} parent=1 // pred_check_branch
      %5971 = sbr.rel (0) target = $region57
    $region56: #{tpu_custom_call.1} parent=1 // pred_region
      %s5973 = ssub.s32 1024, 1024
      %5974 = vsyncadd [#allocation5], %s5973
      %s5975 = sshll.u32 [#allocation12], 4
      %s5976 = int_to_ptr.vmem [resolvable:$true] %s5975
      %5981 = dma.vmem_to_hbm [thread:$0]  %s5976, 1024, %s8, [#allocation5], 128, 128, 8
    $region57: #{tpu_custom_call.1} parent=1 // pred_fallthru
      _
    // Predicated region
    $region58: #{tpu_custom_call.1} parent=1 // pred_check
      _
    $region59: #{tpu_custom_call.1} parent=1 // pred_check_branch
      %5983 = sbr.rel (0) target = $region61
    $region60: #{tpu_custom_call.1} parent=1 // pred_region
      %5984 = dma.done [#allocation5], 1024
    $region61: #{tpu_custom_call.1} parent=1 // pred_fallthru
      _
    %5985 = vsyncpa [#allocation4], 1
    %5986 = vsyncpa [#allocation7], 1
    %5987 = vsyncpa [#allocation10], 1
    %5988 = vsyncpa [#allocation5], 1

</llo_original>
